<compile_context>
chip_gen: v6e
topology: v6e:2x2x1
jax: 0.10.0
libtpu: 0.0.40
codegen_flags: <defaults>
</compile_context>

<pallas_src>
import jax
import jax.numpy as jnp
from jax import lax
from jax.experimental import pallas as pl
from jax.experimental.pallas import tpu as pltpu
import numpy as np

_SUB = 128      # batch lanes per sub-chunk (one full vreg lane width)
_NSB_MAX = 8    # lane-groups per grid step (8 * 128 = 1024 samples / step)


def _temporal_attention_kernel(x_ref, u1_ref, u2_ref, u3_ref, be_ref, ve_ref,
                               out_ref):
    # x_ref : (nsb, N, F, T, 128) VMEM,  x[g, n, f, t, b] = X[sample, n, f, t]
    # u1_ref: (N,)    SMEM   u2_ref: (F*N,) SMEM   u3_ref: (F,) SMEM
    # be_ref: (T, T, 1) VMEM          ve_ref: (T*T,) SMEM
    # out_ref: (nsb, T, T, 128) VMEM
    nsb, N, F, T, SUB = x_ref.shape

    def process(i, carry):
        # ---- Pass 1 over n:  m[f, t, :] = sum_n x[n, f, t, :] * U1[n]
        #                      rhs[n][t2, :] = sum_f x[n, f, t2, :] * U3[f]
        u3s = [u3_ref[f] for f in range(F)]
        m = None
        rhs = []
        for n in range(N):
            x_n = x_ref[i, n]                          # (F, T, SUB)
            c = x_n * u1_ref[n]
            m = c if m is None else m + c              # (F, T, SUB)
            r = x_n[0] * u3s[0]
            for f in range(1, F):
                r = r + x_n[f] * u3s[f]
            rhs.append(r)                              # (T, SUB)

        # ---- LHS[n'][t1, :] = sum_f m[f, t1, :] * U2[f, n']
        lhs = []
        for n in range(N):
            l = m[0] * u2_ref[n]
            for f in range(1, F):
                l = l + m[f] * u2_ref[f * N + n]
            lhs.append(l)                              # (T, SUB)

        # ---- sig[t1][t2, :] = sigmoid(sum_n LHS[n][t1, :] * rhs[n][t2, :]
        #                               + be[t1, t2])
        sig = []
        for t1 in range(T):
            acc = None
            for n in range(N):
                lb = jnp.broadcast_to(lhs[n][t1:t1 + 1, :], (T, SUB))
                term = lb * rhs[n]
                acc = term if acc is None else acc + term
            sig.append(jax.nn.sigmoid(acc + be_ref[t1]))   # (T,SUB) + (T,1)

        # ---- E[t1][t2, :] = sum_j Ve[t1, j] * sig[j][t2, :]
        e = []
        for t1 in range(T):
            acc = sig[0] * ve_ref[t1 * T]
            for j in range(1, T):
                acc = acc + sig[j] * ve_ref[t1 * T + j]
            e.append(acc)                              # (T, SUB)

        # ---- softmax over t1 (PyTorch dim=1); exact division for tolerance.
        mx = e[0]
        for t1 in range(1, T):
            mx = jnp.maximum(mx, e[t1])
        ex = [jnp.exp(v - mx) for v in e]
        den = ex[0]
        for t1 in range(1, T):
            den = den + ex[t1]
        inv = 1.0 / den                                # exact f32 divide
        for t1 in range(T):
            out_ref[i, t1] = ex[t1] * inv              # full-vreg (8,128) store
        return carry

    lax.fori_loop(0, nsb, process, 0)


def _choose_blocking(B):
    g_total = -(-B // _SUB)                 # 128-lane groups needed
    if g_total <= 1:
        nsb = 1
    else:
        # keep >= 2 grid steps so both v7x TensorCores get work
        nsb = min(_NSB_MAX, -(-g_total // 2))
    nblk = -(-g_total // nsb)
    return nsb, nblk


def temporal_attention(X, U1, U2, U3, be, Ve):
    """X: (B, N, F, T) float32 (PyTorch layout). Returns (B, T, T)."""
    B, N, F, T = X.shape
    nsb, nblk = _choose_blocking(B)
    g_pad = nsb * nblk
    Bp = g_pad * _SUB

    x = X.astype(jnp.float32)
    if Bp != B:
        # Zero padding flows through sigmoid/softmax without NaNs; sliced off.
        x = jnp.pad(x, ((0, Bp - B), (0, 0), (0, 0), (0, 0)))
    # Batch-on-lanes layout: (Bp, N, F, T) -> (g, N, F, T, 128).
    x_lanes = jnp.transpose(x.reshape(g_pad, _SUB, N, F, T), (0, 2, 3, 4, 1))

    # Tiny weights: scalars in SMEM (flattened, long axis last), be in VMEM
    # shaped (T, T, 1) so the bias add is a standard lane broadcast.
    u1 = U1.reshape(N).astype(jnp.float32)
    u2 = U2.reshape(F * N).astype(jnp.float32)      # index f*N + n
    u3 = U3.reshape(F).astype(jnp.float32)
    be3 = be.reshape(T, T, 1).astype(jnp.float32)
    ve = Ve.reshape(T * T).astype(jnp.float32)      # index t1*T + j

    flops = 2 * Bp * (3 * T * F * N + T * T * N + T * T * T)
    transcendentals = 2 * Bp * T * T
    bytes_accessed = 4 * (Bp * N * F * T + Bp * T * T
                          + N + F * N + F + 2 * T * T)

    grid_spec = pltpu.PrefetchScalarGridSpec(
        num_scalar_prefetch=0,
        grid=(nblk,),
        in_specs=[
            pl.BlockSpec((nsb, N, F, T, _SUB), lambda g: (g, 0, 0, 0, 0)),
            pl.BlockSpec(memory_space=pltpu.MemorySpace.SMEM),
            pl.BlockSpec(memory_space=pltpu.MemorySpace.SMEM),
            pl.BlockSpec(memory_space=pltpu.MemorySpace.SMEM),
            pl.BlockSpec((T, T, 1), lambda g: (0, 0, 0)),
            pl.BlockSpec(memory_space=pltpu.MemorySpace.SMEM),
        ],
        out_specs=pl.BlockSpec((nsb, T, T, _SUB), lambda g: (g, 0, 0, 0)),
    )

    out_lanes = pl.pallas_call(
        _temporal_attention_kernel,
        out_shape=jax.ShapeDtypeStruct((g_pad, T, T, _SUB), jnp.float32),
        grid_spec=grid_spec,
        compiler_params=pltpu.CompilerParams(
            dimension_semantics=("parallel",),
            vmem_limit_bytes=32 * 1024 * 1024,
        ),
        cost_estimate=pl.CostEstimate(flops=flops,
                                      transcendentals=transcendentals,
                                      bytes_accessed=bytes_accessed),
    )(x_lanes, u1, u2, u3, be3, ve)

    # (g, T, T, 128) -> (B, T, T): tiny output, one cheap wrapper transpose.
    out = jnp.transpose(out_lanes, (0, 3, 1, 2)).reshape(Bp, T, T)
    return out[:B]


def _reference(X, U1, U2, U3, be, Ve):
    """Pure-JAX transcription of the PyTorch forward, for verification."""
    LHS = jnp.matmul(jnp.matmul(jnp.transpose(X, (0, 3, 2, 1)), U1), U2)
    RHS = jnp.matmul(U3, X)
    E = jnp.matmul(Ve, jax.nn.sigmoid(jnp.matmul(LHS, RHS) + be))
    return jax.nn.softmax(E, axis=1)


def _xavier_uniform(key, shape):
    fan_in, fan_out = shape[-1], shape[-2]
    bound = float(np.sqrt(6.0 / (fan_in + fan_out)))
    return jax.random.uniform(key, shape, jnp.float32, -bound, bound)


if __name__ == "__main__":
    B, N, F, T = 2, 16, 4, 8   # batch, num_of_vertices, in_channels, timesteps

    key = jax.random.PRNGKey(0)
    k_x, k_u1, k_u2, k_u3, k_be, k_ve = jax.random.split(key, 6)

    X = jax.random.normal(k_x, (B, N, F, T), jnp.float32)

    # Deterministic parameter init mirroring _reset_parameters:
    # xavier_uniform for dim>1 params, uniform(0,1) for vectors.
    U1 = jax.random.uniform(k_u1, (N,), jnp.float32)
    U2 = _xavier_uniform(k_u2, (F, N))
    U3 = jax.random.uniform(k_u3, (F,), jnp.float32)
    be = _xavier_uniform(k_be, (1, T, T))
    Ve = _xavier_uniform(k_ve, (T, T))

    fwd = jax.jit(temporal_attention)
    out = jax.block_until_ready(fwd(X, U1, U2, U3, be, Ve))

    ref = _reference(X, U1, U2, U3, be, Ve)
    np.testing.assert_allclose(np.asarray(out), np.asarray(ref),
                               rtol=1e-5, atol=1e-5)
    print("KERNEL_OK")
</pallas_src>

<mosaic_0001>
module attributes {stable_mosaic.version = 11 : i64} {
  func.func @_temporal_attention_kernel(%arg0: i32, %arg1: memref<1x16x4x8x128xf32, #tpu.memory_space<vmem>>, %arg2: memref<16xf32, #tpu.memory_space<smem>>, %arg3: memref<64xf32, #tpu.memory_space<smem>>, %arg4: memref<4xf32, #tpu.memory_space<smem>>, %arg5: memref<8x8x1xf32, #tpu.memory_space<vmem>>, %arg6: memref<64xf32, #tpu.memory_space<smem>>, %arg7: memref<1x8x8x128xf32, #tpu.memory_space<vmem>>) attributes {dimension_semantics = [#tpu.dimension_semantics<parallel>], iteration_bounds = array<i64: 1>, scalar_prefetch = 0 : i64, scratch_operands = 0 : i64, tpu.core_type = #tpu.core_type<tc>, window_params = [{transform_indices = @transform_0, window_bounds = array<i64: 1, 16, 4, 8, 128>}, {transform_indices = @transform_1, window_bounds = array<i64: 16>}, {transform_indices = @transform_2, window_bounds = array<i64: 64>}, {transform_indices = @transform_3, window_bounds = array<i64: 4>}, {pipeline_mode = #tpu.pipeline_mode<synchronous>, transform_indices = @transform_4, window_bounds = array<i64: 8, 8, 1>}, {transform_indices = @transform_5, window_bounds = array<i64: 64>}, {transform_indices = @transform_6, window_bounds = array<i64: 1, 8, 8, 128>}]} {
    %c0_i32 = arith.constant 0 : i32
    %c0 = arith.constant 0 : index
    %0 = memref.load %arg4[%c0] : memref<4xf32, #tpu.memory_space<smem>>
    %c1 = arith.constant 1 : index
    %1 = memref.load %arg4[%c1] : memref<4xf32, #tpu.memory_space<smem>>
    %c2 = arith.constant 2 : index
    %2 = memref.load %arg4[%c2] : memref<4xf32, #tpu.memory_space<smem>>
    %c3 = arith.constant 3 : index
    %3 = memref.load %arg4[%c3] : memref<4xf32, #tpu.memory_space<smem>>
    %4 = arith.index_cast %c0_i32 : i32 to index
    %c0_0 = arith.constant 0 : index
    %c0_1 = arith.constant 0 : index
    %c0_2 = arith.constant 0 : index
    %c0_3 = arith.constant 0 : index
    %5 = vector.load %arg1[%4, %c0_0, %c0_1, %c0_2, %c0_3] : memref<1x16x4x8x128xf32, #tpu.memory_space<vmem>>, vector<1x1x4x8x128xf32>
    %6 = vector.shape_cast %5 : vector<1x1x4x8x128xf32> to vector<4x8x128xf32>
    %c0_4 = arith.constant 0 : index
    %7 = memref.load %arg2[%c0_4] : memref<16xf32, #tpu.memory_space<smem>>
    %8 = vector.broadcast %7 : f32 to vector<4x8x128xf32>
    %9 = arith.mulf %6, %8 : vector<4x8x128xf32>
    %10 = vector.extract_strided_slice %6 {offsets = [0, 0, 0], sizes = [1, 8, 128], strides = [1, 1, 1]} : vector<4x8x128xf32> to vector<1x8x128xf32>
    %11 = vector.shape_cast %10 : vector<1x8x128xf32> to vector<8x128xf32>
    %12 = vector.broadcast %0 : f32 to vector<8x128xf32>
    %13 = arith.mulf %11, %12 : vector<8x128xf32>
    %14 = vector.extract_strided_slice %6 {offsets = [1, 0, 0], sizes = [1, 8, 128], strides = [1, 1, 1]} : vector<4x8x128xf32> to vector<1x8x128xf32>
    %15 = vector.shape_cast %14 : vector<1x8x128xf32> to vector<8x128xf32>
    %16 = vector.broadcast %1 : f32 to vector<8x128xf32>
    %17 = arith.mulf %15, %16 : vector<8x128xf32>
    %18 = arith.addf %13, %17 : vector<8x128xf32>
    %19 = vector.extract_strided_slice %6 {offsets = [2, 0, 0], sizes = [1, 8, 128], strides = [1, 1, 1]} : vector<4x8x128xf32> to vector<1x8x128xf32>
    %20 = vector.shape_cast %19 : vector<1x8x128xf32> to vector<8x128xf32>
    %21 = vector.broadcast %2 : f32 to vector<8x128xf32>
    %22 = arith.mulf %20, %21 : vector<8x128xf32>
    %23 = arith.addf %18, %22 : vector<8x128xf32>
    %24 = vector.extract_strided_slice %6 {offsets = [3, 0, 0], sizes = [1, 8, 128], strides = [1, 1, 1]} : vector<4x8x128xf32> to vector<1x8x128xf32>
    %25 = vector.shape_cast %24 : vector<1x8x128xf32> to vector<8x128xf32>
    %26 = vector.broadcast %3 : f32 to vector<8x128xf32>
    %27 = arith.mulf %25, %26 : vector<8x128xf32>
    %28 = arith.addf %23, %27 : vector<8x128xf32>
    %29 = arith.index_cast %c0_i32 : i32 to index
    %c1_5 = arith.constant 1 : index
    %c0_6 = arith.constant 0 : index
    %c0_7 = arith.constant 0 : index
    %c0_8 = arith.constant 0 : index
    %30 = vector.load %arg1[%29, %c1_5, %c0_6, %c0_7, %c0_8] : memref<1x16x4x8x128xf32, #tpu.memory_space<vmem>>, vector<1x1x4x8x128xf32>
    %31 = vector.shape_cast %30 : vector<1x1x4x8x128xf32> to vector<4x8x128xf32>
    %c1_9 = arith.constant 1 : index
    %32 = memref.load %arg2[%c1_9] : memref<16xf32, #tpu.memory_space<smem>>
    %33 = vector.broadcast %32 : f32 to vector<4x8x128xf32>
    %34 = arith.mulf %31, %33 : vector<4x8x128xf32>
    %35 = arith.addf %9, %34 : vector<4x8x128xf32>
    %36 = vector.extract_strided_slice %31 {offsets = [0, 0, 0], sizes = [1, 8, 128], strides = [1, 1, 1]} : vector<4x8x128xf32> to vector<1x8x128xf32>
    %37 = vector.shape_cast %36 : vector<1x8x128xf32> to vector<8x128xf32>
    %38 = vector.broadcast %0 : f32 to vector<8x128xf32>
    %39 = arith.mulf %37, %38 : vector<8x128xf32>
    %40 = vector.extract_strided_slice %31 {offsets = [1, 0, 0], sizes = [1, 8, 128], strides = [1, 1, 1]} : vector<4x8x128xf32> to vector<1x8x128xf32>
    %41 = vector.shape_cast %40 : vector<1x8x128xf32> to vector<8x128xf32>
    %42 = vector.broadcast %1 : f32 to vector<8x128xf32>
    %43 = arith.mulf %41, %42 : vector<8x128xf32>
    %44 = arith.addf %39, %43 : vector<8x128xf32>
    %45 = vector.extract_strided_slice %31 {offsets = [2, 0, 0], sizes = [1, 8, 128], strides = [1, 1, 1]} : vector<4x8x128xf32> to vector<1x8x128xf32>
    %46 = vector.shape_cast %45 : vector<1x8x128xf32> to vector<8x128xf32>
    %47 = vector.broadcast %2 : f32 to vector<8x128xf32>
    %48 = arith.mulf %46, %47 : vector<8x128xf32>
    %49 = arith.addf %44, %48 : vector<8x128xf32>
    %50 = vector.extract_strided_slice %31 {offsets = [3, 0, 0], sizes = [1, 8, 128], strides = [1, 1, 1]} : vector<4x8x128xf32> to vector<1x8x128xf32>
    %51 = vector.shape_cast %50 : vector<1x8x128xf32> to vector<8x128xf32>
    %52 = vector.broadcast %3 : f32 to vector<8x128xf32>
    %53 = arith.mulf %51, %52 : vector<8x128xf32>
    %54 = arith.addf %49, %53 : vector<8x128xf32>
    %55 = arith.index_cast %c0_i32 : i32 to index
    %c2_10 = arith.constant 2 : index
    %c0_11 = arith.constant 0 : index
    %c0_12 = arith.constant 0 : index
    %c0_13 = arith.constant 0 : index
    %56 = vector.load %arg1[%55, %c2_10, %c0_11, %c0_12, %c0_13] : memref<1x16x4x8x128xf32, #tpu.memory_space<vmem>>, vector<1x1x4x8x128xf32>
    %57 = vector.shape_cast %56 : vector<1x1x4x8x128xf32> to vector<4x8x128xf32>
    %c2_14 = arith.constant 2 : index
    %58 = memref.load %arg2[%c2_14] : memref<16xf32, #tpu.memory_space<smem>>
    %59 = vector.broadcast %58 : f32 to vector<4x8x128xf32>
    %60 = arith.mulf %57, %59 : vector<4x8x128xf32>
    %61 = arith.addf %35, %60 : vector<4x8x128xf32>
    %62 = vector.extract_strided_slice %57 {offsets = [0, 0, 0], sizes = [1, 8, 128], strides = [1, 1, 1]} : vector<4x8x128xf32> to vector<1x8x128xf32>
    %63 = vector.shape_cast %62 : vector<1x8x128xf32> to vector<8x128xf32>
    %64 = vector.broadcast %0 : f32 to vector<8x128xf32>
    %65 = arith.mulf %63, %64 : vector<8x128xf32>
    %66 = vector.extract_strided_slice %57 {offsets = [1, 0, 0], sizes = [1, 8, 128], strides = [1, 1, 1]} : vector<4x8x128xf32> to vector<1x8x128xf32>
    %67 = vector.shape_cast %66 : vector<1x8x128xf32> to vector<8x128xf32>
    %68 = vector.broadcast %1 : f32 to vector<8x128xf32>
    %69 = arith.mulf %67, %68 : vector<8x128xf32>
    %70 = arith.addf %65, %69 : vector<8x128xf32>
    %71 = vector.extract_strided_slice %57 {offsets = [2, 0, 0], sizes = [1, 8, 128], strides = [1, 1, 1]} : vector<4x8x128xf32> to vector<1x8x128xf32>
    %72 = vector.shape_cast %71 : vector<1x8x128xf32> to vector<8x128xf32>
    %73 = vector.broadcast %2 : f32 to vector<8x128xf32>
    %74 = arith.mulf %72, %73 : vector<8x128xf32>
    %75 = arith.addf %70, %74 : vector<8x128xf32>
    %76 = vector.extract_strided_slice %57 {offsets = [3, 0, 0], sizes = [1, 8, 128], strides = [1, 1, 1]} : vector<4x8x128xf32> to vector<1x8x128xf32>
    %77 = vector.shape_cast %76 : vector<1x8x128xf32> to vector<8x128xf32>
    %78 = vector.broadcast %3 : f32 to vector<8x128xf32>
    %79 = arith.mulf %77, %78 : vector<8x128xf32>
    %80 = arith.addf %75, %79 : vector<8x128xf32>
    %81 = arith.index_cast %c0_i32 : i32 to index
    %c3_15 = arith.constant 3 : index
    %c0_16 = arith.constant 0 : index
    %c0_17 = arith.constant 0 : index
    %c0_18 = arith.constant 0 : index
    %82 = vector.load %arg1[%81, %c3_15, %c0_16, %c0_17, %c0_18] : memref<1x16x4x8x128xf32, #tpu.memory_space<vmem>>, vector<1x1x4x8x128xf32>
    %83 = vector.shape_cast %82 : vector<1x1x4x8x128xf32> to vector<4x8x128xf32>
    %c3_19 = arith.constant 3 : index
    %84 = memref.load %arg2[%c3_19] : memref<16xf32, #tpu.memory_space<smem>>
    %85 = vector.broadcast %84 : f32 to vector<4x8x128xf32>
    %86 = arith.mulf %83, %85 : vector<4x8x128xf32>
    %87 = arith.addf %61, %86 : vector<4x8x128xf32>
    %88 = vector.extract_strided_slice %83 {offsets = [0, 0, 0], sizes = [1, 8, 128], strides = [1, 1, 1]} : vector<4x8x128xf32> to vector<1x8x128xf32>
    %89 = vector.shape_cast %88 : vector<1x8x128xf32> to vector<8x128xf32>
    %90 = vector.broadcast %0 : f32 to vector<8x128xf32>
    %91 = arith.mulf %89, %90 : vector<8x128xf32>
    %92 = vector.extract_strided_slice %83 {offsets = [1, 0, 0], sizes = [1, 8, 128], strides = [1, 1, 1]} : vector<4x8x128xf32> to vector<1x8x128xf32>
    %93 = vector.shape_cast %92 : vector<1x8x128xf32> to vector<8x128xf32>
    %94 = vector.broadcast %1 : f32 to vector<8x128xf32>
    %95 = arith.mulf %93, %94 : vector<8x128xf32>
    %96 = arith.addf %91, %95 : vector<8x128xf32>
    %97 = vector.extract_strided_slice %83 {offsets = [2, 0, 0], sizes = [1, 8, 128], strides = [1, 1, 1]} : vector<4x8x128xf32> to vector<1x8x128xf32>
    %98 = vector.shape_cast %97 : vector<1x8x128xf32> to vector<8x128xf32>
    %99 = vector.broadcast %2 : f32 to vector<8x128xf32>
    %100 = arith.mulf %98, %99 : vector<8x128xf32>
    %101 = arith.addf %96, %100 : vector<8x128xf32>
    %102 = vector.extract_strided_slice %83 {offsets = [3, 0, 0], sizes = [1, 8, 128], strides = [1, 1, 1]} : vector<4x8x128xf32> to vector<1x8x128xf32>
    %103 = vector.shape_cast %102 : vector<1x8x128xf32> to vector<8x128xf32>
    %104 = vector.broadcast %3 : f32 to vector<8x128xf32>
    %105 = arith.mulf %103, %104 : vector<8x128xf32>
    %106 = arith.addf %101, %105 : vector<8x128xf32>
    %107 = arith.index_cast %c0_i32 : i32 to index
    %c4 = arith.constant 4 : index
    %c0_20 = arith.constant 0 : index
    %c0_21 = arith.constant 0 : index
    %c0_22 = arith.constant 0 : index
    %108 = vector.load %arg1[%107, %c4, %c0_20, %c0_21, %c0_22] : memref<1x16x4x8x128xf32, #tpu.memory_space<vmem>>, vector<1x1x4x8x128xf32>
    %109 = vector.shape_cast %108 : vector<1x1x4x8x128xf32> to vector<4x8x128xf32>
    %c4_23 = arith.constant 4 : index
    %110 = memref.load %arg2[%c4_23] : memref<16xf32, #tpu.memory_space<smem>>
    %111 = vector.broadcast %110 : f32 to vector<4x8x128xf32>
    %112 = arith.mulf %109, %111 : vector<4x8x128xf32>
    %113 = arith.addf %87, %112 : vector<4x8x128xf32>
    %114 = vector.extract_strided_slice %109 {offsets = [0, 0, 0], sizes = [1, 8, 128], strides = [1, 1, 1]} : vector<4x8x128xf32> to vector<1x8x128xf32>
    %115 = vector.shape_cast %114 : vector<1x8x128xf32> to vector<8x128xf32>
    %116 = vector.broadcast %0 : f32 to vector<8x128xf32>
    %117 = arith.mulf %115, %116 : vector<8x128xf32>
    %118 = vector.extract_strided_slice %109 {offsets = [1, 0, 0], sizes = [1, 8, 128], strides = [1, 1, 1]} : vector<4x8x128xf32> to vector<1x8x128xf32>
    %119 = vector.shape_cast %118 : vector<1x8x128xf32> to vector<8x128xf32>
    %120 = vector.broadcast %1 : f32 to vector<8x128xf32>
    %121 = arith.mulf %119, %120 : vector<8x128xf32>
    %122 = arith.addf %117, %121 : vector<8x128xf32>
    %123 = vector.extract_strided_slice %109 {offsets = [2, 0, 0], sizes = [1, 8, 128], strides = [1, 1, 1]} : vector<4x8x128xf32> to vector<1x8x128xf32>
    %124 = vector.shape_cast %123 : vector<1x8x128xf32> to vector<8x128xf32>
    %125 = vector.broadcast %2 : f32 to vector<8x128xf32>
    %126 = arith.mulf %124, %125 : vector<8x128xf32>
    %127 = arith.addf %122, %126 : vector<8x128xf32>
    %128 = vector.extract_strided_slice %109 {offsets = [3, 0, 0], sizes = [1, 8, 128], strides = [1, 1, 1]} : vector<4x8x128xf32> to vector<1x8x128xf32>
    %129 = vector.shape_cast %128 : vector<1x8x128xf32> to vector<8x128xf32>
    %130 = vector.broadcast %3 : f32 to vector<8x128xf32>
    %131 = arith.mulf %129, %130 : vector<8x128xf32>
    %132 = arith.addf %127, %131 : vector<8x128xf32>
    %133 = arith.index_cast %c0_i32 : i32 to index
    %c5 = arith.constant 5 : index
    %c0_24 = arith.constant 0 : index
    %c0_25 = arith.constant 0 : index
    %c0_26 = arith.constant 0 : index
    %134 = vector.load %arg1[%133, %c5, %c0_24, %c0_25, %c0_26] : memref<1x16x4x8x128xf32, #tpu.memory_space<vmem>>, vector<1x1x4x8x128xf32>
    %135 = vector.shape_cast %134 : vector<1x1x4x8x128xf32> to vector<4x8x128xf32>
    %c5_27 = arith.constant 5 : index
    %136 = memref.load %arg2[%c5_27] : memref<16xf32, #tpu.memory_space<smem>>
    %137 = vector.broadcast %136 : f32 to vector<4x8x128xf32>
    %138 = arith.mulf %135, %137 : vector<4x8x128xf32>
    %139 = arith.addf %113, %138 : vector<4x8x128xf32>
    %140 = vector.extract_strided_slice %135 {offsets = [0, 0, 0], sizes = [1, 8, 128], strides = [1, 1, 1]} : vector<4x8x128xf32> to vector<1x8x128xf32>
    %141 = vector.shape_cast %140 : vector<1x8x128xf32> to vector<8x128xf32>
    %142 = vector.broadcast %0 : f32 to vector<8x128xf32>
    %143 = arith.mulf %141, %142 : vector<8x128xf32>
    %144 = vector.extract_strided_slice %135 {offsets = [1, 0, 0], sizes = [1, 8, 128], strides = [1, 1, 1]} : vector<4x8x128xf32> to vector<1x8x128xf32>
    %145 = vector.shape_cast %144 : vector<1x8x128xf32> to vector<8x128xf32>
    %146 = vector.broadcast %1 : f32 to vector<8x128xf32>
    %147 = arith.mulf %145, %146 : vector<8x128xf32>
    %148 = arith.addf %143, %147 : vector<8x128xf32>
    %149 = vector.extract_strided_slice %135 {offsets = [2, 0, 0], sizes = [1, 8, 128], strides = [1, 1, 1]} : vector<4x8x128xf32> to vector<1x8x128xf32>
    %150 = vector.shape_cast %149 : vector<1x8x128xf32> to vector<8x128xf32>
    %151 = vector.broadcast %2 : f32 to vector<8x128xf32>
    %152 = arith.mulf %150, %151 : vector<8x128xf32>
    %153 = arith.addf %148, %152 : vector<8x128xf32>
    %154 = vector.extract_strided_slice %135 {offsets = [3, 0, 0], sizes = [1, 8, 128], strides = [1, 1, 1]} : vector<4x8x128xf32> to vector<1x8x128xf32>
    %155 = vector.shape_cast %154 : vector<1x8x128xf32> to vector<8x128xf32>
    %156 = vector.broadcast %3 : f32 to vector<8x128xf32>
    %157 = arith.mulf %155, %156 : vector<8x128xf32>
    %158 = arith.addf %153, %157 : vector<8x128xf32>
    %159 = arith.index_cast %c0_i32 : i32 to index
    %c6 = arith.constant 6 : index
    %c0_28 = arith.constant 0 : index
    %c0_29 = arith.constant 0 : index
    %c0_30 = arith.constant 0 : index
    %160 = vector.load %arg1[%159, %c6, %c0_28, %c0_29, %c0_30] : memref<1x16x4x8x128xf32, #tpu.memory_space<vmem>>, vector<1x1x4x8x128xf32>
    %161 = vector.shape_cast %160 : vector<1x1x4x8x128xf32> to vector<4x8x128xf32>
    %c6_31 = arith.constant 6 : index
    %162 = memref.load %arg2[%c6_31] : memref<16xf32, #tpu.memory_space<smem>>
    %163 = vector.broadcast %162 : f32 to vector<4x8x128xf32>
    %164 = arith.mulf %161, %163 : vector<4x8x128xf32>
    %165 = arith.addf %139, %164 : vector<4x8x128xf32>
    %166 = vector.extract_strided_slice %161 {offsets = [0, 0, 0], sizes = [1, 8, 128], strides = [1, 1, 1]} : vector<4x8x128xf32> to vector<1x8x128xf32>
    %167 = vector.shape_cast %166 : vector<1x8x128xf32> to vector<8x128xf32>
    %168 = vector.broadcast %0 : f32 to vector<8x128xf32>
    %169 = arith.mulf %167, %168 : vector<8x128xf32>
    %170 = vector.extract_strided_slice %161 {offsets = [1, 0, 0], sizes = [1, 8, 128], strides = [1, 1, 1]} : vector<4x8x128xf32> to vector<1x8x128xf32>
    %171 = vector.shape_cast %170 : vector<1x8x128xf32> to vector<8x128xf32>
    %172 = vector.broadcast %1 : f32 to vector<8x128xf32>
    %173 = arith.mulf %171, %172 : vector<8x128xf32>
    %174 = arith.addf %169, %173 : vector<8x128xf32>
    %175 = vector.extract_strided_slice %161 {offsets = [2, 0, 0], sizes = [1, 8, 128], strides = [1, 1, 1]} : vector<4x8x128xf32> to vector<1x8x128xf32>
    %176 = vector.shape_cast %175 : vector<1x8x128xf32> to vector<8x128xf32>
    %177 = vector.broadcast %2 : f32 to vector<8x128xf32>
    %178 = arith.mulf %176, %177 : vector<8x128xf32>
    %179 = arith.addf %174, %178 : vector<8x128xf32>
    %180 = vector.extract_strided_slice %161 {offsets = [3, 0, 0], sizes = [1, 8, 128], strides = [1, 1, 1]} : vector<4x8x128xf32> to vector<1x8x128xf32>
    %181 = vector.shape_cast %180 : vector<1x8x128xf32> to vector<8x128xf32>
    %182 = vector.broadcast %3 : f32 to vector<8x128xf32>
    %183 = arith.mulf %181, %182 : vector<8x128xf32>
    %184 = arith.addf %179, %183 : vector<8x128xf32>
    %185 = arith.index_cast %c0_i32 : i32 to index
    %c7 = arith.constant 7 : index
    %c0_32 = arith.constant 0 : index
    %c0_33 = arith.constant 0 : index
    %c0_34 = arith.constant 0 : index
    %186 = vector.load %arg1[%185, %c7, %c0_32, %c0_33, %c0_34] : memref<1x16x4x8x128xf32, #tpu.memory_space<vmem>>, vector<1x1x4x8x128xf32>
    %187 = vector.shape_cast %186 : vector<1x1x4x8x128xf32> to vector<4x8x128xf32>
    %c7_35 = arith.constant 7 : index
    %188 = memref.load %arg2[%c7_35] : memref<16xf32, #tpu.memory_space<smem>>
    %189 = vector.broadcast %188 : f32 to vector<4x8x128xf32>
    %190 = arith.mulf %187, %189 : vector<4x8x128xf32>
    %191 = arith.addf %165, %190 : vector<4x8x128xf32>
    %192 = vector.extract_strided_slice %187 {offsets = [0, 0, 0], sizes = [1, 8, 128], strides = [1, 1, 1]} : vector<4x8x128xf32> to vector<1x8x128xf32>
    %193 = vector.shape_cast %192 : vector<1x8x128xf32> to vector<8x128xf32>
    %194 = vector.broadcast %0 : f32 to vector<8x128xf32>
    %195 = arith.mulf %193, %194 : vector<8x128xf32>
    %196 = vector.extract_strided_slice %187 {offsets = [1, 0, 0], sizes = [1, 8, 128], strides = [1, 1, 1]} : vector<4x8x128xf32> to vector<1x8x128xf32>
    %197 = vector.shape_cast %196 : vector<1x8x128xf32> to vector<8x128xf32>
    %198 = vector.broadcast %1 : f32 to vector<8x128xf32>
    %199 = arith.mulf %197, %198 : vector<8x128xf32>
    %200 = arith.addf %195, %199 : vector<8x128xf32>
    %201 = vector.extract_strided_slice %187 {offsets = [2, 0, 0], sizes = [1, 8, 128], strides = [1, 1, 1]} : vector<4x8x128xf32> to vector<1x8x128xf32>
    %202 = vector.shape_cast %201 : vector<1x8x128xf32> to vector<8x128xf32>
    %203 = vector.broadcast %2 : f32 to vector<8x128xf32>
    %204 = arith.mulf %202, %203 : vector<8x128xf32>
    %205 = arith.addf %200, %204 : vector<8x128xf32>
    %206 = vector.extract_strided_slice %187 {offsets = [3, 0, 0], sizes = [1, 8, 128], strides = [1, 1, 1]} : vector<4x8x128xf32> to vector<1x8x128xf32>
    %207 = vector.shape_cast %206 : vector<1x8x128xf32> to vector<8x128xf32>
    %208 = vector.broadcast %3 : f32 to vector<8x128xf32>
    %209 = arith.mulf %207, %208 : vector<8x128xf32>
    %210 = arith.addf %205, %209 : vector<8x128xf32>
    %211 = arith.index_cast %c0_i32 : i32 to index
    %c8 = arith.constant 8 : index
    %c0_36 = arith.constant 0 : index
    %c0_37 = arith.constant 0 : index
    %c0_38 = arith.constant 0 : index
    %212 = vector.load %arg1[%211, %c8, %c0_36, %c0_37, %c0_38] : memref<1x16x4x8x128xf32, #tpu.memory_space<vmem>>, vector<1x1x4x8x128xf32>
    %213 = vector.shape_cast %212 : vector<1x1x4x8x128xf32> to vector<4x8x128xf32>
    %c8_39 = arith.constant 8 : index
    %214 = memref.load %arg2[%c8_39] : memref<16xf32, #tpu.memory_space<smem>>
    %215 = vector.broadcast %214 : f32 to vector<4x8x128xf32>
    %216 = arith.mulf %213, %215 : vector<4x8x128xf32>
    %217 = arith.addf %191, %216 : vector<4x8x128xf32>
    %218 = vector.extract_strided_slice %213 {offsets = [0, 0, 0], sizes = [1, 8, 128], strides = [1, 1, 1]} : vector<4x8x128xf32> to vector<1x8x128xf32>
    %219 = vector.shape_cast %218 : vector<1x8x128xf32> to vector<8x128xf32>
    %220 = vector.broadcast %0 : f32 to vector<8x128xf32>
    %221 = arith.mulf %219, %220 : vector<8x128xf32>
    %222 = vector.extract_strided_slice %213 {offsets = [1, 0, 0], sizes = [1, 8, 128], strides = [1, 1, 1]} : vector<4x8x128xf32> to vector<1x8x128xf32>
    %223 = vector.shape_cast %222 : vector<1x8x128xf32> to vector<8x128xf32>
    %224 = vector.broadcast %1 : f32 to vector<8x128xf32>
    %225 = arith.mulf %223, %224 : vector<8x128xf32>
    %226 = arith.addf %221, %225 : vector<8x128xf32>
    %227 = vector.extract_strided_slice %213 {offsets = [2, 0, 0], sizes = [1, 8, 128], strides = [1, 1, 1]} : vector<4x8x128xf32> to vector<1x8x128xf32>
    %228 = vector.shape_cast %227 : vector<1x8x128xf32> to vector<8x128xf32>
    %229 = vector.broadcast %2 : f32 to vector<8x128xf32>
    %230 = arith.mulf %228, %229 : vector<8x128xf32>
    %231 = arith.addf %226, %230 : vector<8x128xf32>
    %232 = vector.extract_strided_slice %213 {offsets = [3, 0, 0], sizes = [1, 8, 128], strides = [1, 1, 1]} : vector<4x8x128xf32> to vector<1x8x128xf32>
    %233 = vector.shape_cast %232 : vector<1x8x128xf32> to vector<8x128xf32>
    %234 = vector.broadcast %3 : f32 to vector<8x128xf32>
    %235 = arith.mulf %233, %234 : vector<8x128xf32>
    %236 = arith.addf %231, %235 : vector<8x128xf32>
    %237 = arith.index_cast %c0_i32 : i32 to index
    %c9 = arith.constant 9 : index
    %c0_40 = arith.constant 0 : index
    %c0_41 = arith.constant 0 : index
    %c0_42 = arith.constant 0 : index
    %238 = vector.load %arg1[%237, %c9, %c0_40, %c0_41, %c0_42] : memref<1x16x4x8x128xf32, #tpu.memory_space<vmem>>, vector<1x1x4x8x128xf32>
    %239 = vector.shape_cast %238 : vector<1x1x4x8x128xf32> to vector<4x8x128xf32>
    %c9_43 = arith.constant 9 : index
    %240 = memref.load %arg2[%c9_43] : memref<16xf32, #tpu.memory_space<smem>>
    %241 = vector.broadcast %240 : f32 to vector<4x8x128xf32>
    %242 = arith.mulf %239, %241 : vector<4x8x128xf32>
    %243 = arith.addf %217, %242 : vector<4x8x128xf32>
    %244 = vector.extract_strided_slice %239 {offsets = [0, 0, 0], sizes = [1, 8, 128], strides = [1, 1, 1]} : vector<4x8x128xf32> to vector<1x8x128xf32>
    %245 = vector.shape_cast %244 : vector<1x8x128xf32> to vector<8x128xf32>
    %246 = vector.broadcast %0 : f32 to vector<8x128xf32>
    %247 = arith.mulf %245, %246 : vector<8x128xf32>
    %248 = vector.extract_strided_slice %239 {offsets = [1, 0, 0], sizes = [1, 8, 128], strides = [1, 1, 1]} : vector<4x8x128xf32> to vector<1x8x128xf32>
    %249 = vector.shape_cast %248 : vector<1x8x128xf32> to vector<8x128xf32>
    %250 = vector.broadcast %1 : f32 to vector<8x128xf32>
    %251 = arith.mulf %249, %250 : vector<8x128xf32>
    %252 = arith.addf %247, %251 : vector<8x128xf32>
    %253 = vector.extract_strided_slice %239 {offsets = [2, 0, 0], sizes = [1, 8, 128], strides = [1, 1, 1]} : vector<4x8x128xf32> to vector<1x8x128xf32>
    %254 = vector.shape_cast %253 : vector<1x8x128xf32> to vector<8x128xf32>
    %255 = vector.broadcast %2 : f32 to vector<8x128xf32>
    %256 = arith.mulf %254, %255 : vector<8x128xf32>
    %257 = arith.addf %252, %256 : vector<8x128xf32>
    %258 = vector.extract_strided_slice %239 {offsets = [3, 0, 0], sizes = [1, 8, 128], strides = [1, 1, 1]} : vector<4x8x128xf32> to vector<1x8x128xf32>
    %259 = vector.shape_cast %258 : vector<1x8x128xf32> to vector<8x128xf32>
    %260 = vector.broadcast %3 : f32 to vector<8x128xf32>
    %261 = arith.mulf %259, %260 : vector<8x128xf32>
    %262 = arith.addf %257, %261 : vector<8x128xf32>
    %263 = arith.index_cast %c0_i32 : i32 to index
    %c10 = arith.constant 10 : index
    %c0_44 = arith.constant 0 : index
    %c0_45 = arith.constant 0 : index
    %c0_46 = arith.constant 0 : index
    %264 = vector.load %arg1[%263, %c10, %c0_44, %c0_45, %c0_46] : memref<1x16x4x8x128xf32, #tpu.memory_space<vmem>>, vector<1x1x4x8x128xf32>
    %265 = vector.shape_cast %264 : vector<1x1x4x8x128xf32> to vector<4x8x128xf32>
    %c10_47 = arith.constant 10 : index
    %266 = memref.load %arg2[%c10_47] : memref<16xf32, #tpu.memory_space<smem>>
    %267 = vector.broadcast %266 : f32 to vector<4x8x128xf32>
    %268 = arith.mulf %265, %267 : vector<4x8x128xf32>
    %269 = arith.addf %243, %268 : vector<4x8x128xf32>
    %270 = vector.extract_strided_slice %265 {offsets = [0, 0, 0], sizes = [1, 8, 128], strides = [1, 1, 1]} : vector<4x8x128xf32> to vector<1x8x128xf32>
    %271 = vector.shape_cast %270 : vector<1x8x128xf32> to vector<8x128xf32>
    %272 = vector.broadcast %0 : f32 to vector<8x128xf32>
    %273 = arith.mulf %271, %272 : vector<8x128xf32>
    %274 = vector.extract_strided_slice %265 {offsets = [1, 0, 0], sizes = [1, 8, 128], strides = [1, 1, 1]} : vector<4x8x128xf32> to vector<1x8x128xf32>
    %275 = vector.shape_cast %274 : vector<1x8x128xf32> to vector<8x128xf32>
    %276 = vector.broadcast %1 : f32 to vector<8x128xf32>
    %277 = arith.mulf %275, %276 : vector<8x128xf32>
    %278 = arith.addf %273, %277 : vector<8x128xf32>
    %279 = vector.extract_strided_slice %265 {offsets = [2, 0, 0], sizes = [1, 8, 128], strides = [1, 1, 1]} : vector<4x8x128xf32> to vector<1x8x128xf32>
    %280 = vector.shape_cast %279 : vector<1x8x128xf32> to vector<8x128xf32>
    %281 = vector.broadcast %2 : f32 to vector<8x128xf32>
    %282 = arith.mulf %280, %281 : vector<8x128xf32>
    %283 = arith.addf %278, %282 : vector<8x128xf32>
    %284 = vector.extract_strided_slice %265 {offsets = [3, 0, 0], sizes = [1, 8, 128], strides = [1, 1, 1]} : vector<4x8x128xf32> to vector<1x8x128xf32>
    %285 = vector.shape_cast %284 : vector<1x8x128xf32> to vector<8x128xf32>
    %286 = vector.broadcast %3 : f32 to vector<8x128xf32>
    %287 = arith.mulf %285, %286 : vector<8x128xf32>
    %288 = arith.addf %283, %287 : vector<8x128xf32>
    %289 = arith.index_cast %c0_i32 : i32 to index
    %c11 = arith.constant 11 : index
    %c0_48 = arith.constant 0 : index
    %c0_49 = arith.constant 0 : index
    %c0_50 = arith.constant 0 : index
    %290 = vector.load %arg1[%289, %c11, %c0_48, %c0_49, %c0_50] : memref<1x16x4x8x128xf32, #tpu.memory_space<vmem>>, vector<1x1x4x8x128xf32>
    %291 = vector.shape_cast %290 : vector<1x1x4x8x128xf32> to vector<4x8x128xf32>
    %c11_51 = arith.constant 11 : index
    %292 = memref.load %arg2[%c11_51] : memref<16xf32, #tpu.memory_space<smem>>
    %293 = vector.broadcast %292 : f32 to vector<4x8x128xf32>
    %294 = arith.mulf %291, %293 : vector<4x8x128xf32>
    %295 = arith.addf %269, %294 : vector<4x8x128xf32>
    %296 = vector.extract_strided_slice %291 {offsets = [0, 0, 0], sizes = [1, 8, 128], strides = [1, 1, 1]} : vector<4x8x128xf32> to vector<1x8x128xf32>
    %297 = vector.shape_cast %296 : vector<1x8x128xf32> to vector<8x128xf32>
    %298 = vector.broadcast %0 : f32 to vector<8x128xf32>
    %299 = arith.mulf %297, %298 : vector<8x128xf32>
    %300 = vector.extract_strided_slice %291 {offsets = [1, 0, 0], sizes = [1, 8, 128], strides = [1, 1, 1]} : vector<4x8x128xf32> to vector<1x8x128xf32>
    %301 = vector.shape_cast %300 : vector<1x8x128xf32> to vector<8x128xf32>
    %302 = vector.broadcast %1 : f32 to vector<8x128xf32>
    %303 = arith.mulf %301, %302 : vector<8x128xf32>
    %304 = arith.addf %299, %303 : vector<8x128xf32>
    %305 = vector.extract_strided_slice %291 {offsets = [2, 0, 0], sizes = [1, 8, 128], strides = [1, 1, 1]} : vector<4x8x128xf32> to vector<1x8x128xf32>
    %306 = vector.shape_cast %305 : vector<1x8x128xf32> to vector<8x128xf32>
    %307 = vector.broadcast %2 : f32 to vector<8x128xf32>
    %308 = arith.mulf %306, %307 : vector<8x128xf32>
    %309 = arith.addf %304, %308 : vector<8x128xf32>
    %310 = vector.extract_strided_slice %291 {offsets = [3, 0, 0], sizes = [1, 8, 128], strides = [1, 1, 1]} : vector<4x8x128xf32> to vector<1x8x128xf32>
    %311 = vector.shape_cast %310 : vector<1x8x128xf32> to vector<8x128xf32>
    %312 = vector.broadcast %3 : f32 to vector<8x128xf32>
    %313 = arith.mulf %311, %312 : vector<8x128xf32>
    %314 = arith.addf %309, %313 : vector<8x128xf32>
    %315 = arith.index_cast %c0_i32 : i32 to index
    %c12 = arith.constant 12 : index
    %c0_52 = arith.constant 0 : index
    %c0_53 = arith.constant 0 : index
    %c0_54 = arith.constant 0 : index
    %316 = vector.load %arg1[%315, %c12, %c0_52, %c0_53, %c0_54] : memref<1x16x4x8x128xf32, #tpu.memory_space<vmem>>, vector<1x1x4x8x128xf32>
    %317 = vector.shape_cast %316 : vector<1x1x4x8x128xf32> to vector<4x8x128xf32>
    %c12_55 = arith.constant 12 : index
    %318 = memref.load %arg2[%c12_55] : memref<16xf32, #tpu.memory_space<smem>>
    %319 = vector.broadcast %318 : f32 to vector<4x8x128xf32>
    %320 = arith.mulf %317, %319 : vector<4x8x128xf32>
    %321 = arith.addf %295, %320 : vector<4x8x128xf32>
    %322 = vector.extract_strided_slice %317 {offsets = [0, 0, 0], sizes = [1, 8, 128], strides = [1, 1, 1]} : vector<4x8x128xf32> to vector<1x8x128xf32>
    %323 = vector.shape_cast %322 : vector<1x8x128xf32> to vector<8x128xf32>
    %324 = vector.broadcast %0 : f32 to vector<8x128xf32>
    %325 = arith.mulf %323, %324 : vector<8x128xf32>
    %326 = vector.extract_strided_slice %317 {offsets = [1, 0, 0], sizes = [1, 8, 128], strides = [1, 1, 1]} : vector<4x8x128xf32> to vector<1x8x128xf32>
    %327 = vector.shape_cast %326 : vector<1x8x128xf32> to vector<8x128xf32>
    %328 = vector.broadcast %1 : f32 to vector<8x128xf32>
    %329 = arith.mulf %327, %328 : vector<8x128xf32>
    %330 = arith.addf %325, %329 : vector<8x128xf32>
    %331 = vector.extract_strided_slice %317 {offsets = [2, 0, 0], sizes = [1, 8, 128], strides = [1, 1, 1]} : vector<4x8x128xf32> to vector<1x8x128xf32>
    %332 = vector.shape_cast %331 : vector<1x8x128xf32> to vector<8x128xf32>
    %333 = vector.broadcast %2 : f32 to vector<8x128xf32>
    %334 = arith.mulf %332, %333 : vector<8x128xf32>
    %335 = arith.addf %330, %334 : vector<8x128xf32>
    %336 = vector.extract_strided_slice %317 {offsets = [3, 0, 0], sizes = [1, 8, 128], strides = [1, 1, 1]} : vector<4x8x128xf32> to vector<1x8x128xf32>
    %337 = vector.shape_cast %336 : vector<1x8x128xf32> to vector<8x128xf32>
    %338 = vector.broadcast %3 : f32 to vector<8x128xf32>
    %339 = arith.mulf %337, %338 : vector<8x128xf32>
    %340 = arith.addf %335, %339 : vector<8x128xf32>
    %341 = arith.index_cast %c0_i32 : i32 to index
    %c13 = arith.constant 13 : index
    %c0_56 = arith.constant 0 : index
    %c0_57 = arith.constant 0 : index
    %c0_58 = arith.constant 0 : index
    %342 = vector.load %arg1[%341, %c13, %c0_56, %c0_57, %c0_58] : memref<1x16x4x8x128xf32, #tpu.memory_space<vmem>>, vector<1x1x4x8x128xf32>
    %343 = vector.shape_cast %342 : vector<1x1x4x8x128xf32> to vector<4x8x128xf32>
    %c13_59 = arith.constant 13 : index
    %344 = memref.load %arg2[%c13_59] : memref<16xf32, #tpu.memory_space<smem>>
    %345 = vector.broadcast %344 : f32 to vector<4x8x128xf32>
    %346 = arith.mulf %343, %345 : vector<4x8x128xf32>
    %347 = arith.addf %321, %346 : vector<4x8x128xf32>
    %348 = vector.extract_strided_slice %343 {offsets = [0, 0, 0], sizes = [1, 8, 128], strides = [1, 1, 1]} : vector<4x8x128xf32> to vector<1x8x128xf32>
    %349 = vector.shape_cast %348 : vector<1x8x128xf32> to vector<8x128xf32>
    %350 = vector.broadcast %0 : f32 to vector<8x128xf32>
    %351 = arith.mulf %349, %350 : vector<8x128xf32>
    %352 = vector.extract_strided_slice %343 {offsets = [1, 0, 0], sizes = [1, 8, 128], strides = [1, 1, 1]} : vector<4x8x128xf32> to vector<1x8x128xf32>
    %353 = vector.shape_cast %352 : vector<1x8x128xf32> to vector<8x128xf32>
    %354 = vector.broadcast %1 : f32 to vector<8x128xf32>
    %355 = arith.mulf %353, %354 : vector<8x128xf32>
    %356 = arith.addf %351, %355 : vector<8x128xf32>
    %357 = vector.extract_strided_slice %343 {offsets = [2, 0, 0], sizes = [1, 8, 128], strides = [1, 1, 1]} : vector<4x8x128xf32> to vector<1x8x128xf32>
    %358 = vector.shape_cast %357 : vector<1x8x128xf32> to vector<8x128xf32>
    %359 = vector.broadcast %2 : f32 to vector<8x128xf32>
    %360 = arith.mulf %358, %359 : vector<8x128xf32>
    %361 = arith.addf %356, %360 : vector<8x128xf32>
    %362 = vector.extract_strided_slice %343 {offsets = [3, 0, 0], sizes = [1, 8, 128], strides = [1, 1, 1]} : vector<4x8x128xf32> to vector<1x8x128xf32>
    %363 = vector.shape_cast %362 : vector<1x8x128xf32> to vector<8x128xf32>
    %364 = vector.broadcast %3 : f32 to vector<8x128xf32>
    %365 = arith.mulf %363, %364 : vector<8x128xf32>
    %366 = arith.addf %361, %365 : vector<8x128xf32>
    %367 = arith.index_cast %c0_i32 : i32 to index
    %c14 = arith.constant 14 : index
    %c0_60 = arith.constant 0 : index
    %c0_61 = arith.constant 0 : index
    %c0_62 = arith.constant 0 : index
    %368 = vector.load %arg1[%367, %c14, %c0_60, %c0_61, %c0_62] : memref<1x16x4x8x128xf32, #tpu.memory_space<vmem>>, vector<1x1x4x8x128xf32>
    %369 = vector.shape_cast %368 : vector<1x1x4x8x128xf32> to vector<4x8x128xf32>
    %c14_63 = arith.constant 14 : index
    %370 = memref.load %arg2[%c14_63] : memref<16xf32, #tpu.memory_space<smem>>
    %371 = vector.broadcast %370 : f32 to vector<4x8x128xf32>
    %372 = arith.mulf %369, %371 : vector<4x8x128xf32>
    %373 = arith.addf %347, %372 : vector<4x8x128xf32>
    %374 = vector.extract_strided_slice %369 {offsets = [0, 0, 0], sizes = [1, 8, 128], strides = [1, 1, 1]} : vector<4x8x128xf32> to vector<1x8x128xf32>
    %375 = vector.shape_cast %374 : vector<1x8x128xf32> to vector<8x128xf32>
    %376 = vector.broadcast %0 : f32 to vector<8x128xf32>
    %377 = arith.mulf %375, %376 : vector<8x128xf32>
    %378 = vector.extract_strided_slice %369 {offsets = [1, 0, 0], sizes = [1, 8, 128], strides = [1, 1, 1]} : vector<4x8x128xf32> to vector<1x8x128xf32>
    %379 = vector.shape_cast %378 : vector<1x8x128xf32> to vector<8x128xf32>
    %380 = vector.broadcast %1 : f32 to vector<8x128xf32>
    %381 = arith.mulf %379, %380 : vector<8x128xf32>
    %382 = arith.addf %377, %381 : vector<8x128xf32>
    %383 = vector.extract_strided_slice %369 {offsets = [2, 0, 0], sizes = [1, 8, 128], strides = [1, 1, 1]} : vector<4x8x128xf32> to vector<1x8x128xf32>
    %384 = vector.shape_cast %383 : vector<1x8x128xf32> to vector<8x128xf32>
    %385 = vector.broadcast %2 : f32 to vector<8x128xf32>
    %386 = arith.mulf %384, %385 : vector<8x128xf32>
    %387 = arith.addf %382, %386 : vector<8x128xf32>
    %388 = vector.extract_strided_slice %369 {offsets = [3, 0, 0], sizes = [1, 8, 128], strides = [1, 1, 1]} : vector<4x8x128xf32> to vector<1x8x128xf32>
    %389 = vector.shape_cast %388 : vector<1x8x128xf32> to vector<8x128xf32>
    %390 = vector.broadcast %3 : f32 to vector<8x128xf32>
    %391 = arith.mulf %389, %390 : vector<8x128xf32>
    %392 = arith.addf %387, %391 : vector<8x128xf32>
    %393 = arith.index_cast %c0_i32 : i32 to index
    %c15 = arith.constant 15 : index
    %c0_64 = arith.constant 0 : index
    %c0_65 = arith.constant 0 : index
    %c0_66 = arith.constant 0 : index
    %394 = vector.load %arg1[%393, %c15, %c0_64, %c0_65, %c0_66] : memref<1x16x4x8x128xf32, #tpu.memory_space<vmem>>, vector<1x1x4x8x128xf32>
    %395 = vector.shape_cast %394 : vector<1x1x4x8x128xf32> to vector<4x8x128xf32>
    %c15_67 = arith.constant 15 : index
    %396 = memref.load %arg2[%c15_67] : memref<16xf32, #tpu.memory_space<smem>>
    %397 = vector.broadcast %396 : f32 to vector<4x8x128xf32>
    %398 = arith.mulf %395, %397 : vector<4x8x128xf32>
    %399 = arith.addf %373, %398 : vector<4x8x128xf32>
    %400 = vector.extract_strided_slice %395 {offsets = [0, 0, 0], sizes = [1, 8, 128], strides = [1, 1, 1]} : vector<4x8x128xf32> to vector<1x8x128xf32>
    %401 = vector.shape_cast %400 : vector<1x8x128xf32> to vector<8x128xf32>
    %402 = vector.broadcast %0 : f32 to vector<8x128xf32>
    %403 = arith.mulf %401, %402 : vector<8x128xf32>
    %404 = vector.extract_strided_slice %395 {offsets = [1, 0, 0], sizes = [1, 8, 128], strides = [1, 1, 1]} : vector<4x8x128xf32> to vector<1x8x128xf32>
    %405 = vector.shape_cast %404 : vector<1x8x128xf32> to vector<8x128xf32>
    %406 = vector.broadcast %1 : f32 to vector<8x128xf32>
    %407 = arith.mulf %405, %406 : vector<8x128xf32>
    %408 = arith.addf %403, %407 : vector<8x128xf32>
    %409 = vector.extract_strided_slice %395 {offsets = [2, 0, 0], sizes = [1, 8, 128], strides = [1, 1, 1]} : vector<4x8x128xf32> to vector<1x8x128xf32>
    %410 = vector.shape_cast %409 : vector<1x8x128xf32> to vector<8x128xf32>
    %411 = vector.broadcast %2 : f32 to vector<8x128xf32>
    %412 = arith.mulf %410, %411 : vector<8x128xf32>
    %413 = arith.addf %408, %412 : vector<8x128xf32>
    %414 = vector.extract_strided_slice %395 {offsets = [3, 0, 0], sizes = [1, 8, 128], strides = [1, 1, 1]} : vector<4x8x128xf32> to vector<1x8x128xf32>
    %415 = vector.shape_cast %414 : vector<1x8x128xf32> to vector<8x128xf32>
    %416 = vector.broadcast %3 : f32 to vector<8x128xf32>
    %417 = arith.mulf %415, %416 : vector<8x128xf32>
    %418 = arith.addf %413, %417 : vector<8x128xf32>
    %419 = vector.extract_strided_slice %399 {offsets = [0, 0, 0], sizes = [1, 8, 128], strides = [1, 1, 1]} : vector<4x8x128xf32> to vector<1x8x128xf32>
    %420 = vector.shape_cast %419 : vector<1x8x128xf32> to vector<8x128xf32>
    %c0_68 = arith.constant 0 : index
    %421 = memref.load %arg3[%c0_68] : memref<64xf32, #tpu.memory_space<smem>>
    %422 = vector.broadcast %421 : f32 to vector<8x128xf32>
    %423 = arith.mulf %420, %422 : vector<8x128xf32>
    %424 = vector.extract_strided_slice %399 {offsets = [1, 0, 0], sizes = [1, 8, 128], strides = [1, 1, 1]} : vector<4x8x128xf32> to vector<1x8x128xf32>
    %425 = vector.shape_cast %424 : vector<1x8x128xf32> to vector<8x128xf32>
    %c16 = arith.constant 16 : index
    %426 = memref.load %arg3[%c16] : memref<64xf32, #tpu.memory_space<smem>>
    %427 = vector.broadcast %426 : f32 to vector<8x128xf32>
    %428 = arith.mulf %425, %427 : vector<8x128xf32>
    %429 = arith.addf %423, %428 : vector<8x128xf32>
    %430 = vector.extract_strided_slice %399 {offsets = [2, 0, 0], sizes = [1, 8, 128], strides = [1, 1, 1]} : vector<4x8x128xf32> to vector<1x8x128xf32>
    %431 = vector.shape_cast %430 : vector<1x8x128xf32> to vector<8x128xf32>
    %c32 = arith.constant 32 : index
    %432 = memref.load %arg3[%c32] : memref<64xf32, #tpu.memory_space<smem>>
    %433 = vector.broadcast %432 : f32 to vector<8x128xf32>
    %434 = arith.mulf %431, %433 : vector<8x128xf32>
    %435 = arith.addf %429, %434 : vector<8x128xf32>
    %436 = vector.extract_strided_slice %399 {offsets = [3, 0, 0], sizes = [1, 8, 128], strides = [1, 1, 1]} : vector<4x8x128xf32> to vector<1x8x128xf32>
    %437 = vector.shape_cast %436 : vector<1x8x128xf32> to vector<8x128xf32>
    %c48 = arith.constant 48 : index
    %438 = memref.load %arg3[%c48] : memref<64xf32, #tpu.memory_space<smem>>
    %439 = vector.broadcast %438 : f32 to vector<8x128xf32>
    %440 = arith.mulf %437, %439 : vector<8x128xf32>
    %441 = arith.addf %435, %440 : vector<8x128xf32>
    %442 = vector.extract_strided_slice %399 {offsets = [0, 0, 0], sizes = [1, 8, 128], strides = [1, 1, 1]} : vector<4x8x128xf32> to vector<1x8x128xf32>
    %443 = vector.shape_cast %442 : vector<1x8x128xf32> to vector<8x128xf32>
    %c1_69 = arith.constant 1 : index
    %444 = memref.load %arg3[%c1_69] : memref<64xf32, #tpu.memory_space<smem>>
    %445 = vector.broadcast %444 : f32 to vector<8x128xf32>
    %446 = arith.mulf %443, %445 : vector<8x128xf32>
    %447 = vector.extract_strided_slice %399 {offsets = [1, 0, 0], sizes = [1, 8, 128], strides = [1, 1, 1]} : vector<4x8x128xf32> to vector<1x8x128xf32>
    %448 = vector.shape_cast %447 : vector<1x8x128xf32> to vector<8x128xf32>
    %c17 = arith.constant 17 : index
    %449 = memref.load %arg3[%c17] : memref<64xf32, #tpu.memory_space<smem>>
    %450 = vector.broadcast %449 : f32 to vector<8x128xf32>
    %451 = arith.mulf %448, %450 : vector<8x128xf32>
    %452 = arith.addf %446, %451 : vector<8x128xf32>
    %453 = vector.extract_strided_slice %399 {offsets = [2, 0, 0], sizes = [1, 8, 128], strides = [1, 1, 1]} : vector<4x8x128xf32> to vector<1x8x128xf32>
    %454 = vector.shape_cast %453 : vector<1x8x128xf32> to vector<8x128xf32>
    %c33 = arith.constant 33 : index
    %455 = memref.load %arg3[%c33] : memref<64xf32, #tpu.memory_space<smem>>
    %456 = vector.broadcast %455 : f32 to vector<8x128xf32>
    %457 = arith.mulf %454, %456 : vector<8x128xf32>
    %458 = arith.addf %452, %457 : vector<8x128xf32>
    %459 = vector.extract_strided_slice %399 {offsets = [3, 0, 0], sizes = [1, 8, 128], strides = [1, 1, 1]} : vector<4x8x128xf32> to vector<1x8x128xf32>
    %460 = vector.shape_cast %459 : vector<1x8x128xf32> to vector<8x128xf32>
    %c49 = arith.constant 49 : index
    %461 = memref.load %arg3[%c49] : memref<64xf32, #tpu.memory_space<smem>>
    %462 = vector.broadcast %461 : f32 to vector<8x128xf32>
    %463 = arith.mulf %460, %462 : vector<8x128xf32>
    %464 = arith.addf %458, %463 : vector<8x128xf32>
    %465 = vector.extract_strided_slice %399 {offsets = [0, 0, 0], sizes = [1, 8, 128], strides = [1, 1, 1]} : vector<4x8x128xf32> to vector<1x8x128xf32>
    %466 = vector.shape_cast %465 : vector<1x8x128xf32> to vector<8x128xf32>
    %c2_70 = arith.constant 2 : index
    %467 = memref.load %arg3[%c2_70] : memref<64xf32, #tpu.memory_space<smem>>
    %468 = vector.broadcast %467 : f32 to vector<8x128xf32>
    %469 = arith.mulf %466, %468 : vector<8x128xf32>
    %470 = vector.extract_strided_slice %399 {offsets = [1, 0, 0], sizes = [1, 8, 128], strides = [1, 1, 1]} : vector<4x8x128xf32> to vector<1x8x128xf32>
    %471 = vector.shape_cast %470 : vector<1x8x128xf32> to vector<8x128xf32>
    %c18 = arith.constant 18 : index
    %472 = memref.load %arg3[%c18] : memref<64xf32, #tpu.memory_space<smem>>
    %473 = vector.broadcast %472 : f32 to vector<8x128xf32>
    %474 = arith.mulf %471, %473 : vector<8x128xf32>
    %475 = arith.addf %469, %474 : vector<8x128xf32>
    %476 = vector.extract_strided_slice %399 {offsets = [2, 0, 0], sizes = [1, 8, 128], strides = [1, 1, 1]} : vector<4x8x128xf32> to vector<1x8x128xf32>
    %477 = vector.shape_cast %476 : vector<1x8x128xf32> to vector<8x128xf32>
    %c34 = arith.constant 34 : index
    %478 = memref.load %arg3[%c34] : memref<64xf32, #tpu.memory_space<smem>>
    %479 = vector.broadcast %478 : f32 to vector<8x128xf32>
    %480 = arith.mulf %477, %479 : vector<8x128xf32>
    %481 = arith.addf %475, %480 : vector<8x128xf32>
    %482 = vector.extract_strided_slice %399 {offsets = [3, 0, 0], sizes = [1, 8, 128], strides = [1, 1, 1]} : vector<4x8x128xf32> to vector<1x8x128xf32>
    %483 = vector.shape_cast %482 : vector<1x8x128xf32> to vector<8x128xf32>
    %c50 = arith.constant 50 : index
    %484 = memref.load %arg3[%c50] : memref<64xf32, #tpu.memory_space<smem>>
    %485 = vector.broadcast %484 : f32 to vector<8x128xf32>
    %486 = arith.mulf %483, %485 : vector<8x128xf32>
    %487 = arith.addf %481, %486 : vector<8x128xf32>
    %488 = vector.extract_strided_slice %399 {offsets = [0, 0, 0], sizes = [1, 8, 128], strides = [1, 1, 1]} : vector<4x8x128xf32> to vector<1x8x128xf32>
    %489 = vector.shape_cast %488 : vector<1x8x128xf32> to vector<8x128xf32>
    %c3_71 = arith.constant 3 : index
    %490 = memref.load %arg3[%c3_71] : memref<64xf32, #tpu.memory_space<smem>>
    %491 = vector.broadcast %490 : f32 to vector<8x128xf32>
    %492 = arith.mulf %489, %491 : vector<8x128xf32>
    %493 = vector.extract_strided_slice %399 {offsets = [1, 0, 0], sizes = [1, 8, 128], strides = [1, 1, 1]} : vector<4x8x128xf32> to vector<1x8x128xf32>
    %494 = vector.shape_cast %493 : vector<1x8x128xf32> to vector<8x128xf32>
    %c19 = arith.constant 19 : index
    %495 = memref.load %arg3[%c19] : memref<64xf32, #tpu.memory_space<smem>>
    %496 = vector.broadcast %495 : f32 to vector<8x128xf32>
    %497 = arith.mulf %494, %496 : vector<8x128xf32>
    %498 = arith.addf %492, %497 : vector<8x128xf32>
    %499 = vector.extract_strided_slice %399 {offsets = [2, 0, 0], sizes = [1, 8, 128], strides = [1, 1, 1]} : vector<4x8x128xf32> to vector<1x8x128xf32>
    %500 = vector.shape_cast %499 : vector<1x8x128xf32> to vector<8x128xf32>
    %c35 = arith.constant 35 : index
    %501 = memref.load %arg3[%c35] : memref<64xf32, #tpu.memory_space<smem>>
    %502 = vector.broadcast %501 : f32 to vector<8x128xf32>
    %503 = arith.mulf %500, %502 : vector<8x128xf32>
    %504 = arith.addf %498, %503 : vector<8x128xf32>
    %505 = vector.extract_strided_slice %399 {offsets = [3, 0, 0], sizes = [1, 8, 128], strides = [1, 1, 1]} : vector<4x8x128xf32> to vector<1x8x128xf32>
    %506 = vector.shape_cast %505 : vector<1x8x128xf32> to vector<8x128xf32>
    %c51 = arith.constant 51 : index
    %507 = memref.load %arg3[%c51] : memref<64xf32, #tpu.memory_space<smem>>
    %508 = vector.broadcast %507 : f32 to vector<8x128xf32>
    %509 = arith.mulf %506, %508 : vector<8x128xf32>
    %510 = arith.addf %504, %509 : vector<8x128xf32>
    %511 = vector.extract_strided_slice %399 {offsets = [0, 0, 0], sizes = [1, 8, 128], strides = [1, 1, 1]} : vector<4x8x128xf32> to vector<1x8x128xf32>
    %512 = vector.shape_cast %511 : vector<1x8x128xf32> to vector<8x128xf32>
    %c4_72 = arith.constant 4 : index
    %513 = memref.load %arg3[%c4_72] : memref<64xf32, #tpu.memory_space<smem>>
    %514 = vector.broadcast %513 : f32 to vector<8x128xf32>
    %515 = arith.mulf %512, %514 : vector<8x128xf32>
    %516 = vector.extract_strided_slice %399 {offsets = [1, 0, 0], sizes = [1, 8, 128], strides = [1, 1, 1]} : vector<4x8x128xf32> to vector<1x8x128xf32>
    %517 = vector.shape_cast %516 : vector<1x8x128xf32> to vector<8x128xf32>
    %c20 = arith.constant 20 : index
    %518 = memref.load %arg3[%c20] : memref<64xf32, #tpu.memory_space<smem>>
    %519 = vector.broadcast %518 : f32 to vector<8x128xf32>
    %520 = arith.mulf %517, %519 : vector<8x128xf32>
    %521 = arith.addf %515, %520 : vector<8x128xf32>
    %522 = vector.extract_strided_slice %399 {offsets = [2, 0, 0], sizes = [1, 8, 128], strides = [1, 1, 1]} : vector<4x8x128xf32> to vector<1x8x128xf32>
    %523 = vector.shape_cast %522 : vector<1x8x128xf32> to vector<8x128xf32>
    %c36 = arith.constant 36 : index
    %524 = memref.load %arg3[%c36] : memref<64xf32, #tpu.memory_space<smem>>
    %525 = vector.broadcast %524 : f32 to vector<8x128xf32>
    %526 = arith.mulf %523, %525 : vector<8x128xf32>
    %527 = arith.addf %521, %526 : vector<8x128xf32>
    %528 = vector.extract_strided_slice %399 {offsets = [3, 0, 0], sizes = [1, 8, 128], strides = [1, 1, 1]} : vector<4x8x128xf32> to vector<1x8x128xf32>
    %529 = vector.shape_cast %528 : vector<1x8x128xf32> to vector<8x128xf32>
    %c52 = arith.constant 52 : index
    %530 = memref.load %arg3[%c52] : memref<64xf32, #tpu.memory_space<smem>>
    %531 = vector.broadcast %530 : f32 to vector<8x128xf32>
    %532 = arith.mulf %529, %531 : vector<8x128xf32>
    %533 = arith.addf %527, %532 : vector<8x128xf32>
    %534 = vector.extract_strided_slice %399 {offsets = [0, 0, 0], sizes = [1, 8, 128], strides = [1, 1, 1]} : vector<4x8x128xf32> to vector<1x8x128xf32>
    %535 = vector.shape_cast %534 : vector<1x8x128xf32> to vector<8x128xf32>
    %c5_73 = arith.constant 5 : index
    %536 = memref.load %arg3[%c5_73] : memref<64xf32, #tpu.memory_space<smem>>
    %537 = vector.broadcast %536 : f32 to vector<8x128xf32>
    %538 = arith.mulf %535, %537 : vector<8x128xf32>
    %539 = vector.extract_strided_slice %399 {offsets = [1, 0, 0], sizes = [1, 8, 128], strides = [1, 1, 1]} : vector<4x8x128xf32> to vector<1x8x128xf32>
    %540 = vector.shape_cast %539 : vector<1x8x128xf32> to vector<8x128xf32>
    %c21 = arith.constant 21 : index
    %541 = memref.load %arg3[%c21] : memref<64xf32, #tpu.memory_space<smem>>
    %542 = vector.broadcast %541 : f32 to vector<8x128xf32>
    %543 = arith.mulf %540, %542 : vector<8x128xf32>
    %544 = arith.addf %538, %543 : vector<8x128xf32>
    %545 = vector.extract_strided_slice %399 {offsets = [2, 0, 0], sizes = [1, 8, 128], strides = [1, 1, 1]} : vector<4x8x128xf32> to vector<1x8x128xf32>
    %546 = vector.shape_cast %545 : vector<1x8x128xf32> to vector<8x128xf32>
    %c37 = arith.constant 37 : index
    %547 = memref.load %arg3[%c37] : memref<64xf32, #tpu.memory_space<smem>>
    %548 = vector.broadcast %547 : f32 to vector<8x128xf32>
    %549 = arith.mulf %546, %548 : vector<8x128xf32>
    %550 = arith.addf %544, %549 : vector<8x128xf32>
    %551 = vector.extract_strided_slice %399 {offsets = [3, 0, 0], sizes = [1, 8, 128], strides = [1, 1, 1]} : vector<4x8x128xf32> to vector<1x8x128xf32>
    %552 = vector.shape_cast %551 : vector<1x8x128xf32> to vector<8x128xf32>
    %c53 = arith.constant 53 : index
    %553 = memref.load %arg3[%c53] : memref<64xf32, #tpu.memory_space<smem>>
    %554 = vector.broadcast %553 : f32 to vector<8x128xf32>
    %555 = arith.mulf %552, %554 : vector<8x128xf32>
    %556 = arith.addf %550, %555 : vector<8x128xf32>
    %557 = vector.extract_strided_slice %399 {offsets = [0, 0, 0], sizes = [1, 8, 128], strides = [1, 1, 1]} : vector<4x8x128xf32> to vector<1x8x128xf32>
    %558 = vector.shape_cast %557 : vector<1x8x128xf32> to vector<8x128xf32>
    %c6_74 = arith.constant 6 : index
    %559 = memref.load %arg3[%c6_74] : memref<64xf32, #tpu.memory_space<smem>>
    %560 = vector.broadcast %559 : f32 to vector<8x128xf32>
    %561 = arith.mulf %558, %560 : vector<8x128xf32>
    %562 = vector.extract_strided_slice %399 {offsets = [1, 0, 0], sizes = [1, 8, 128], strides = [1, 1, 1]} : vector<4x8x128xf32> to vector<1x8x128xf32>
    %563 = vector.shape_cast %562 : vector<1x8x128xf32> to vector<8x128xf32>
    %c22 = arith.constant 22 : index
    %564 = memref.load %arg3[%c22] : memref<64xf32, #tpu.memory_space<smem>>
    %565 = vector.broadcast %564 : f32 to vector<8x128xf32>
    %566 = arith.mulf %563, %565 : vector<8x128xf32>
    %567 = arith.addf %561, %566 : vector<8x128xf32>
    %568 = vector.extract_strided_slice %399 {offsets = [2, 0, 0], sizes = [1, 8, 128], strides = [1, 1, 1]} : vector<4x8x128xf32> to vector<1x8x128xf32>
    %569 = vector.shape_cast %568 : vector<1x8x128xf32> to vector<8x128xf32>
    %c38 = arith.constant 38 : index
    %570 = memref.load %arg3[%c38] : memref<64xf32, #tpu.memory_space<smem>>
    %571 = vector.broadcast %570 : f32 to vector<8x128xf32>
    %572 = arith.mulf %569, %571 : vector<8x128xf32>
    %573 = arith.addf %567, %572 : vector<8x128xf32>
    %574 = vector.extract_strided_slice %399 {offsets = [3, 0, 0], sizes = [1, 8, 128], strides = [1, 1, 1]} : vector<4x8x128xf32> to vector<1x8x128xf32>
    %575 = vector.shape_cast %574 : vector<1x8x128xf32> to vector<8x128xf32>
    %c54 = arith.constant 54 : index
    %576 = memref.load %arg3[%c54] : memref<64xf32, #tpu.memory_space<smem>>
    %577 = vector.broadcast %576 : f32 to vector<8x128xf32>
    %578 = arith.mulf %575, %577 : vector<8x128xf32>
    %579 = arith.addf %573, %578 : vector<8x128xf32>
    %580 = vector.extract_strided_slice %399 {offsets = [0, 0, 0], sizes = [1, 8, 128], strides = [1, 1, 1]} : vector<4x8x128xf32> to vector<1x8x128xf32>
    %581 = vector.shape_cast %580 : vector<1x8x128xf32> to vector<8x128xf32>
    %c7_75 = arith.constant 7 : index
    %582 = memref.load %arg3[%c7_75] : memref<64xf32, #tpu.memory_space<smem>>
    %583 = vector.broadcast %582 : f32 to vector<8x128xf32>
    %584 = arith.mulf %581, %583 : vector<8x128xf32>
    %585 = vector.extract_strided_slice %399 {offsets = [1, 0, 0], sizes = [1, 8, 128], strides = [1, 1, 1]} : vector<4x8x128xf32> to vector<1x8x128xf32>
    %586 = vector.shape_cast %585 : vector<1x8x128xf32> to vector<8x128xf32>
    %c23 = arith.constant 23 : index
    %587 = memref.load %arg3[%c23] : memref<64xf32, #tpu.memory_space<smem>>
    %588 = vector.broadcast %587 : f32 to vector<8x128xf32>
    %589 = arith.mulf %586, %588 : vector<8x128xf32>
    %590 = arith.addf %584, %589 : vector<8x128xf32>
    %591 = vector.extract_strided_slice %399 {offsets = [2, 0, 0], sizes = [1, 8, 128], strides = [1, 1, 1]} : vector<4x8x128xf32> to vector<1x8x128xf32>
    %592 = vector.shape_cast %591 : vector<1x8x128xf32> to vector<8x128xf32>
    %c39 = arith.constant 39 : index
    %593 = memref.load %arg3[%c39] : memref<64xf32, #tpu.memory_space<smem>>
    %594 = vector.broadcast %593 : f32 to vector<8x128xf32>
    %595 = arith.mulf %592, %594 : vector<8x128xf32>
    %596 = arith.addf %590, %595 : vector<8x128xf32>
    %597 = vector.extract_strided_slice %399 {offsets = [3, 0, 0], sizes = [1, 8, 128], strides = [1, 1, 1]} : vector<4x8x128xf32> to vector<1x8x128xf32>
    %598 = vector.shape_cast %597 : vector<1x8x128xf32> to vector<8x128xf32>
    %c55 = arith.constant 55 : index
    %599 = memref.load %arg3[%c55] : memref<64xf32, #tpu.memory_space<smem>>
    %600 = vector.broadcast %599 : f32 to vector<8x128xf32>
    %601 = arith.mulf %598, %600 : vector<8x128xf32>
    %602 = arith.addf %596, %601 : vector<8x128xf32>
    %603 = vector.extract_strided_slice %399 {offsets = [0, 0, 0], sizes = [1, 8, 128], strides = [1, 1, 1]} : vector<4x8x128xf32> to vector<1x8x128xf32>
    %604 = vector.shape_cast %603 : vector<1x8x128xf32> to vector<8x128xf32>
    %c8_76 = arith.constant 8 : index
    %605 = memref.load %arg3[%c8_76] : memref<64xf32, #tpu.memory_space<smem>>
    %606 = vector.broadcast %605 : f32 to vector<8x128xf32>
    %607 = arith.mulf %604, %606 : vector<8x128xf32>
    %608 = vector.extract_strided_slice %399 {offsets = [1, 0, 0], sizes = [1, 8, 128], strides = [1, 1, 1]} : vector<4x8x128xf32> to vector<1x8x128xf32>
    %609 = vector.shape_cast %608 : vector<1x8x128xf32> to vector<8x128xf32>
    %c24 = arith.constant 24 : index
    %610 = memref.load %arg3[%c24] : memref<64xf32, #tpu.memory_space<smem>>
    %611 = vector.broadcast %610 : f32 to vector<8x128xf32>
    %612 = arith.mulf %609, %611 : vector<8x128xf32>
    %613 = arith.addf %607, %612 : vector<8x128xf32>
    %614 = vector.extract_strided_slice %399 {offsets = [2, 0, 0], sizes = [1, 8, 128], strides = [1, 1, 1]} : vector<4x8x128xf32> to vector<1x8x128xf32>
    %615 = vector.shape_cast %614 : vector<1x8x128xf32> to vector<8x128xf32>
    %c40 = arith.constant 40 : index
    %616 = memref.load %arg3[%c40] : memref<64xf32, #tpu.memory_space<smem>>
    %617 = vector.broadcast %616 : f32 to vector<8x128xf32>
    %618 = arith.mulf %615, %617 : vector<8x128xf32>
    %619 = arith.addf %613, %618 : vector<8x128xf32>
    %620 = vector.extract_strided_slice %399 {offsets = [3, 0, 0], sizes = [1, 8, 128], strides = [1, 1, 1]} : vector<4x8x128xf32> to vector<1x8x128xf32>
    %621 = vector.shape_cast %620 : vector<1x8x128xf32> to vector<8x128xf32>
    %c56 = arith.constant 56 : index
    %622 = memref.load %arg3[%c56] : memref<64xf32, #tpu.memory_space<smem>>
    %623 = vector.broadcast %622 : f32 to vector<8x128xf32>
    %624 = arith.mulf %621, %623 : vector<8x128xf32>
    %625 = arith.addf %619, %624 : vector<8x128xf32>
    %626 = vector.extract_strided_slice %399 {offsets = [0, 0, 0], sizes = [1, 8, 128], strides = [1, 1, 1]} : vector<4x8x128xf32> to vector<1x8x128xf32>
    %627 = vector.shape_cast %626 : vector<1x8x128xf32> to vector<8x128xf32>
    %c9_77 = arith.constant 9 : index
    %628 = memref.load %arg3[%c9_77] : memref<64xf32, #tpu.memory_space<smem>>
    %629 = vector.broadcast %628 : f32 to vector<8x128xf32>
    %630 = arith.mulf %627, %629 : vector<8x128xf32>
    %631 = vector.extract_strided_slice %399 {offsets = [1, 0, 0], sizes = [1, 8, 128], strides = [1, 1, 1]} : vector<4x8x128xf32> to vector<1x8x128xf32>
    %632 = vector.shape_cast %631 : vector<1x8x128xf32> to vector<8x128xf32>
    %c25 = arith.constant 25 : index
    %633 = memref.load %arg3[%c25] : memref<64xf32, #tpu.memory_space<smem>>
    %634 = vector.broadcast %633 : f32 to vector<8x128xf32>
    %635 = arith.mulf %632, %634 : vector<8x128xf32>
    %636 = arith.addf %630, %635 : vector<8x128xf32>
    %637 = vector.extract_strided_slice %399 {offsets = [2, 0, 0], sizes = [1, 8, 128], strides = [1, 1, 1]} : vector<4x8x128xf32> to vector<1x8x128xf32>
    %638 = vector.shape_cast %637 : vector<1x8x128xf32> to vector<8x128xf32>
    %c41 = arith.constant 41 : index
    %639 = memref.load %arg3[%c41] : memref<64xf32, #tpu.memory_space<smem>>
    %640 = vector.broadcast %639 : f32 to vector<8x128xf32>
    %641 = arith.mulf %638, %640 : vector<8x128xf32>
    %642 = arith.addf %636, %641 : vector<8x128xf32>
    %643 = vector.extract_strided_slice %399 {offsets = [3, 0, 0], sizes = [1, 8, 128], strides = [1, 1, 1]} : vector<4x8x128xf32> to vector<1x8x128xf32>
    %644 = vector.shape_cast %643 : vector<1x8x128xf32> to vector<8x128xf32>
    %c57 = arith.constant 57 : index
    %645 = memref.load %arg3[%c57] : memref<64xf32, #tpu.memory_space<smem>>
    %646 = vector.broadcast %645 : f32 to vector<8x128xf32>
    %647 = arith.mulf %644, %646 : vector<8x128xf32>
    %648 = arith.addf %642, %647 : vector<8x128xf32>
    %649 = vector.extract_strided_slice %399 {offsets = [0, 0, 0], sizes = [1, 8, 128], strides = [1, 1, 1]} : vector<4x8x128xf32> to vector<1x8x128xf32>
    %650 = vector.shape_cast %649 : vector<1x8x128xf32> to vector<8x128xf32>
    %c10_78 = arith.constant 10 : index
    %651 = memref.load %arg3[%c10_78] : memref<64xf32, #tpu.memory_space<smem>>
    %652 = vector.broadcast %651 : f32 to vector<8x128xf32>
    %653 = arith.mulf %650, %652 : vector<8x128xf32>
    %654 = vector.extract_strided_slice %399 {offsets = [1, 0, 0], sizes = [1, 8, 128], strides = [1, 1, 1]} : vector<4x8x128xf32> to vector<1x8x128xf32>
    %655 = vector.shape_cast %654 : vector<1x8x128xf32> to vector<8x128xf32>
    %c26 = arith.constant 26 : index
    %656 = memref.load %arg3[%c26] : memref<64xf32, #tpu.memory_space<smem>>
    %657 = vector.broadcast %656 : f32 to vector<8x128xf32>
    %658 = arith.mulf %655, %657 : vector<8x128xf32>
    %659 = arith.addf %653, %658 : vector<8x128xf32>
    %660 = vector.extract_strided_slice %399 {offsets = [2, 0, 0], sizes = [1, 8, 128], strides = [1, 1, 1]} : vector<4x8x128xf32> to vector<1x8x128xf32>
    %661 = vector.shape_cast %660 : vector<1x8x128xf32> to vector<8x128xf32>
    %c42 = arith.constant 42 : index
    %662 = memref.load %arg3[%c42] : memref<64xf32, #tpu.memory_space<smem>>
    %663 = vector.broadcast %662 : f32 to vector<8x128xf32>
    %664 = arith.mulf %661, %663 : vector<8x128xf32>
    %665 = arith.addf %659, %664 : vector<8x128xf32>
    %666 = vector.extract_strided_slice %399 {offsets = [3, 0, 0], sizes = [1, 8, 128], strides = [1, 1, 1]} : vector<4x8x128xf32> to vector<1x8x128xf32>
    %667 = vector.shape_cast %666 : vector<1x8x128xf32> to vector<8x128xf32>
    %c58 = arith.constant 58 : index
    %668 = memref.load %arg3[%c58] : memref<64xf32, #tpu.memory_space<smem>>
    %669 = vector.broadcast %668 : f32 to vector<8x128xf32>
    %670 = arith.mulf %667, %669 : vector<8x128xf32>
    %671 = arith.addf %665, %670 : vector<8x128xf32>
    %672 = vector.extract_strided_slice %399 {offsets = [0, 0, 0], sizes = [1, 8, 128], strides = [1, 1, 1]} : vector<4x8x128xf32> to vector<1x8x128xf32>
    %673 = vector.shape_cast %672 : vector<1x8x128xf32> to vector<8x128xf32>
    %c11_79 = arith.constant 11 : index
    %674 = memref.load %arg3[%c11_79] : memref<64xf32, #tpu.memory_space<smem>>
    %675 = vector.broadcast %674 : f32 to vector<8x128xf32>
    %676 = arith.mulf %673, %675 : vector<8x128xf32>
    %677 = vector.extract_strided_slice %399 {offsets = [1, 0, 0], sizes = [1, 8, 128], strides = [1, 1, 1]} : vector<4x8x128xf32> to vector<1x8x128xf32>
    %678 = vector.shape_cast %677 : vector<1x8x128xf32> to vector<8x128xf32>
    %c27 = arith.constant 27 : index
    %679 = memref.load %arg3[%c27] : memref<64xf32, #tpu.memory_space<smem>>
    %680 = vector.broadcast %679 : f32 to vector<8x128xf32>
    %681 = arith.mulf %678, %680 : vector<8x128xf32>
    %682 = arith.addf %676, %681 : vector<8x128xf32>
    %683 = vector.extract_strided_slice %399 {offsets = [2, 0, 0], sizes = [1, 8, 128], strides = [1, 1, 1]} : vector<4x8x128xf32> to vector<1x8x128xf32>
    %684 = vector.shape_cast %683 : vector<1x8x128xf32> to vector<8x128xf32>
    %c43 = arith.constant 43 : index
    %685 = memref.load %arg3[%c43] : memref<64xf32, #tpu.memory_space<smem>>
    %686 = vector.broadcast %685 : f32 to vector<8x128xf32>
    %687 = arith.mulf %684, %686 : vector<8x128xf32>
    %688 = arith.addf %682, %687 : vector<8x128xf32>
    %689 = vector.extract_strided_slice %399 {offsets = [3, 0, 0], sizes = [1, 8, 128], strides = [1, 1, 1]} : vector<4x8x128xf32> to vector<1x8x128xf32>
    %690 = vector.shape_cast %689 : vector<1x8x128xf32> to vector<8x128xf32>
    %c59 = arith.constant 59 : index
    %691 = memref.load %arg3[%c59] : memref<64xf32, #tpu.memory_space<smem>>
    %692 = vector.broadcast %691 : f32 to vector<8x128xf32>
    %693 = arith.mulf %690, %692 : vector<8x128xf32>
    %694 = arith.addf %688, %693 : vector<8x128xf32>
    %695 = vector.extract_strided_slice %399 {offsets = [0, 0, 0], sizes = [1, 8, 128], strides = [1, 1, 1]} : vector<4x8x128xf32> to vector<1x8x128xf32>
    %696 = vector.shape_cast %695 : vector<1x8x128xf32> to vector<8x128xf32>
    %c12_80 = arith.constant 12 : index
    %697 = memref.load %arg3[%c12_80] : memref<64xf32, #tpu.memory_space<smem>>
    %698 = vector.broadcast %697 : f32 to vector<8x128xf32>
    %699 = arith.mulf %696, %698 : vector<8x128xf32>
    %700 = vector.extract_strided_slice %399 {offsets = [1, 0, 0], sizes = [1, 8, 128], strides = [1, 1, 1]} : vector<4x8x128xf32> to vector<1x8x128xf32>
    %701 = vector.shape_cast %700 : vector<1x8x128xf32> to vector<8x128xf32>
    %c28 = arith.constant 28 : index
    %702 = memref.load %arg3[%c28] : memref<64xf32, #tpu.memory_space<smem>>
    %703 = vector.broadcast %702 : f32 to vector<8x128xf32>
    %704 = arith.mulf %701, %703 : vector<8x128xf32>
    %705 = arith.addf %699, %704 : vector<8x128xf32>
    %706 = vector.extract_strided_slice %399 {offsets = [2, 0, 0], sizes = [1, 8, 128], strides = [1, 1, 1]} : vector<4x8x128xf32> to vector<1x8x128xf32>
    %707 = vector.shape_cast %706 : vector<1x8x128xf32> to vector<8x128xf32>
    %c44 = arith.constant 44 : index
    %708 = memref.load %arg3[%c44] : memref<64xf32, #tpu.memory_space<smem>>
    %709 = vector.broadcast %708 : f32 to vector<8x128xf32>
    %710 = arith.mulf %707, %709 : vector<8x128xf32>
    %711 = arith.addf %705, %710 : vector<8x128xf32>
    %712 = vector.extract_strided_slice %399 {offsets = [3, 0, 0], sizes = [1, 8, 128], strides = [1, 1, 1]} : vector<4x8x128xf32> to vector<1x8x128xf32>
    %713 = vector.shape_cast %712 : vector<1x8x128xf32> to vector<8x128xf32>
    %c60 = arith.constant 60 : index
    %714 = memref.load %arg3[%c60] : memref<64xf32, #tpu.memory_space<smem>>
    %715 = vector.broadcast %714 : f32 to vector<8x128xf32>
    %716 = arith.mulf %713, %715 : vector<8x128xf32>
    %717 = arith.addf %711, %716 : vector<8x128xf32>
    %718 = vector.extract_strided_slice %399 {offsets = [0, 0, 0], sizes = [1, 8, 128], strides = [1, 1, 1]} : vector<4x8x128xf32> to vector<1x8x128xf32>
    %719 = vector.shape_cast %718 : vector<1x8x128xf32> to vector<8x128xf32>
    %c13_81 = arith.constant 13 : index
    %720 = memref.load %arg3[%c13_81] : memref<64xf32, #tpu.memory_space<smem>>
    %721 = vector.broadcast %720 : f32 to vector<8x128xf32>
    %722 = arith.mulf %719, %721 : vector<8x128xf32>
    %723 = vector.extract_strided_slice %399 {offsets = [1, 0, 0], sizes = [1, 8, 128], strides = [1, 1, 1]} : vector<4x8x128xf32> to vector<1x8x128xf32>
    %724 = vector.shape_cast %723 : vector<1x8x128xf32> to vector<8x128xf32>
    %c29 = arith.constant 29 : index
    %725 = memref.load %arg3[%c29] : memref<64xf32, #tpu.memory_space<smem>>
    %726 = vector.broadcast %725 : f32 to vector<8x128xf32>
    %727 = arith.mulf %724, %726 : vector<8x128xf32>
    %728 = arith.addf %722, %727 : vector<8x128xf32>
    %729 = vector.extract_strided_slice %399 {offsets = [2, 0, 0], sizes = [1, 8, 128], strides = [1, 1, 1]} : vector<4x8x128xf32> to vector<1x8x128xf32>
    %730 = vector.shape_cast %729 : vector<1x8x128xf32> to vector<8x128xf32>
    %c45 = arith.constant 45 : index
    %731 = memref.load %arg3[%c45] : memref<64xf32, #tpu.memory_space<smem>>
    %732 = vector.broadcast %731 : f32 to vector<8x128xf32>
    %733 = arith.mulf %730, %732 : vector<8x128xf32>
    %734 = arith.addf %728, %733 : vector<8x128xf32>
    %735 = vector.extract_strided_slice %399 {offsets = [3, 0, 0], sizes = [1, 8, 128], strides = [1, 1, 1]} : vector<4x8x128xf32> to vector<1x8x128xf32>
    %736 = vector.shape_cast %735 : vector<1x8x128xf32> to vector<8x128xf32>
    %c61 = arith.constant 61 : index
    %737 = memref.load %arg3[%c61] : memref<64xf32, #tpu.memory_space<smem>>
    %738 = vector.broadcast %737 : f32 to vector<8x128xf32>
    %739 = arith.mulf %736, %738 : vector<8x128xf32>
    %740 = arith.addf %734, %739 : vector<8x128xf32>
    %741 = vector.extract_strided_slice %399 {offsets = [0, 0, 0], sizes = [1, 8, 128], strides = [1, 1, 1]} : vector<4x8x128xf32> to vector<1x8x128xf32>
    %742 = vector.shape_cast %741 : vector<1x8x128xf32> to vector<8x128xf32>
    %c14_82 = arith.constant 14 : index
    %743 = memref.load %arg3[%c14_82] : memref<64xf32, #tpu.memory_space<smem>>
    %744 = vector.broadcast %743 : f32 to vector<8x128xf32>
    %745 = arith.mulf %742, %744 : vector<8x128xf32>
    %746 = vector.extract_strided_slice %399 {offsets = [1, 0, 0], sizes = [1, 8, 128], strides = [1, 1, 1]} : vector<4x8x128xf32> to vector<1x8x128xf32>
    %747 = vector.shape_cast %746 : vector<1x8x128xf32> to vector<8x128xf32>
    %c30 = arith.constant 30 : index
    %748 = memref.load %arg3[%c30] : memref<64xf32, #tpu.memory_space<smem>>
    %749 = vector.broadcast %748 : f32 to vector<8x128xf32>
    %750 = arith.mulf %747, %749 : vector<8x128xf32>
    %751 = arith.addf %745, %750 : vector<8x128xf32>
    %752 = vector.extract_strided_slice %399 {offsets = [2, 0, 0], sizes = [1, 8, 128], strides = [1, 1, 1]} : vector<4x8x128xf32> to vector<1x8x128xf32>
    %753 = vector.shape_cast %752 : vector<1x8x128xf32> to vector<8x128xf32>
    %c46 = arith.constant 46 : index
    %754 = memref.load %arg3[%c46] : memref<64xf32, #tpu.memory_space<smem>>
    %755 = vector.broadcast %754 : f32 to vector<8x128xf32>
    %756 = arith.mulf %753, %755 : vector<8x128xf32>
    %757 = arith.addf %751, %756 : vector<8x128xf32>
    %758 = vector.extract_strided_slice %399 {offsets = [3, 0, 0], sizes = [1, 8, 128], strides = [1, 1, 1]} : vector<4x8x128xf32> to vector<1x8x128xf32>
    %759 = vector.shape_cast %758 : vector<1x8x128xf32> to vector<8x128xf32>
    %c62 = arith.constant 62 : index
    %760 = memref.load %arg3[%c62] : memref<64xf32, #tpu.memory_space<smem>>
    %761 = vector.broadcast %760 : f32 to vector<8x128xf32>
    %762 = arith.mulf %759, %761 : vector<8x128xf32>
    %763 = arith.addf %757, %762 : vector<8x128xf32>
    %764 = vector.extract_strided_slice %399 {offsets = [0, 0, 0], sizes = [1, 8, 128], strides = [1, 1, 1]} : vector<4x8x128xf32> to vector<1x8x128xf32>
    %765 = vector.shape_cast %764 : vector<1x8x128xf32> to vector<8x128xf32>
    %c15_83 = arith.constant 15 : index
    %766 = memref.load %arg3[%c15_83] : memref<64xf32, #tpu.memory_space<smem>>
    %767 = vector.broadcast %766 : f32 to vector<8x128xf32>
    %768 = arith.mulf %765, %767 : vector<8x128xf32>
    %769 = vector.extract_strided_slice %399 {offsets = [1, 0, 0], sizes = [1, 8, 128], strides = [1, 1, 1]} : vector<4x8x128xf32> to vector<1x8x128xf32>
    %770 = vector.shape_cast %769 : vector<1x8x128xf32> to vector<8x128xf32>
    %c31 = arith.constant 31 : index
    %771 = memref.load %arg3[%c31] : memref<64xf32, #tpu.memory_space<smem>>
    %772 = vector.broadcast %771 : f32 to vector<8x128xf32>
    %773 = arith.mulf %770, %772 : vector<8x128xf32>
    %774 = arith.addf %768, %773 : vector<8x128xf32>
    %775 = vector.extract_strided_slice %399 {offsets = [2, 0, 0], sizes = [1, 8, 128], strides = [1, 1, 1]} : vector<4x8x128xf32> to vector<1x8x128xf32>
    %776 = vector.shape_cast %775 : vector<1x8x128xf32> to vector<8x128xf32>
    %c47 = arith.constant 47 : index
    %777 = memref.load %arg3[%c47] : memref<64xf32, #tpu.memory_space<smem>>
    %778 = vector.broadcast %777 : f32 to vector<8x128xf32>
    %779 = arith.mulf %776, %778 : vector<8x128xf32>
    %780 = arith.addf %774, %779 : vector<8x128xf32>
    %781 = vector.extract_strided_slice %399 {offsets = [3, 0, 0], sizes = [1, 8, 128], strides = [1, 1, 1]} : vector<4x8x128xf32> to vector<1x8x128xf32>
    %782 = vector.shape_cast %781 : vector<1x8x128xf32> to vector<8x128xf32>
    %c63 = arith.constant 63 : index
    %783 = memref.load %arg3[%c63] : memref<64xf32, #tpu.memory_space<smem>>
    %784 = vector.broadcast %783 : f32 to vector<8x128xf32>
    %785 = arith.mulf %782, %784 : vector<8x128xf32>
    %786 = arith.addf %780, %785 : vector<8x128xf32>
    %787 = vector.extract_strided_slice %441 {offsets = [0, 0], sizes = [1, 128], strides = [1, 1]} : vector<8x128xf32> to vector<1x128xf32>
    %788 = vector.shape_cast %787 : vector<1x128xf32> to vector<1x128xf32>
    %789 = vector.broadcast %788 : vector<1x128xf32> to vector<8x128xf32>
    %790 = arith.mulf %789, %28 : vector<8x128xf32>
    %791 = vector.extract_strided_slice %464 {offsets = [0, 0], sizes = [1, 128], strides = [1, 1]} : vector<8x128xf32> to vector<1x128xf32>
    %792 = vector.shape_cast %791 : vector<1x128xf32> to vector<1x128xf32>
    %793 = vector.broadcast %792 : vector<1x128xf32> to vector<8x128xf32>
    %794 = arith.mulf %793, %54 : vector<8x128xf32>
    %795 = arith.addf %790, %794 : vector<8x128xf32>
    %796 = vector.extract_strided_slice %487 {offsets = [0, 0], sizes = [1, 128], strides = [1, 1]} : vector<8x128xf32> to vector<1x128xf32>
    %797 = vector.shape_cast %796 : vector<1x128xf32> to vector<1x128xf32>
    %798 = vector.broadcast %797 : vector<1x128xf32> to vector<8x128xf32>
    %799 = arith.mulf %798, %80 : vector<8x128xf32>
    %800 = arith.addf %795, %799 : vector<8x128xf32>
    %801 = vector.extract_strided_slice %510 {offsets = [0, 0], sizes = [1, 128], strides = [1, 1]} : vector<8x128xf32> to vector<1x128xf32>
    %802 = vector.shape_cast %801 : vector<1x128xf32> to vector<1x128xf32>
    %803 = vector.broadcast %802 : vector<1x128xf32> to vector<8x128xf32>
    %804 = arith.mulf %803, %106 : vector<8x128xf32>
    %805 = arith.addf %800, %804 : vector<8x128xf32>
    %806 = vector.extract_strided_slice %533 {offsets = [0, 0], sizes = [1, 128], strides = [1, 1]} : vector<8x128xf32> to vector<1x128xf32>
    %807 = vector.shape_cast %806 : vector<1x128xf32> to vector<1x128xf32>
    %808 = vector.broadcast %807 : vector<1x128xf32> to vector<8x128xf32>
    %809 = arith.mulf %808, %132 : vector<8x128xf32>
    %810 = arith.addf %805, %809 : vector<8x128xf32>
    %811 = vector.extract_strided_slice %556 {offsets = [0, 0], sizes = [1, 128], strides = [1, 1]} : vector<8x128xf32> to vector<1x128xf32>
    %812 = vector.shape_cast %811 : vector<1x128xf32> to vector<1x128xf32>
    %813 = vector.broadcast %812 : vector<1x128xf32> to vector<8x128xf32>
    %814 = arith.mulf %813, %158 : vector<8x128xf32>
    %815 = arith.addf %810, %814 : vector<8x128xf32>
    %816 = vector.extract_strided_slice %579 {offsets = [0, 0], sizes = [1, 128], strides = [1, 1]} : vector<8x128xf32> to vector<1x128xf32>
    %817 = vector.shape_cast %816 : vector<1x128xf32> to vector<1x128xf32>
    %818 = vector.broadcast %817 : vector<1x128xf32> to vector<8x128xf32>
    %819 = arith.mulf %818, %184 : vector<8x128xf32>
    %820 = arith.addf %815, %819 : vector<8x128xf32>
    %821 = vector.extract_strided_slice %602 {offsets = [0, 0], sizes = [1, 128], strides = [1, 1]} : vector<8x128xf32> to vector<1x128xf32>
    %822 = vector.shape_cast %821 : vector<1x128xf32> to vector<1x128xf32>
    %823 = vector.broadcast %822 : vector<1x128xf32> to vector<8x128xf32>
    %824 = arith.mulf %823, %210 : vector<8x128xf32>
    %825 = arith.addf %820, %824 : vector<8x128xf32>
    %826 = vector.extract_strided_slice %625 {offsets = [0, 0], sizes = [1, 128], strides = [1, 1]} : vector<8x128xf32> to vector<1x128xf32>
    %827 = vector.shape_cast %826 : vector<1x128xf32> to vector<1x128xf32>
    %828 = vector.broadcast %827 : vector<1x128xf32> to vector<8x128xf32>
    %829 = arith.mulf %828, %236 : vector<8x128xf32>
    %830 = arith.addf %825, %829 : vector<8x128xf32>
    %831 = vector.extract_strided_slice %648 {offsets = [0, 0], sizes = [1, 128], strides = [1, 1]} : vector<8x128xf32> to vector<1x128xf32>
    %832 = vector.shape_cast %831 : vector<1x128xf32> to vector<1x128xf32>
    %833 = vector.broadcast %832 : vector<1x128xf32> to vector<8x128xf32>
    %834 = arith.mulf %833, %262 : vector<8x128xf32>
    %835 = arith.addf %830, %834 : vector<8x128xf32>
    %836 = vector.extract_strided_slice %671 {offsets = [0, 0], sizes = [1, 128], strides = [1, 1]} : vector<8x128xf32> to vector<1x128xf32>
    %837 = vector.shape_cast %836 : vector<1x128xf32> to vector<1x128xf32>
    %838 = vector.broadcast %837 : vector<1x128xf32> to vector<8x128xf32>
    %839 = arith.mulf %838, %288 : vector<8x128xf32>
    %840 = arith.addf %835, %839 : vector<8x128xf32>
    %841 = vector.extract_strided_slice %694 {offsets = [0, 0], sizes = [1, 128], strides = [1, 1]} : vector<8x128xf32> to vector<1x128xf32>
    %842 = vector.shape_cast %841 : vector<1x128xf32> to vector<1x128xf32>
    %843 = vector.broadcast %842 : vector<1x128xf32> to vector<8x128xf32>
    %844 = arith.mulf %843, %314 : vector<8x128xf32>
    %845 = arith.addf %840, %844 : vector<8x128xf32>
    %846 = vector.extract_strided_slice %717 {offsets = [0, 0], sizes = [1, 128], strides = [1, 1]} : vector<8x128xf32> to vector<1x128xf32>
    %847 = vector.shape_cast %846 : vector<1x128xf32> to vector<1x128xf32>
    %848 = vector.broadcast %847 : vector<1x128xf32> to vector<8x128xf32>
    %849 = arith.mulf %848, %340 : vector<8x128xf32>
    %850 = arith.addf %845, %849 : vector<8x128xf32>
    %851 = vector.extract_strided_slice %740 {offsets = [0, 0], sizes = [1, 128], strides = [1, 1]} : vector<8x128xf32> to vector<1x128xf32>
    %852 = vector.shape_cast %851 : vector<1x128xf32> to vector<1x128xf32>
    %853 = vector.broadcast %852 : vector<1x128xf32> to vector<8x128xf32>
    %854 = arith.mulf %853, %366 : vector<8x128xf32>
    %855 = arith.addf %850, %854 : vector<8x128xf32>
    %856 = vector.extract_strided_slice %763 {offsets = [0, 0], sizes = [1, 128], strides = [1, 1]} : vector<8x128xf32> to vector<1x128xf32>
    %857 = vector.shape_cast %856 : vector<1x128xf32> to vector<1x128xf32>
    %858 = vector.broadcast %857 : vector<1x128xf32> to vector<8x128xf32>
    %859 = arith.mulf %858, %392 : vector<8x128xf32>
    %860 = arith.addf %855, %859 : vector<8x128xf32>
    %861 = vector.extract_strided_slice %786 {offsets = [0, 0], sizes = [1, 128], strides = [1, 1]} : vector<8x128xf32> to vector<1x128xf32>
    %862 = vector.shape_cast %861 : vector<1x128xf32> to vector<1x128xf32>
    %863 = vector.broadcast %862 : vector<1x128xf32> to vector<8x128xf32>
    %864 = arith.mulf %863, %418 : vector<8x128xf32>
    %865 = arith.addf %860, %864 : vector<8x128xf32>
    %c0_84 = arith.constant 0 : index
    %c0_85 = arith.constant 0 : index
    %c0_86 = arith.constant 0 : index
    %866 = vector.load %arg5[%c0_84, %c0_85, %c0_86] : memref<8x8x1xf32, #tpu.memory_space<vmem>>, vector<1x8x1xf32>
    %867 = vector.shape_cast %866 : vector<1x8x1xf32> to vector<8x1xf32>
    %868 = vector.broadcast %867 : vector<8x1xf32> to vector<8x128xf32>
    %869 = arith.addf %865, %868 : vector<8x128xf32>
    %870 = arith.negf %869 : vector<8x128xf32>
    %871 = math.exp %870 : vector<8x128xf32>
    %cst = arith.constant 1.000000e+00 : f32
    %872 = vector.broadcast %cst : f32 to vector<8x128xf32>
    %873 = arith.addf %872, %871 : vector<8x128xf32>
    %874 = arith.divf %872, %873 : vector<8x128xf32>
    %875 = vector.extract_strided_slice %441 {offsets = [1, 0], sizes = [1, 128], strides = [1, 1]} : vector<8x128xf32> to vector<1x128xf32>
    %876 = vector.shape_cast %875 : vector<1x128xf32> to vector<1x128xf32>
    %877 = vector.broadcast %876 : vector<1x128xf32> to vector<8x128xf32>
    %878 = arith.mulf %877, %28 : vector<8x128xf32>
    %879 = vector.extract_strided_slice %464 {offsets = [1, 0], sizes = [1, 128], strides = [1, 1]} : vector<8x128xf32> to vector<1x128xf32>
    %880 = vector.shape_cast %879 : vector<1x128xf32> to vector<1x128xf32>
    %881 = vector.broadcast %880 : vector<1x128xf32> to vector<8x128xf32>
    %882 = arith.mulf %881, %54 : vector<8x128xf32>
    %883 = arith.addf %878, %882 : vector<8x128xf32>
    %884 = vector.extract_strided_slice %487 {offsets = [1, 0], sizes = [1, 128], strides = [1, 1]} : vector<8x128xf32> to vector<1x128xf32>
    %885 = vector.shape_cast %884 : vector<1x128xf32> to vector<1x128xf32>
    %886 = vector.broadcast %885 : vector<1x128xf32> to vector<8x128xf32>
    %887 = arith.mulf %886, %80 : vector<8x128xf32>
    %888 = arith.addf %883, %887 : vector<8x128xf32>
    %889 = vector.extract_strided_slice %510 {offsets = [1, 0], sizes = [1, 128], strides = [1, 1]} : vector<8x128xf32> to vector<1x128xf32>
    %890 = vector.shape_cast %889 : vector<1x128xf32> to vector<1x128xf32>
    %891 = vector.broadcast %890 : vector<1x128xf32> to vector<8x128xf32>
    %892 = arith.mulf %891, %106 : vector<8x128xf32>
    %893 = arith.addf %888, %892 : vector<8x128xf32>
    %894 = vector.extract_strided_slice %533 {offsets = [1, 0], sizes = [1, 128], strides = [1, 1]} : vector<8x128xf32> to vector<1x128xf32>
    %895 = vector.shape_cast %894 : vector<1x128xf32> to vector<1x128xf32>
    %896 = vector.broadcast %895 : vector<1x128xf32> to vector<8x128xf32>
    %897 = arith.mulf %896, %132 : vector<8x128xf32>
    %898 = arith.addf %893, %897 : vector<8x128xf32>
    %899 = vector.extract_strided_slice %556 {offsets = [1, 0], sizes = [1, 128], strides = [1, 1]} : vector<8x128xf32> to vector<1x128xf32>
    %900 = vector.shape_cast %899 : vector<1x128xf32> to vector<1x128xf32>
    %901 = vector.broadcast %900 : vector<1x128xf32> to vector<8x128xf32>
    %902 = arith.mulf %901, %158 : vector<8x128xf32>
    %903 = arith.addf %898, %902 : vector<8x128xf32>
    %904 = vector.extract_strided_slice %579 {offsets = [1, 0], sizes = [1, 128], strides = [1, 1]} : vector<8x128xf32> to vector<1x128xf32>
    %905 = vector.shape_cast %904 : vector<1x128xf32> to vector<1x128xf32>
    %906 = vector.broadcast %905 : vector<1x128xf32> to vector<8x128xf32>
    %907 = arith.mulf %906, %184 : vector<8x128xf32>
    %908 = arith.addf %903, %907 : vector<8x128xf32>
    %909 = vector.extract_strided_slice %602 {offsets = [1, 0], sizes = [1, 128], strides = [1, 1]} : vector<8x128xf32> to vector<1x128xf32>
    %910 = vector.shape_cast %909 : vector<1x128xf32> to vector<1x128xf32>
    %911 = vector.broadcast %910 : vector<1x128xf32> to vector<8x128xf32>
    %912 = arith.mulf %911, %210 : vector<8x128xf32>
    %913 = arith.addf %908, %912 : vector<8x128xf32>
    %914 = vector.extract_strided_slice %625 {offsets = [1, 0], sizes = [1, 128], strides = [1, 1]} : vector<8x128xf32> to vector<1x128xf32>
    %915 = vector.shape_cast %914 : vector<1x128xf32> to vector<1x128xf32>
    %916 = vector.broadcast %915 : vector<1x128xf32> to vector<8x128xf32>
    %917 = arith.mulf %916, %236 : vector<8x128xf32>
    %918 = arith.addf %913, %917 : vector<8x128xf32>
    %919 = vector.extract_strided_slice %648 {offsets = [1, 0], sizes = [1, 128], strides = [1, 1]} : vector<8x128xf32> to vector<1x128xf32>
    %920 = vector.shape_cast %919 : vector<1x128xf32> to vector<1x128xf32>
    %921 = vector.broadcast %920 : vector<1x128xf32> to vector<8x128xf32>
    %922 = arith.mulf %921, %262 : vector<8x128xf32>
    %923 = arith.addf %918, %922 : vector<8x128xf32>
    %924 = vector.extract_strided_slice %671 {offsets = [1, 0], sizes = [1, 128], strides = [1, 1]} : vector<8x128xf32> to vector<1x128xf32>
    %925 = vector.shape_cast %924 : vector<1x128xf32> to vector<1x128xf32>
    %926 = vector.broadcast %925 : vector<1x128xf32> to vector<8x128xf32>
    %927 = arith.mulf %926, %288 : vector<8x128xf32>
    %928 = arith.addf %923, %927 : vector<8x128xf32>
    %929 = vector.extract_strided_slice %694 {offsets = [1, 0], sizes = [1, 128], strides = [1, 1]} : vector<8x128xf32> to vector<1x128xf32>
    %930 = vector.shape_cast %929 : vector<1x128xf32> to vector<1x128xf32>
    %931 = vector.broadcast %930 : vector<1x128xf32> to vector<8x128xf32>
    %932 = arith.mulf %931, %314 : vector<8x128xf32>
    %933 = arith.addf %928, %932 : vector<8x128xf32>
    %934 = vector.extract_strided_slice %717 {offsets = [1, 0], sizes = [1, 128], strides = [1, 1]} : vector<8x128xf32> to vector<1x128xf32>
    %935 = vector.shape_cast %934 : vector<1x128xf32> to vector<1x128xf32>
    %936 = vector.broadcast %935 : vector<1x128xf32> to vector<8x128xf32>
    %937 = arith.mulf %936, %340 : vector<8x128xf32>
    %938 = arith.addf %933, %937 : vector<8x128xf32>
    %939 = vector.extract_strided_slice %740 {offsets = [1, 0], sizes = [1, 128], strides = [1, 1]} : vector<8x128xf32> to vector<1x128xf32>
    %940 = vector.shape_cast %939 : vector<1x128xf32> to vector<1x128xf32>
    %941 = vector.broadcast %940 : vector<1x128xf32> to vector<8x128xf32>
    %942 = arith.mulf %941, %366 : vector<8x128xf32>
    %943 = arith.addf %938, %942 : vector<8x128xf32>
    %944 = vector.extract_strided_slice %763 {offsets = [1, 0], sizes = [1, 128], strides = [1, 1]} : vector<8x128xf32> to vector<1x128xf32>
    %945 = vector.shape_cast %944 : vector<1x128xf32> to vector<1x128xf32>
    %946 = vector.broadcast %945 : vector<1x128xf32> to vector<8x128xf32>
    %947 = arith.mulf %946, %392 : vector<8x128xf32>
    %948 = arith.addf %943, %947 : vector<8x128xf32>
    %949 = vector.extract_strided_slice %786 {offsets = [1, 0], sizes = [1, 128], strides = [1, 1]} : vector<8x128xf32> to vector<1x128xf32>
    %950 = vector.shape_cast %949 : vector<1x128xf32> to vector<1x128xf32>
    %951 = vector.broadcast %950 : vector<1x128xf32> to vector<8x128xf32>
    %952 = arith.mulf %951, %418 : vector<8x128xf32>
    %953 = arith.addf %948, %952 : vector<8x128xf32>
    %c1_87 = arith.constant 1 : index
    %c0_88 = arith.constant 0 : index
    %c0_89 = arith.constant 0 : index
    %954 = vector.load %arg5[%c1_87, %c0_88, %c0_89] : memref<8x8x1xf32, #tpu.memory_space<vmem>>, vector<1x8x1xf32>
    %955 = vector.shape_cast %954 : vector<1x8x1xf32> to vector<8x1xf32>
    %956 = vector.broadcast %955 : vector<8x1xf32> to vector<8x128xf32>
    %957 = arith.addf %953, %956 : vector<8x128xf32>
    %958 = arith.negf %957 : vector<8x128xf32>
    %959 = math.exp %958 : vector<8x128xf32>
    %cst_90 = arith.constant 1.000000e+00 : f32
    %960 = vector.broadcast %cst_90 : f32 to vector<8x128xf32>
    %961 = arith.addf %960, %959 : vector<8x128xf32>
    %962 = arith.divf %960, %961 : vector<8x128xf32>
    %963 = vector.extract_strided_slice %441 {offsets = [2, 0], sizes = [1, 128], strides = [1, 1]} : vector<8x128xf32> to vector<1x128xf32>
    %964 = vector.shape_cast %963 : vector<1x128xf32> to vector<1x128xf32>
    %965 = vector.broadcast %964 : vector<1x128xf32> to vector<8x128xf32>
    %966 = arith.mulf %965, %28 : vector<8x128xf32>
    %967 = vector.extract_strided_slice %464 {offsets = [2, 0], sizes = [1, 128], strides = [1, 1]} : vector<8x128xf32> to vector<1x128xf32>
    %968 = vector.shape_cast %967 : vector<1x128xf32> to vector<1x128xf32>
    %969 = vector.broadcast %968 : vector<1x128xf32> to vector<8x128xf32>
    %970 = arith.mulf %969, %54 : vector<8x128xf32>
    %971 = arith.addf %966, %970 : vector<8x128xf32>
    %972 = vector.extract_strided_slice %487 {offsets = [2, 0], sizes = [1, 128], strides = [1, 1]} : vector<8x128xf32> to vector<1x128xf32>
    %973 = vector.shape_cast %972 : vector<1x128xf32> to vector<1x128xf32>
    %974 = vector.broadcast %973 : vector<1x128xf32> to vector<8x128xf32>
    %975 = arith.mulf %974, %80 : vector<8x128xf32>
    %976 = arith.addf %971, %975 : vector<8x128xf32>
    %977 = vector.extract_strided_slice %510 {offsets = [2, 0], sizes = [1, 128], strides = [1, 1]} : vector<8x128xf32> to vector<1x128xf32>
    %978 = vector.shape_cast %977 : vector<1x128xf32> to vector<1x128xf32>
    %979 = vector.broadcast %978 : vector<1x128xf32> to vector<8x128xf32>
    %980 = arith.mulf %979, %106 : vector<8x128xf32>
    %981 = arith.addf %976, %980 : vector<8x128xf32>
    %982 = vector.extract_strided_slice %533 {offsets = [2, 0], sizes = [1, 128], strides = [1, 1]} : vector<8x128xf32> to vector<1x128xf32>
    %983 = vector.shape_cast %982 : vector<1x128xf32> to vector<1x128xf32>
    %984 = vector.broadcast %983 : vector<1x128xf32> to vector<8x128xf32>
    %985 = arith.mulf %984, %132 : vector<8x128xf32>
    %986 = arith.addf %981, %985 : vector<8x128xf32>
    %987 = vector.extract_strided_slice %556 {offsets = [2, 0], sizes = [1, 128], strides = [1, 1]} : vector<8x128xf32> to vector<1x128xf32>
    %988 = vector.shape_cast %987 : vector<1x128xf32> to vector<1x128xf32>
    %989 = vector.broadcast %988 : vector<1x128xf32> to vector<8x128xf32>
    %990 = arith.mulf %989, %158 : vector<8x128xf32>
    %991 = arith.addf %986, %990 : vector<8x128xf32>
    %992 = vector.extract_strided_slice %579 {offsets = [2, 0], sizes = [1, 128], strides = [1, 1]} : vector<8x128xf32> to vector<1x128xf32>
    %993 = vector.shape_cast %992 : vector<1x128xf32> to vector<1x128xf32>
    %994 = vector.broadcast %993 : vector<1x128xf32> to vector<8x128xf32>
    %995 = arith.mulf %994, %184 : vector<8x128xf32>
    %996 = arith.addf %991, %995 : vector<8x128xf32>
    %997 = vector.extract_strided_slice %602 {offsets = [2, 0], sizes = [1, 128], strides = [1, 1]} : vector<8x128xf32> to vector<1x128xf32>
    %998 = vector.shape_cast %997 : vector<1x128xf32> to vector<1x128xf32>
    %999 = vector.broadcast %998 : vector<1x128xf32> to vector<8x128xf32>
    %1000 = arith.mulf %999, %210 : vector<8x128xf32>
    %1001 = arith.addf %996, %1000 : vector<8x128xf32>
    %1002 = vector.extract_strided_slice %625 {offsets = [2, 0], sizes = [1, 128], strides = [1, 1]} : vector<8x128xf32> to vector<1x128xf32>
    %1003 = vector.shape_cast %1002 : vector<1x128xf32> to vector<1x128xf32>
    %1004 = vector.broadcast %1003 : vector<1x128xf32> to vector<8x128xf32>
    %1005 = arith.mulf %1004, %236 : vector<8x128xf32>
    %1006 = arith.addf %1001, %1005 : vector<8x128xf32>
    %1007 = vector.extract_strided_slice %648 {offsets = [2, 0], sizes = [1, 128], strides = [1, 1]} : vector<8x128xf32> to vector<1x128xf32>
    %1008 = vector.shape_cast %1007 : vector<1x128xf32> to vector<1x128xf32>
    %1009 = vector.broadcast %1008 : vector<1x128xf32> to vector<8x128xf32>
    %1010 = arith.mulf %1009, %262 : vector<8x128xf32>
    %1011 = arith.addf %1006, %1010 : vector<8x128xf32>
    %1012 = vector.extract_strided_slice %671 {offsets = [2, 0], sizes = [1, 128], strides = [1, 1]} : vector<8x128xf32> to vector<1x128xf32>
    %1013 = vector.shape_cast %1012 : vector<1x128xf32> to vector<1x128xf32>
    %1014 = vector.broadcast %1013 : vector<1x128xf32> to vector<8x128xf32>
    %1015 = arith.mulf %1014, %288 : vector<8x128xf32>
    %1016 = arith.addf %1011, %1015 : vector<8x128xf32>
    %1017 = vector.extract_strided_slice %694 {offsets = [2, 0], sizes = [1, 128], strides = [1, 1]} : vector<8x128xf32> to vector<1x128xf32>
    %1018 = vector.shape_cast %1017 : vector<1x128xf32> to vector<1x128xf32>
    %1019 = vector.broadcast %1018 : vector<1x128xf32> to vector<8x128xf32>
    %1020 = arith.mulf %1019, %314 : vector<8x128xf32>
    %1021 = arith.addf %1016, %1020 : vector<8x128xf32>
    %1022 = vector.extract_strided_slice %717 {offsets = [2, 0], sizes = [1, 128], strides = [1, 1]} : vector<8x128xf32> to vector<1x128xf32>
    %1023 = vector.shape_cast %1022 : vector<1x128xf32> to vector<1x128xf32>
    %1024 = vector.broadcast %1023 : vector<1x128xf32> to vector<8x128xf32>
    %1025 = arith.mulf %1024, %340 : vector<8x128xf32>
    %1026 = arith.addf %1021, %1025 : vector<8x128xf32>
    %1027 = vector.extract_strided_slice %740 {offsets = [2, 0], sizes = [1, 128], strides = [1, 1]} : vector<8x128xf32> to vector<1x128xf32>
    %1028 = vector.shape_cast %1027 : vector<1x128xf32> to vector<1x128xf32>
    %1029 = vector.broadcast %1028 : vector<1x128xf32> to vector<8x128xf32>
    %1030 = arith.mulf %1029, %366 : vector<8x128xf32>
    %1031 = arith.addf %1026, %1030 : vector<8x128xf32>
    %1032 = vector.extract_strided_slice %763 {offsets = [2, 0], sizes = [1, 128], strides = [1, 1]} : vector<8x128xf32> to vector<1x128xf32>
    %1033 = vector.shape_cast %1032 : vector<1x128xf32> to vector<1x128xf32>
    %1034 = vector.broadcast %1033 : vector<1x128xf32> to vector<8x128xf32>
    %1035 = arith.mulf %1034, %392 : vector<8x128xf32>
    %1036 = arith.addf %1031, %1035 : vector<8x128xf32>
    %1037 = vector.extract_strided_slice %786 {offsets = [2, 0], sizes = [1, 128], strides = [1, 1]} : vector<8x128xf32> to vector<1x128xf32>
    %1038 = vector.shape_cast %1037 : vector<1x128xf32> to vector<1x128xf32>
    %1039 = vector.broadcast %1038 : vector<1x128xf32> to vector<8x128xf32>
    %1040 = arith.mulf %1039, %418 : vector<8x128xf32>
    %1041 = arith.addf %1036, %1040 : vector<8x128xf32>
    %c2_91 = arith.constant 2 : index
    %c0_92 = arith.constant 0 : index
    %c0_93 = arith.constant 0 : index
    %1042 = vector.load %arg5[%c2_91, %c0_92, %c0_93] : memref<8x8x1xf32, #tpu.memory_space<vmem>>, vector<1x8x1xf32>
    %1043 = vector.shape_cast %1042 : vector<1x8x1xf32> to vector<8x1xf32>
    %1044 = vector.broadcast %1043 : vector<8x1xf32> to vector<8x128xf32>
    %1045 = arith.addf %1041, %1044 : vector<8x128xf32>
    %1046 = arith.negf %1045 : vector<8x128xf32>
    %1047 = math.exp %1046 : vector<8x128xf32>
    %cst_94 = arith.constant 1.000000e+00 : f32
    %1048 = vector.broadcast %cst_94 : f32 to vector<8x128xf32>
    %1049 = arith.addf %1048, %1047 : vector<8x128xf32>
    %1050 = arith.divf %1048, %1049 : vector<8x128xf32>
    %1051 = vector.extract_strided_slice %441 {offsets = [3, 0], sizes = [1, 128], strides = [1, 1]} : vector<8x128xf32> to vector<1x128xf32>
    %1052 = vector.shape_cast %1051 : vector<1x128xf32> to vector<1x128xf32>
    %1053 = vector.broadcast %1052 : vector<1x128xf32> to vector<8x128xf32>
    %1054 = arith.mulf %1053, %28 : vector<8x128xf32>
    %1055 = vector.extract_strided_slice %464 {offsets = [3, 0], sizes = [1, 128], strides = [1, 1]} : vector<8x128xf32> to vector<1x128xf32>
    %1056 = vector.shape_cast %1055 : vector<1x128xf32> to vector<1x128xf32>
    %1057 = vector.broadcast %1056 : vector<1x128xf32> to vector<8x128xf32>
    %1058 = arith.mulf %1057, %54 : vector<8x128xf32>
    %1059 = arith.addf %1054, %1058 : vector<8x128xf32>
    %1060 = vector.extract_strided_slice %487 {offsets = [3, 0], sizes = [1, 128], strides = [1, 1]} : vector<8x128xf32> to vector<1x128xf32>
    %1061 = vector.shape_cast %1060 : vector<1x128xf32> to vector<1x128xf32>
    %1062 = vector.broadcast %1061 : vector<1x128xf32> to vector<8x128xf32>
    %1063 = arith.mulf %1062, %80 : vector<8x128xf32>
    %1064 = arith.addf %1059, %1063 : vector<8x128xf32>
    %1065 = vector.extract_strided_slice %510 {offsets = [3, 0], sizes = [1, 128], strides = [1, 1]} : vector<8x128xf32> to vector<1x128xf32>
    %1066 = vector.shape_cast %1065 : vector<1x128xf32> to vector<1x128xf32>
    %1067 = vector.broadcast %1066 : vector<1x128xf32> to vector<8x128xf32>
    %1068 = arith.mulf %1067, %106 : vector<8x128xf32>
    %1069 = arith.addf %1064, %1068 : vector<8x128xf32>
    %1070 = vector.extract_strided_slice %533 {offsets = [3, 0], sizes = [1, 128], strides = [1, 1]} : vector<8x128xf32> to vector<1x128xf32>
    %1071 = vector.shape_cast %1070 : vector<1x128xf32> to vector<1x128xf32>
    %1072 = vector.broadcast %1071 : vector<1x128xf32> to vector<8x128xf32>
    %1073 = arith.mulf %1072, %132 : vector<8x128xf32>
    %1074 = arith.addf %1069, %1073 : vector<8x128xf32>
    %1075 = vector.extract_strided_slice %556 {offsets = [3, 0], sizes = [1, 128], strides = [1, 1]} : vector<8x128xf32> to vector<1x128xf32>
    %1076 = vector.shape_cast %1075 : vector<1x128xf32> to vector<1x128xf32>
    %1077 = vector.broadcast %1076 : vector<1x128xf32> to vector<8x128xf32>
    %1078 = arith.mulf %1077, %158 : vector<8x128xf32>
    %1079 = arith.addf %1074, %1078 : vector<8x128xf32>
    %1080 = vector.extract_strided_slice %579 {offsets = [3, 0], sizes = [1, 128], strides = [1, 1]} : vector<8x128xf32> to vector<1x128xf32>
    %1081 = vector.shape_cast %1080 : vector<1x128xf32> to vector<1x128xf32>
    %1082 = vector.broadcast %1081 : vector<1x128xf32> to vector<8x128xf32>
    %1083 = arith.mulf %1082, %184 : vector<8x128xf32>
    %1084 = arith.addf %1079, %1083 : vector<8x128xf32>
    %1085 = vector.extract_strided_slice %602 {offsets = [3, 0], sizes = [1, 128], strides = [1, 1]} : vector<8x128xf32> to vector<1x128xf32>
    %1086 = vector.shape_cast %1085 : vector<1x128xf32> to vector<1x128xf32>
    %1087 = vector.broadcast %1086 : vector<1x128xf32> to vector<8x128xf32>
    %1088 = arith.mulf %1087, %210 : vector<8x128xf32>
    %1089 = arith.addf %1084, %1088 : vector<8x128xf32>
    %1090 = vector.extract_strided_slice %625 {offsets = [3, 0], sizes = [1, 128], strides = [1, 1]} : vector<8x128xf32> to vector<1x128xf32>
    %1091 = vector.shape_cast %1090 : vector<1x128xf32> to vector<1x128xf32>
    %1092 = vector.broadcast %1091 : vector<1x128xf32> to vector<8x128xf32>
    %1093 = arith.mulf %1092, %236 : vector<8x128xf32>
    %1094 = arith.addf %1089, %1093 : vector<8x128xf32>
    %1095 = vector.extract_strided_slice %648 {offsets = [3, 0], sizes = [1, 128], strides = [1, 1]} : vector<8x128xf32> to vector<1x128xf32>
    %1096 = vector.shape_cast %1095 : vector<1x128xf32> to vector<1x128xf32>
    %1097 = vector.broadcast %1096 : vector<1x128xf32> to vector<8x128xf32>
    %1098 = arith.mulf %1097, %262 : vector<8x128xf32>
    %1099 = arith.addf %1094, %1098 : vector<8x128xf32>
    %1100 = vector.extract_strided_slice %671 {offsets = [3, 0], sizes = [1, 128], strides = [1, 1]} : vector<8x128xf32> to vector<1x128xf32>
    %1101 = vector.shape_cast %1100 : vector<1x128xf32> to vector<1x128xf32>
    %1102 = vector.broadcast %1101 : vector<1x128xf32> to vector<8x128xf32>
    %1103 = arith.mulf %1102, %288 : vector<8x128xf32>
    %1104 = arith.addf %1099, %1103 : vector<8x128xf32>
    %1105 = vector.extract_strided_slice %694 {offsets = [3, 0], sizes = [1, 128], strides = [1, 1]} : vector<8x128xf32> to vector<1x128xf32>
    %1106 = vector.shape_cast %1105 : vector<1x128xf32> to vector<1x128xf32>
    %1107 = vector.broadcast %1106 : vector<1x128xf32> to vector<8x128xf32>
    %1108 = arith.mulf %1107, %314 : vector<8x128xf32>
    %1109 = arith.addf %1104, %1108 : vector<8x128xf32>
    %1110 = vector.extract_strided_slice %717 {offsets = [3, 0], sizes = [1, 128], strides = [1, 1]} : vector<8x128xf32> to vector<1x128xf32>
    %1111 = vector.shape_cast %1110 : vector<1x128xf32> to vector<1x128xf32>
    %1112 = vector.broadcast %1111 : vector<1x128xf32> to vector<8x128xf32>
    %1113 = arith.mulf %1112, %340 : vector<8x128xf32>
    %1114 = arith.addf %1109, %1113 : vector<8x128xf32>
    %1115 = vector.extract_strided_slice %740 {offsets = [3, 0], sizes = [1, 128], strides = [1, 1]} : vector<8x128xf32> to vector<1x128xf32>
    %1116 = vector.shape_cast %1115 : vector<1x128xf32> to vector<1x128xf32>
    %1117 = vector.broadcast %1116 : vector<1x128xf32> to vector<8x128xf32>
    %1118 = arith.mulf %1117, %366 : vector<8x128xf32>
    %1119 = arith.addf %1114, %1118 : vector<8x128xf32>
    %1120 = vector.extract_strided_slice %763 {offsets = [3, 0], sizes = [1, 128], strides = [1, 1]} : vector<8x128xf32> to vector<1x128xf32>
    %1121 = vector.shape_cast %1120 : vector<1x128xf32> to vector<1x128xf32>
    %1122 = vector.broadcast %1121 : vector<1x128xf32> to vector<8x128xf32>
    %1123 = arith.mulf %1122, %392 : vector<8x128xf32>
    %1124 = arith.addf %1119, %1123 : vector<8x128xf32>
    %1125 = vector.extract_strided_slice %786 {offsets = [3, 0], sizes = [1, 128], strides = [1, 1]} : vector<8x128xf32> to vector<1x128xf32>
    %1126 = vector.shape_cast %1125 : vector<1x128xf32> to vector<1x128xf32>
    %1127 = vector.broadcast %1126 : vector<1x128xf32> to vector<8x128xf32>
    %1128 = arith.mulf %1127, %418 : vector<8x128xf32>
    %1129 = arith.addf %1124, %1128 : vector<8x128xf32>
    %c3_95 = arith.constant 3 : index
    %c0_96 = arith.constant 0 : index
    %c0_97 = arith.constant 0 : index
    %1130 = vector.load %arg5[%c3_95, %c0_96, %c0_97] : memref<8x8x1xf32, #tpu.memory_space<vmem>>, vector<1x8x1xf32>
    %1131 = vector.shape_cast %1130 : vector<1x8x1xf32> to vector<8x1xf32>
    %1132 = vector.broadcast %1131 : vector<8x1xf32> to vector<8x128xf32>
    %1133 = arith.addf %1129, %1132 : vector<8x128xf32>
    %1134 = arith.negf %1133 : vector<8x128xf32>
    %1135 = math.exp %1134 : vector<8x128xf32>
    %cst_98 = arith.constant 1.000000e+00 : f32
    %1136 = vector.broadcast %cst_98 : f32 to vector<8x128xf32>
    %1137 = arith.addf %1136, %1135 : vector<8x128xf32>
    %1138 = arith.divf %1136, %1137 : vector<8x128xf32>
    %1139 = vector.extract_strided_slice %441 {offsets = [4, 0], sizes = [1, 128], strides = [1, 1]} : vector<8x128xf32> to vector<1x128xf32>
    %1140 = vector.shape_cast %1139 : vector<1x128xf32> to vector<1x128xf32>
    %1141 = vector.broadcast %1140 : vector<1x128xf32> to vector<8x128xf32>
    %1142 = arith.mulf %1141, %28 : vector<8x128xf32>
    %1143 = vector.extract_strided_slice %464 {offsets = [4, 0], sizes = [1, 128], strides = [1, 1]} : vector<8x128xf32> to vector<1x128xf32>
    %1144 = vector.shape_cast %1143 : vector<1x128xf32> to vector<1x128xf32>
    %1145 = vector.broadcast %1144 : vector<1x128xf32> to vector<8x128xf32>
    %1146 = arith.mulf %1145, %54 : vector<8x128xf32>
    %1147 = arith.addf %1142, %1146 : vector<8x128xf32>
    %1148 = vector.extract_strided_slice %487 {offsets = [4, 0], sizes = [1, 128], strides = [1, 1]} : vector<8x128xf32> to vector<1x128xf32>
    %1149 = vector.shape_cast %1148 : vector<1x128xf32> to vector<1x128xf32>
    %1150 = vector.broadcast %1149 : vector<1x128xf32> to vector<8x128xf32>
    %1151 = arith.mulf %1150, %80 : vector<8x128xf32>
    %1152 = arith.addf %1147, %1151 : vector<8x128xf32>
    %1153 = vector.extract_strided_slice %510 {offsets = [4, 0], sizes = [1, 128], strides = [1, 1]} : vector<8x128xf32> to vector<1x128xf32>
    %1154 = vector.shape_cast %1153 : vector<1x128xf32> to vector<1x128xf32>
    %1155 = vector.broadcast %1154 : vector<1x128xf32> to vector<8x128xf32>
    %1156 = arith.mulf %1155, %106 : vector<8x128xf32>
    %1157 = arith.addf %1152, %1156 : vector<8x128xf32>
    %1158 = vector.extract_strided_slice %533 {offsets = [4, 0], sizes = [1, 128], strides = [1, 1]} : vector<8x128xf32> to vector<1x128xf32>
    %1159 = vector.shape_cast %1158 : vector<1x128xf32> to vector<1x128xf32>
    %1160 = vector.broadcast %1159 : vector<1x128xf32> to vector<8x128xf32>
    %1161 = arith.mulf %1160, %132 : vector<8x128xf32>
    %1162 = arith.addf %1157, %1161 : vector<8x128xf32>
    %1163 = vector.extract_strided_slice %556 {offsets = [4, 0], sizes = [1, 128], strides = [1, 1]} : vector<8x128xf32> to vector<1x128xf32>
    %1164 = vector.shape_cast %1163 : vector<1x128xf32> to vector<1x128xf32>
    %1165 = vector.broadcast %1164 : vector<1x128xf32> to vector<8x128xf32>
    %1166 = arith.mulf %1165, %158 : vector<8x128xf32>
    %1167 = arith.addf %1162, %1166 : vector<8x128xf32>
    %1168 = vector.extract_strided_slice %579 {offsets = [4, 0], sizes = [1, 128], strides = [1, 1]} : vector<8x128xf32> to vector<1x128xf32>
    %1169 = vector.shape_cast %1168 : vector<1x128xf32> to vector<1x128xf32>
    %1170 = vector.broadcast %1169 : vector<1x128xf32> to vector<8x128xf32>
    %1171 = arith.mulf %1170, %184 : vector<8x128xf32>
    %1172 = arith.addf %1167, %1171 : vector<8x128xf32>
    %1173 = vector.extract_strided_slice %602 {offsets = [4, 0], sizes = [1, 128], strides = [1, 1]} : vector<8x128xf32> to vector<1x128xf32>
    %1174 = vector.shape_cast %1173 : vector<1x128xf32> to vector<1x128xf32>
    %1175 = vector.broadcast %1174 : vector<1x128xf32> to vector<8x128xf32>
    %1176 = arith.mulf %1175, %210 : vector<8x128xf32>
    %1177 = arith.addf %1172, %1176 : vector<8x128xf32>
    %1178 = vector.extract_strided_slice %625 {offsets = [4, 0], sizes = [1, 128], strides = [1, 1]} : vector<8x128xf32> to vector<1x128xf32>
    %1179 = vector.shape_cast %1178 : vector<1x128xf32> to vector<1x128xf32>
    %1180 = vector.broadcast %1179 : vector<1x128xf32> to vector<8x128xf32>
    %1181 = arith.mulf %1180, %236 : vector<8x128xf32>
    %1182 = arith.addf %1177, %1181 : vector<8x128xf32>
    %1183 = vector.extract_strided_slice %648 {offsets = [4, 0], sizes = [1, 128], strides = [1, 1]} : vector<8x128xf32> to vector<1x128xf32>
    %1184 = vector.shape_cast %1183 : vector<1x128xf32> to vector<1x128xf32>
    %1185 = vector.broadcast %1184 : vector<1x128xf32> to vector<8x128xf32>
    %1186 = arith.mulf %1185, %262 : vector<8x128xf32>
    %1187 = arith.addf %1182, %1186 : vector<8x128xf32>
    %1188 = vector.extract_strided_slice %671 {offsets = [4, 0], sizes = [1, 128], strides = [1, 1]} : vector<8x128xf32> to vector<1x128xf32>
    %1189 = vector.shape_cast %1188 : vector<1x128xf32> to vector<1x128xf32>
    %1190 = vector.broadcast %1189 : vector<1x128xf32> to vector<8x128xf32>
    %1191 = arith.mulf %1190, %288 : vector<8x128xf32>
    %1192 = arith.addf %1187, %1191 : vector<8x128xf32>
    %1193 = vector.extract_strided_slice %694 {offsets = [4, 0], sizes = [1, 128], strides = [1, 1]} : vector<8x128xf32> to vector<1x128xf32>
    %1194 = vector.shape_cast %1193 : vector<1x128xf32> to vector<1x128xf32>
    %1195 = vector.broadcast %1194 : vector<1x128xf32> to vector<8x128xf32>
    %1196 = arith.mulf %1195, %314 : vector<8x128xf32>
    %1197 = arith.addf %1192, %1196 : vector<8x128xf32>
    %1198 = vector.extract_strided_slice %717 {offsets = [4, 0], sizes = [1, 128], strides = [1, 1]} : vector<8x128xf32> to vector<1x128xf32>
    %1199 = vector.shape_cast %1198 : vector<1x128xf32> to vector<1x128xf32>
    %1200 = vector.broadcast %1199 : vector<1x128xf32> to vector<8x128xf32>
    %1201 = arith.mulf %1200, %340 : vector<8x128xf32>
    %1202 = arith.addf %1197, %1201 : vector<8x128xf32>
    %1203 = vector.extract_strided_slice %740 {offsets = [4, 0], sizes = [1, 128], strides = [1, 1]} : vector<8x128xf32> to vector<1x128xf32>
    %1204 = vector.shape_cast %1203 : vector<1x128xf32> to vector<1x128xf32>
    %1205 = vector.broadcast %1204 : vector<1x128xf32> to vector<8x128xf32>
    %1206 = arith.mulf %1205, %366 : vector<8x128xf32>
    %1207 = arith.addf %1202, %1206 : vector<8x128xf32>
    %1208 = vector.extract_strided_slice %763 {offsets = [4, 0], sizes = [1, 128], strides = [1, 1]} : vector<8x128xf32> to vector<1x128xf32>
    %1209 = vector.shape_cast %1208 : vector<1x128xf32> to vector<1x128xf32>
    %1210 = vector.broadcast %1209 : vector<1x128xf32> to vector<8x128xf32>
    %1211 = arith.mulf %1210, %392 : vector<8x128xf32>
    %1212 = arith.addf %1207, %1211 : vector<8x128xf32>
    %1213 = vector.extract_strided_slice %786 {offsets = [4, 0], sizes = [1, 128], strides = [1, 1]} : vector<8x128xf32> to vector<1x128xf32>
    %1214 = vector.shape_cast %1213 : vector<1x128xf32> to vector<1x128xf32>
    %1215 = vector.broadcast %1214 : vector<1x128xf32> to vector<8x128xf32>
    %1216 = arith.mulf %1215, %418 : vector<8x128xf32>
    %1217 = arith.addf %1212, %1216 : vector<8x128xf32>
    %c4_99 = arith.constant 4 : index
    %c0_100 = arith.constant 0 : index
    %c0_101 = arith.constant 0 : index
    %1218 = vector.load %arg5[%c4_99, %c0_100, %c0_101] : memref<8x8x1xf32, #tpu.memory_space<vmem>>, vector<1x8x1xf32>
    %1219 = vector.shape_cast %1218 : vector<1x8x1xf32> to vector<8x1xf32>
    %1220 = vector.broadcast %1219 : vector<8x1xf32> to vector<8x128xf32>
    %1221 = arith.addf %1217, %1220 : vector<8x128xf32>
    %1222 = arith.negf %1221 : vector<8x128xf32>
    %1223 = math.exp %1222 : vector<8x128xf32>
    %cst_102 = arith.constant 1.000000e+00 : f32
    %1224 = vector.broadcast %cst_102 : f32 to vector<8x128xf32>
    %1225 = arith.addf %1224, %1223 : vector<8x128xf32>
    %1226 = arith.divf %1224, %1225 : vector<8x128xf32>
    %1227 = vector.extract_strided_slice %441 {offsets = [5, 0], sizes = [1, 128], strides = [1, 1]} : vector<8x128xf32> to vector<1x128xf32>
    %1228 = vector.shape_cast %1227 : vector<1x128xf32> to vector<1x128xf32>
    %1229 = vector.broadcast %1228 : vector<1x128xf32> to vector<8x128xf32>
    %1230 = arith.mulf %1229, %28 : vector<8x128xf32>
    %1231 = vector.extract_strided_slice %464 {offsets = [5, 0], sizes = [1, 128], strides = [1, 1]} : vector<8x128xf32> to vector<1x128xf32>
    %1232 = vector.shape_cast %1231 : vector<1x128xf32> to vector<1x128xf32>
    %1233 = vector.broadcast %1232 : vector<1x128xf32> to vector<8x128xf32>
    %1234 = arith.mulf %1233, %54 : vector<8x128xf32>
    %1235 = arith.addf %1230, %1234 : vector<8x128xf32>
    %1236 = vector.extract_strided_slice %487 {offsets = [5, 0], sizes = [1, 128], strides = [1, 1]} : vector<8x128xf32> to vector<1x128xf32>
    %1237 = vector.shape_cast %1236 : vector<1x128xf32> to vector<1x128xf32>
    %1238 = vector.broadcast %1237 : vector<1x128xf32> to vector<8x128xf32>
    %1239 = arith.mulf %1238, %80 : vector<8x128xf32>
    %1240 = arith.addf %1235, %1239 : vector<8x128xf32>
    %1241 = vector.extract_strided_slice %510 {offsets = [5, 0], sizes = [1, 128], strides = [1, 1]} : vector<8x128xf32> to vector<1x128xf32>
    %1242 = vector.shape_cast %1241 : vector<1x128xf32> to vector<1x128xf32>
    %1243 = vector.broadcast %1242 : vector<1x128xf32> to vector<8x128xf32>
    %1244 = arith.mulf %1243, %106 : vector<8x128xf32>
    %1245 = arith.addf %1240, %1244 : vector<8x128xf32>
    %1246 = vector.extract_strided_slice %533 {offsets = [5, 0], sizes = [1, 128], strides = [1, 1]} : vector<8x128xf32> to vector<1x128xf32>
    %1247 = vector.shape_cast %1246 : vector<1x128xf32> to vector<1x128xf32>
    %1248 = vector.broadcast %1247 : vector<1x128xf32> to vector<8x128xf32>
    %1249 = arith.mulf %1248, %132 : vector<8x128xf32>
    %1250 = arith.addf %1245, %1249 : vector<8x128xf32>
    %1251 = vector.extract_strided_slice %556 {offsets = [5, 0], sizes = [1, 128], strides = [1, 1]} : vector<8x128xf32> to vector<1x128xf32>
    %1252 = vector.shape_cast %1251 : vector<1x128xf32> to vector<1x128xf32>
    %1253 = vector.broadcast %1252 : vector<1x128xf32> to vector<8x128xf32>
    %1254 = arith.mulf %1253, %158 : vector<8x128xf32>
    %1255 = arith.addf %1250, %1254 : vector<8x128xf32>
    %1256 = vector.extract_strided_slice %579 {offsets = [5, 0], sizes = [1, 128], strides = [1, 1]} : vector<8x128xf32> to vector<1x128xf32>
    %1257 = vector.shape_cast %1256 : vector<1x128xf32> to vector<1x128xf32>
    %1258 = vector.broadcast %1257 : vector<1x128xf32> to vector<8x128xf32>
    %1259 = arith.mulf %1258, %184 : vector<8x128xf32>
    %1260 = arith.addf %1255, %1259 : vector<8x128xf32>
    %1261 = vector.extract_strided_slice %602 {offsets = [5, 0], sizes = [1, 128], strides = [1, 1]} : vector<8x128xf32> to vector<1x128xf32>
    %1262 = vector.shape_cast %1261 : vector<1x128xf32> to vector<1x128xf32>
    %1263 = vector.broadcast %1262 : vector<1x128xf32> to vector<8x128xf32>
    %1264 = arith.mulf %1263, %210 : vector<8x128xf32>
    %1265 = arith.addf %1260, %1264 : vector<8x128xf32>
    %1266 = vector.extract_strided_slice %625 {offsets = [5, 0], sizes = [1, 128], strides = [1, 1]} : vector<8x128xf32> to vector<1x128xf32>
    %1267 = vector.shape_cast %1266 : vector<1x128xf32> to vector<1x128xf32>
    %1268 = vector.broadcast %1267 : vector<1x128xf32> to vector<8x128xf32>
    %1269 = arith.mulf %1268, %236 : vector<8x128xf32>
    %1270 = arith.addf %1265, %1269 : vector<8x128xf32>
    %1271 = vector.extract_strided_slice %648 {offsets = [5, 0], sizes = [1, 128], strides = [1, 1]} : vector<8x128xf32> to vector<1x128xf32>
    %1272 = vector.shape_cast %1271 : vector<1x128xf32> to vector<1x128xf32>
    %1273 = vector.broadcast %1272 : vector<1x128xf32> to vector<8x128xf32>
    %1274 = arith.mulf %1273, %262 : vector<8x128xf32>
    %1275 = arith.addf %1270, %1274 : vector<8x128xf32>
    %1276 = vector.extract_strided_slice %671 {offsets = [5, 0], sizes = [1, 128], strides = [1, 1]} : vector<8x128xf32> to vector<1x128xf32>
    %1277 = vector.shape_cast %1276 : vector<1x128xf32> to vector<1x128xf32>
    %1278 = vector.broadcast %1277 : vector<1x128xf32> to vector<8x128xf32>
    %1279 = arith.mulf %1278, %288 : vector<8x128xf32>
    %1280 = arith.addf %1275, %1279 : vector<8x128xf32>
    %1281 = vector.extract_strided_slice %694 {offsets = [5, 0], sizes = [1, 128], strides = [1, 1]} : vector<8x128xf32> to vector<1x128xf32>
    %1282 = vector.shape_cast %1281 : vector<1x128xf32> to vector<1x128xf32>
    %1283 = vector.broadcast %1282 : vector<1x128xf32> to vector<8x128xf32>
    %1284 = arith.mulf %1283, %314 : vector<8x128xf32>
    %1285 = arith.addf %1280, %1284 : vector<8x128xf32>
    %1286 = vector.extract_strided_slice %717 {offsets = [5, 0], sizes = [1, 128], strides = [1, 1]} : vector<8x128xf32> to vector<1x128xf32>
    %1287 = vector.shape_cast %1286 : vector<1x128xf32> to vector<1x128xf32>
    %1288 = vector.broadcast %1287 : vector<1x128xf32> to vector<8x128xf32>
    %1289 = arith.mulf %1288, %340 : vector<8x128xf32>
    %1290 = arith.addf %1285, %1289 : vector<8x128xf32>
    %1291 = vector.extract_strided_slice %740 {offsets = [5, 0], sizes = [1, 128], strides = [1, 1]} : vector<8x128xf32> to vector<1x128xf32>
    %1292 = vector.shape_cast %1291 : vector<1x128xf32> to vector<1x128xf32>
    %1293 = vector.broadcast %1292 : vector<1x128xf32> to vector<8x128xf32>
    %1294 = arith.mulf %1293, %366 : vector<8x128xf32>
    %1295 = arith.addf %1290, %1294 : vector<8x128xf32>
    %1296 = vector.extract_strided_slice %763 {offsets = [5, 0], sizes = [1, 128], strides = [1, 1]} : vector<8x128xf32> to vector<1x128xf32>
    %1297 = vector.shape_cast %1296 : vector<1x128xf32> to vector<1x128xf32>
    %1298 = vector.broadcast %1297 : vector<1x128xf32> to vector<8x128xf32>
    %1299 = arith.mulf %1298, %392 : vector<8x128xf32>
    %1300 = arith.addf %1295, %1299 : vector<8x128xf32>
    %1301 = vector.extract_strided_slice %786 {offsets = [5, 0], sizes = [1, 128], strides = [1, 1]} : vector<8x128xf32> to vector<1x128xf32>
    %1302 = vector.shape_cast %1301 : vector<1x128xf32> to vector<1x128xf32>
    %1303 = vector.broadcast %1302 : vector<1x128xf32> to vector<8x128xf32>
    %1304 = arith.mulf %1303, %418 : vector<8x128xf32>
    %1305 = arith.addf %1300, %1304 : vector<8x128xf32>
    %c5_103 = arith.constant 5 : index
    %c0_104 = arith.constant 0 : index
    %c0_105 = arith.constant 0 : index
    %1306 = vector.load %arg5[%c5_103, %c0_104, %c0_105] : memref<8x8x1xf32, #tpu.memory_space<vmem>>, vector<1x8x1xf32>
    %1307 = vector.shape_cast %1306 : vector<1x8x1xf32> to vector<8x1xf32>
    %1308 = vector.broadcast %1307 : vector<8x1xf32> to vector<8x128xf32>
    %1309 = arith.addf %1305, %1308 : vector<8x128xf32>
    %1310 = arith.negf %1309 : vector<8x128xf32>
    %1311 = math.exp %1310 : vector<8x128xf32>
    %cst_106 = arith.constant 1.000000e+00 : f32
    %1312 = vector.broadcast %cst_106 : f32 to vector<8x128xf32>
    %1313 = arith.addf %1312, %1311 : vector<8x128xf32>
    %1314 = arith.divf %1312, %1313 : vector<8x128xf32>
    %1315 = vector.extract_strided_slice %441 {offsets = [6, 0], sizes = [1, 128], strides = [1, 1]} : vector<8x128xf32> to vector<1x128xf32>
    %1316 = vector.shape_cast %1315 : vector<1x128xf32> to vector<1x128xf32>
    %1317 = vector.broadcast %1316 : vector<1x128xf32> to vector<8x128xf32>
    %1318 = arith.mulf %1317, %28 : vector<8x128xf32>
    %1319 = vector.extract_strided_slice %464 {offsets = [6, 0], sizes = [1, 128], strides = [1, 1]} : vector<8x128xf32> to vector<1x128xf32>
    %1320 = vector.shape_cast %1319 : vector<1x128xf32> to vector<1x128xf32>
    %1321 = vector.broadcast %1320 : vector<1x128xf32> to vector<8x128xf32>
    %1322 = arith.mulf %1321, %54 : vector<8x128xf32>
    %1323 = arith.addf %1318, %1322 : vector<8x128xf32>
    %1324 = vector.extract_strided_slice %487 {offsets = [6, 0], sizes = [1, 128], strides = [1, 1]} : vector<8x128xf32> to vector<1x128xf32>
    %1325 = vector.shape_cast %1324 : vector<1x128xf32> to vector<1x128xf32>
    %1326 = vector.broadcast %1325 : vector<1x128xf32> to vector<8x128xf32>
    %1327 = arith.mulf %1326, %80 : vector<8x128xf32>
    %1328 = arith.addf %1323, %1327 : vector<8x128xf32>
    %1329 = vector.extract_strided_slice %510 {offsets = [6, 0], sizes = [1, 128], strides = [1, 1]} : vector<8x128xf32> to vector<1x128xf32>
    %1330 = vector.shape_cast %1329 : vector<1x128xf32> to vector<1x128xf32>
    %1331 = vector.broadcast %1330 : vector<1x128xf32> to vector<8x128xf32>
    %1332 = arith.mulf %1331, %106 : vector<8x128xf32>
    %1333 = arith.addf %1328, %1332 : vector<8x128xf32>
    %1334 = vector.extract_strided_slice %533 {offsets = [6, 0], sizes = [1, 128], strides = [1, 1]} : vector<8x128xf32> to vector<1x128xf32>
    %1335 = vector.shape_cast %1334 : vector<1x128xf32> to vector<1x128xf32>
    %1336 = vector.broadcast %1335 : vector<1x128xf32> to vector<8x128xf32>
    %1337 = arith.mulf %1336, %132 : vector<8x128xf32>
    %1338 = arith.addf %1333, %1337 : vector<8x128xf32>
    %1339 = vector.extract_strided_slice %556 {offsets = [6, 0], sizes = [1, 128], strides = [1, 1]} : vector<8x128xf32> to vector<1x128xf32>
    %1340 = vector.shape_cast %1339 : vector<1x128xf32> to vector<1x128xf32>
    %1341 = vector.broadcast %1340 : vector<1x128xf32> to vector<8x128xf32>
    %1342 = arith.mulf %1341, %158 : vector<8x128xf32>
    %1343 = arith.addf %1338, %1342 : vector<8x128xf32>
    %1344 = vector.extract_strided_slice %579 {offsets = [6, 0], sizes = [1, 128], strides = [1, 1]} : vector<8x128xf32> to vector<1x128xf32>
    %1345 = vector.shape_cast %1344 : vector<1x128xf32> to vector<1x128xf32>
    %1346 = vector.broadcast %1345 : vector<1x128xf32> to vector<8x128xf32>
    %1347 = arith.mulf %1346, %184 : vector<8x128xf32>
    %1348 = arith.addf %1343, %1347 : vector<8x128xf32>
    %1349 = vector.extract_strided_slice %602 {offsets = [6, 0], sizes = [1, 128], strides = [1, 1]} : vector<8x128xf32> to vector<1x128xf32>
    %1350 = vector.shape_cast %1349 : vector<1x128xf32> to vector<1x128xf32>
    %1351 = vector.broadcast %1350 : vector<1x128xf32> to vector<8x128xf32>
    %1352 = arith.mulf %1351, %210 : vector<8x128xf32>
    %1353 = arith.addf %1348, %1352 : vector<8x128xf32>
    %1354 = vector.extract_strided_slice %625 {offsets = [6, 0], sizes = [1, 128], strides = [1, 1]} : vector<8x128xf32> to vector<1x128xf32>
    %1355 = vector.shape_cast %1354 : vector<1x128xf32> to vector<1x128xf32>
    %1356 = vector.broadcast %1355 : vector<1x128xf32> to vector<8x128xf32>
    %1357 = arith.mulf %1356, %236 : vector<8x128xf32>
    %1358 = arith.addf %1353, %1357 : vector<8x128xf32>
    %1359 = vector.extract_strided_slice %648 {offsets = [6, 0], sizes = [1, 128], strides = [1, 1]} : vector<8x128xf32> to vector<1x128xf32>
    %1360 = vector.shape_cast %1359 : vector<1x128xf32> to vector<1x128xf32>
    %1361 = vector.broadcast %1360 : vector<1x128xf32> to vector<8x128xf32>
    %1362 = arith.mulf %1361, %262 : vector<8x128xf32>
    %1363 = arith.addf %1358, %1362 : vector<8x128xf32>
    %1364 = vector.extract_strided_slice %671 {offsets = [6, 0], sizes = [1, 128], strides = [1, 1]} : vector<8x128xf32> to vector<1x128xf32>
    %1365 = vector.shape_cast %1364 : vector<1x128xf32> to vector<1x128xf32>
    %1366 = vector.broadcast %1365 : vector<1x128xf32> to vector<8x128xf32>
    %1367 = arith.mulf %1366, %288 : vector<8x128xf32>
    %1368 = arith.addf %1363, %1367 : vector<8x128xf32>
    %1369 = vector.extract_strided_slice %694 {offsets = [6, 0], sizes = [1, 128], strides = [1, 1]} : vector<8x128xf32> to vector<1x128xf32>
    %1370 = vector.shape_cast %1369 : vector<1x128xf32> to vector<1x128xf32>
    %1371 = vector.broadcast %1370 : vector<1x128xf32> to vector<8x128xf32>
    %1372 = arith.mulf %1371, %314 : vector<8x128xf32>
    %1373 = arith.addf %1368, %1372 : vector<8x128xf32>
    %1374 = vector.extract_strided_slice %717 {offsets = [6, 0], sizes = [1, 128], strides = [1, 1]} : vector<8x128xf32> to vector<1x128xf32>
    %1375 = vector.shape_cast %1374 : vector<1x128xf32> to vector<1x128xf32>
    %1376 = vector.broadcast %1375 : vector<1x128xf32> to vector<8x128xf32>
    %1377 = arith.mulf %1376, %340 : vector<8x128xf32>
    %1378 = arith.addf %1373, %1377 : vector<8x128xf32>
    %1379 = vector.extract_strided_slice %740 {offsets = [6, 0], sizes = [1, 128], strides = [1, 1]} : vector<8x128xf32> to vector<1x128xf32>
    %1380 = vector.shape_cast %1379 : vector<1x128xf32> to vector<1x128xf32>
    %1381 = vector.broadcast %1380 : vector<1x128xf32> to vector<8x128xf32>
    %1382 = arith.mulf %1381, %366 : vector<8x128xf32>
    %1383 = arith.addf %1378, %1382 : vector<8x128xf32>
    %1384 = vector.extract_strided_slice %763 {offsets = [6, 0], sizes = [1, 128], strides = [1, 1]} : vector<8x128xf32> to vector<1x128xf32>
    %1385 = vector.shape_cast %1384 : vector<1x128xf32> to vector<1x128xf32>
    %1386 = vector.broadcast %1385 : vector<1x128xf32> to vector<8x128xf32>
    %1387 = arith.mulf %1386, %392 : vector<8x128xf32>
    %1388 = arith.addf %1383, %1387 : vector<8x128xf32>
    %1389 = vector.extract_strided_slice %786 {offsets = [6, 0], sizes = [1, 128], strides = [1, 1]} : vector<8x128xf32> to vector<1x128xf32>
    %1390 = vector.shape_cast %1389 : vector<1x128xf32> to vector<1x128xf32>
    %1391 = vector.broadcast %1390 : vector<1x128xf32> to vector<8x128xf32>
    %1392 = arith.mulf %1391, %418 : vector<8x128xf32>
    %1393 = arith.addf %1388, %1392 : vector<8x128xf32>
    %c6_107 = arith.constant 6 : index
    %c0_108 = arith.constant 0 : index
    %c0_109 = arith.constant 0 : index
    %1394 = vector.load %arg5[%c6_107, %c0_108, %c0_109] : memref<8x8x1xf32, #tpu.memory_space<vmem>>, vector<1x8x1xf32>
    %1395 = vector.shape_cast %1394 : vector<1x8x1xf32> to vector<8x1xf32>
    %1396 = vector.broadcast %1395 : vector<8x1xf32> to vector<8x128xf32>
    %1397 = arith.addf %1393, %1396 : vector<8x128xf32>
    %1398 = arith.negf %1397 : vector<8x128xf32>
    %1399 = math.exp %1398 : vector<8x128xf32>
    %cst_110 = arith.constant 1.000000e+00 : f32
    %1400 = vector.broadcast %cst_110 : f32 to vector<8x128xf32>
    %1401 = arith.addf %1400, %1399 : vector<8x128xf32>
    %1402 = arith.divf %1400, %1401 : vector<8x128xf32>
    %1403 = vector.extract_strided_slice %441 {offsets = [7, 0], sizes = [1, 128], strides = [1, 1]} : vector<8x128xf32> to vector<1x128xf32>
    %1404 = vector.shape_cast %1403 : vector<1x128xf32> to vector<1x128xf32>
    %1405 = vector.broadcast %1404 : vector<1x128xf32> to vector<8x128xf32>
    %1406 = arith.mulf %1405, %28 : vector<8x128xf32>
    %1407 = vector.extract_strided_slice %464 {offsets = [7, 0], sizes = [1, 128], strides = [1, 1]} : vector<8x128xf32> to vector<1x128xf32>
    %1408 = vector.shape_cast %1407 : vector<1x128xf32> to vector<1x128xf32>
    %1409 = vector.broadcast %1408 : vector<1x128xf32> to vector<8x128xf32>
    %1410 = arith.mulf %1409, %54 : vector<8x128xf32>
    %1411 = arith.addf %1406, %1410 : vector<8x128xf32>
    %1412 = vector.extract_strided_slice %487 {offsets = [7, 0], sizes = [1, 128], strides = [1, 1]} : vector<8x128xf32> to vector<1x128xf32>
    %1413 = vector.shape_cast %1412 : vector<1x128xf32> to vector<1x128xf32>
    %1414 = vector.broadcast %1413 : vector<1x128xf32> to vector<8x128xf32>
    %1415 = arith.mulf %1414, %80 : vector<8x128xf32>
    %1416 = arith.addf %1411, %1415 : vector<8x128xf32>
    %1417 = vector.extract_strided_slice %510 {offsets = [7, 0], sizes = [1, 128], strides = [1, 1]} : vector<8x128xf32> to vector<1x128xf32>
    %1418 = vector.shape_cast %1417 : vector<1x128xf32> to vector<1x128xf32>
    %1419 = vector.broadcast %1418 : vector<1x128xf32> to vector<8x128xf32>
    %1420 = arith.mulf %1419, %106 : vector<8x128xf32>
    %1421 = arith.addf %1416, %1420 : vector<8x128xf32>
    %1422 = vector.extract_strided_slice %533 {offsets = [7, 0], sizes = [1, 128], strides = [1, 1]} : vector<8x128xf32> to vector<1x128xf32>
    %1423 = vector.shape_cast %1422 : vector<1x128xf32> to vector<1x128xf32>
    %1424 = vector.broadcast %1423 : vector<1x128xf32> to vector<8x128xf32>
    %1425 = arith.mulf %1424, %132 : vector<8x128xf32>
    %1426 = arith.addf %1421, %1425 : vector<8x128xf32>
    %1427 = vector.extract_strided_slice %556 {offsets = [7, 0], sizes = [1, 128], strides = [1, 1]} : vector<8x128xf32> to vector<1x128xf32>
    %1428 = vector.shape_cast %1427 : vector<1x128xf32> to vector<1x128xf32>
    %1429 = vector.broadcast %1428 : vector<1x128xf32> to vector<8x128xf32>
    %1430 = arith.mulf %1429, %158 : vector<8x128xf32>
    %1431 = arith.addf %1426, %1430 : vector<8x128xf32>
    %1432 = vector.extract_strided_slice %579 {offsets = [7, 0], sizes = [1, 128], strides = [1, 1]} : vector<8x128xf32> to vector<1x128xf32>
    %1433 = vector.shape_cast %1432 : vector<1x128xf32> to vector<1x128xf32>
    %1434 = vector.broadcast %1433 : vector<1x128xf32> to vector<8x128xf32>
    %1435 = arith.mulf %1434, %184 : vector<8x128xf32>
    %1436 = arith.addf %1431, %1435 : vector<8x128xf32>
    %1437 = vector.extract_strided_slice %602 {offsets = [7, 0], sizes = [1, 128], strides = [1, 1]} : vector<8x128xf32> to vector<1x128xf32>
    %1438 = vector.shape_cast %1437 : vector<1x128xf32> to vector<1x128xf32>
    %1439 = vector.broadcast %1438 : vector<1x128xf32> to vector<8x128xf32>
    %1440 = arith.mulf %1439, %210 : vector<8x128xf32>
    %1441 = arith.addf %1436, %1440 : vector<8x128xf32>
    %1442 = vector.extract_strided_slice %625 {offsets = [7, 0], sizes = [1, 128], strides = [1, 1]} : vector<8x128xf32> to vector<1x128xf32>
    %1443 = vector.shape_cast %1442 : vector<1x128xf32> to vector<1x128xf32>
    %1444 = vector.broadcast %1443 : vector<1x128xf32> to vector<8x128xf32>
    %1445 = arith.mulf %1444, %236 : vector<8x128xf32>
    %1446 = arith.addf %1441, %1445 : vector<8x128xf32>
    %1447 = vector.extract_strided_slice %648 {offsets = [7, 0], sizes = [1, 128], strides = [1, 1]} : vector<8x128xf32> to vector<1x128xf32>
    %1448 = vector.shape_cast %1447 : vector<1x128xf32> to vector<1x128xf32>
    %1449 = vector.broadcast %1448 : vector<1x128xf32> to vector<8x128xf32>
    %1450 = arith.mulf %1449, %262 : vector<8x128xf32>
    %1451 = arith.addf %1446, %1450 : vector<8x128xf32>
    %1452 = vector.extract_strided_slice %671 {offsets = [7, 0], sizes = [1, 128], strides = [1, 1]} : vector<8x128xf32> to vector<1x128xf32>
    %1453 = vector.shape_cast %1452 : vector<1x128xf32> to vector<1x128xf32>
    %1454 = vector.broadcast %1453 : vector<1x128xf32> to vector<8x128xf32>
    %1455 = arith.mulf %1454, %288 : vector<8x128xf32>
    %1456 = arith.addf %1451, %1455 : vector<8x128xf32>
    %1457 = vector.extract_strided_slice %694 {offsets = [7, 0], sizes = [1, 128], strides = [1, 1]} : vector<8x128xf32> to vector<1x128xf32>
    %1458 = vector.shape_cast %1457 : vector<1x128xf32> to vector<1x128xf32>
    %1459 = vector.broadcast %1458 : vector<1x128xf32> to vector<8x128xf32>
    %1460 = arith.mulf %1459, %314 : vector<8x128xf32>
    %1461 = arith.addf %1456, %1460 : vector<8x128xf32>
    %1462 = vector.extract_strided_slice %717 {offsets = [7, 0], sizes = [1, 128], strides = [1, 1]} : vector<8x128xf32> to vector<1x128xf32>
    %1463 = vector.shape_cast %1462 : vector<1x128xf32> to vector<1x128xf32>
    %1464 = vector.broadcast %1463 : vector<1x128xf32> to vector<8x128xf32>
    %1465 = arith.mulf %1464, %340 : vector<8x128xf32>
    %1466 = arith.addf %1461, %1465 : vector<8x128xf32>
    %1467 = vector.extract_strided_slice %740 {offsets = [7, 0], sizes = [1, 128], strides = [1, 1]} : vector<8x128xf32> to vector<1x128xf32>
    %1468 = vector.shape_cast %1467 : vector<1x128xf32> to vector<1x128xf32>
    %1469 = vector.broadcast %1468 : vector<1x128xf32> to vector<8x128xf32>
    %1470 = arith.mulf %1469, %366 : vector<8x128xf32>
    %1471 = arith.addf %1466, %1470 : vector<8x128xf32>
    %1472 = vector.extract_strided_slice %763 {offsets = [7, 0], sizes = [1, 128], strides = [1, 1]} : vector<8x128xf32> to vector<1x128xf32>
    %1473 = vector.shape_cast %1472 : vector<1x128xf32> to vector<1x128xf32>
    %1474 = vector.broadcast %1473 : vector<1x128xf32> to vector<8x128xf32>
    %1475 = arith.mulf %1474, %392 : vector<8x128xf32>
    %1476 = arith.addf %1471, %1475 : vector<8x128xf32>
    %1477 = vector.extract_strided_slice %786 {offsets = [7, 0], sizes = [1, 128], strides = [1, 1]} : vector<8x128xf32> to vector<1x128xf32>
    %1478 = vector.shape_cast %1477 : vector<1x128xf32> to vector<1x128xf32>
    %1479 = vector.broadcast %1478 : vector<1x128xf32> to vector<8x128xf32>
    %1480 = arith.mulf %1479, %418 : vector<8x128xf32>
    %1481 = arith.addf %1476, %1480 : vector<8x128xf32>
    %c7_111 = arith.constant 7 : index
    %c0_112 = arith.constant 0 : index
    %c0_113 = arith.constant 0 : index
    %1482 = vector.load %arg5[%c7_111, %c0_112, %c0_113] : memref<8x8x1xf32, #tpu.memory_space<vmem>>, vector<1x8x1xf32>
    %1483 = vector.shape_cast %1482 : vector<1x8x1xf32> to vector<8x1xf32>
    %1484 = vector.broadcast %1483 : vector<8x1xf32> to vector<8x128xf32>
    %1485 = arith.addf %1481, %1484 : vector<8x128xf32>
    %1486 = arith.negf %1485 : vector<8x128xf32>
    %1487 = math.exp %1486 : vector<8x128xf32>
    %cst_114 = arith.constant 1.000000e+00 : f32
    %1488 = vector.broadcast %cst_114 : f32 to vector<8x128xf32>
    %1489 = arith.addf %1488, %1487 : vector<8x128xf32>
    %1490 = arith.divf %1488, %1489 : vector<8x128xf32>
    %c0_115 = arith.constant 0 : index
    %1491 = memref.load %arg6[%c0_115] : memref<64xf32, #tpu.memory_space<smem>>
    %1492 = vector.broadcast %1491 : f32 to vector<8x128xf32>
    %1493 = arith.mulf %874, %1492 : vector<8x128xf32>
    %c1_116 = arith.constant 1 : index
    %1494 = memref.load %arg6[%c1_116] : memref<64xf32, #tpu.memory_space<smem>>
    %1495 = vector.broadcast %1494 : f32 to vector<8x128xf32>
    %1496 = arith.mulf %962, %1495 : vector<8x128xf32>
    %1497 = arith.addf %1493, %1496 : vector<8x128xf32>
    %c2_117 = arith.constant 2 : index
    %1498 = memref.load %arg6[%c2_117] : memref<64xf32, #tpu.memory_space<smem>>
    %1499 = vector.broadcast %1498 : f32 to vector<8x128xf32>
    %1500 = arith.mulf %1050, %1499 : vector<8x128xf32>
    %1501 = arith.addf %1497, %1500 : vector<8x128xf32>
    %c3_118 = arith.constant 3 : index
    %1502 = memref.load %arg6[%c3_118] : memref<64xf32, #tpu.memory_space<smem>>
    %1503 = vector.broadcast %1502 : f32 to vector<8x128xf32>
    %1504 = arith.mulf %1138, %1503 : vector<8x128xf32>
    %1505 = arith.addf %1501, %1504 : vector<8x128xf32>
    %c4_119 = arith.constant 4 : index
    %1506 = memref.load %arg6[%c4_119] : memref<64xf32, #tpu.memory_space<smem>>
    %1507 = vector.broadcast %1506 : f32 to vector<8x128xf32>
    %1508 = arith.mulf %1226, %1507 : vector<8x128xf32>
    %1509 = arith.addf %1505, %1508 : vector<8x128xf32>
    %c5_120 = arith.constant 5 : index
    %1510 = memref.load %arg6[%c5_120] : memref<64xf32, #tpu.memory_space<smem>>
    %1511 = vector.broadcast %1510 : f32 to vector<8x128xf32>
    %1512 = arith.mulf %1314, %1511 : vector<8x128xf32>
    %1513 = arith.addf %1509, %1512 : vector<8x128xf32>
    %c6_121 = arith.constant 6 : index
    %1514 = memref.load %arg6[%c6_121] : memref<64xf32, #tpu.memory_space<smem>>
    %1515 = vector.broadcast %1514 : f32 to vector<8x128xf32>
    %1516 = arith.mulf %1402, %1515 : vector<8x128xf32>
    %1517 = arith.addf %1513, %1516 : vector<8x128xf32>
    %c7_122 = arith.constant 7 : index
    %1518 = memref.load %arg6[%c7_122] : memref<64xf32, #tpu.memory_space<smem>>
    %1519 = vector.broadcast %1518 : f32 to vector<8x128xf32>
    %1520 = arith.mulf %1490, %1519 : vector<8x128xf32>
    %1521 = arith.addf %1517, %1520 : vector<8x128xf32>
    %c8_123 = arith.constant 8 : index
    %1522 = memref.load %arg6[%c8_123] : memref<64xf32, #tpu.memory_space<smem>>
    %1523 = vector.broadcast %1522 : f32 to vector<8x128xf32>
    %1524 = arith.mulf %874, %1523 : vector<8x128xf32>
    %c9_124 = arith.constant 9 : index
    %1525 = memref.load %arg6[%c9_124] : memref<64xf32, #tpu.memory_space<smem>>
    %1526 = vector.broadcast %1525 : f32 to vector<8x128xf32>
    %1527 = arith.mulf %962, %1526 : vector<8x128xf32>
    %1528 = arith.addf %1524, %1527 : vector<8x128xf32>
    %c10_125 = arith.constant 10 : index
    %1529 = memref.load %arg6[%c10_125] : memref<64xf32, #tpu.memory_space<smem>>
    %1530 = vector.broadcast %1529 : f32 to vector<8x128xf32>
    %1531 = arith.mulf %1050, %1530 : vector<8x128xf32>
    %1532 = arith.addf %1528, %1531 : vector<8x128xf32>
    %c11_126 = arith.constant 11 : index
    %1533 = memref.load %arg6[%c11_126] : memref<64xf32, #tpu.memory_space<smem>>
    %1534 = vector.broadcast %1533 : f32 to vector<8x128xf32>
    %1535 = arith.mulf %1138, %1534 : vector<8x128xf32>
    %1536 = arith.addf %1532, %1535 : vector<8x128xf32>
    %c12_127 = arith.constant 12 : index
    %1537 = memref.load %arg6[%c12_127] : memref<64xf32, #tpu.memory_space<smem>>
    %1538 = vector.broadcast %1537 : f32 to vector<8x128xf32>
    %1539 = arith.mulf %1226, %1538 : vector<8x128xf32>
    %1540 = arith.addf %1536, %1539 : vector<8x128xf32>
    %c13_128 = arith.constant 13 : index
    %1541 = memref.load %arg6[%c13_128] : memref<64xf32, #tpu.memory_space<smem>>
    %1542 = vector.broadcast %1541 : f32 to vector<8x128xf32>
    %1543 = arith.mulf %1314, %1542 : vector<8x128xf32>
    %1544 = arith.addf %1540, %1543 : vector<8x128xf32>
    %c14_129 = arith.constant 14 : index
    %1545 = memref.load %arg6[%c14_129] : memref<64xf32, #tpu.memory_space<smem>>
    %1546 = vector.broadcast %1545 : f32 to vector<8x128xf32>
    %1547 = arith.mulf %1402, %1546 : vector<8x128xf32>
    %1548 = arith.addf %1544, %1547 : vector<8x128xf32>
    %c15_130 = arith.constant 15 : index
    %1549 = memref.load %arg6[%c15_130] : memref<64xf32, #tpu.memory_space<smem>>
    %1550 = vector.broadcast %1549 : f32 to vector<8x128xf32>
    %1551 = arith.mulf %1490, %1550 : vector<8x128xf32>
    %1552 = arith.addf %1548, %1551 : vector<8x128xf32>
    %c16_131 = arith.constant 16 : index
    %1553 = memref.load %arg6[%c16_131] : memref<64xf32, #tpu.memory_space<smem>>
    %1554 = vector.broadcast %1553 : f32 to vector<8x128xf32>
    %1555 = arith.mulf %874, %1554 : vector<8x128xf32>
    %c17_132 = arith.constant 17 : index
    %1556 = memref.load %arg6[%c17_132] : memref<64xf32, #tpu.memory_space<smem>>
    %1557 = vector.broadcast %1556 : f32 to vector<8x128xf32>
    %1558 = arith.mulf %962, %1557 : vector<8x128xf32>
    %1559 = arith.addf %1555, %1558 : vector<8x128xf32>
    %c18_133 = arith.constant 18 : index
    %1560 = memref.load %arg6[%c18_133] : memref<64xf32, #tpu.memory_space<smem>>
    %1561 = vector.broadcast %1560 : f32 to vector<8x128xf32>
    %1562 = arith.mulf %1050, %1561 : vector<8x128xf32>
    %1563 = arith.addf %1559, %1562 : vector<8x128xf32>
    %c19_134 = arith.constant 19 : index
    %1564 = memref.load %arg6[%c19_134] : memref<64xf32, #tpu.memory_space<smem>>
    %1565 = vector.broadcast %1564 : f32 to vector<8x128xf32>
    %1566 = arith.mulf %1138, %1565 : vector<8x128xf32>
    %1567 = arith.addf %1563, %1566 : vector<8x128xf32>
    %c20_135 = arith.constant 20 : index
    %1568 = memref.load %arg6[%c20_135] : memref<64xf32, #tpu.memory_space<smem>>
    %1569 = vector.broadcast %1568 : f32 to vector<8x128xf32>
    %1570 = arith.mulf %1226, %1569 : vector<8x128xf32>
    %1571 = arith.addf %1567, %1570 : vector<8x128xf32>
    %c21_136 = arith.constant 21 : index
    %1572 = memref.load %arg6[%c21_136] : memref<64xf32, #tpu.memory_space<smem>>
    %1573 = vector.broadcast %1572 : f32 to vector<8x128xf32>
    %1574 = arith.mulf %1314, %1573 : vector<8x128xf32>
    %1575 = arith.addf %1571, %1574 : vector<8x128xf32>
    %c22_137 = arith.constant 22 : index
    %1576 = memref.load %arg6[%c22_137] : memref<64xf32, #tpu.memory_space<smem>>
    %1577 = vector.broadcast %1576 : f32 to vector<8x128xf32>
    %1578 = arith.mulf %1402, %1577 : vector<8x128xf32>
    %1579 = arith.addf %1575, %1578 : vector<8x128xf32>
    %c23_138 = arith.constant 23 : index
    %1580 = memref.load %arg6[%c23_138] : memref<64xf32, #tpu.memory_space<smem>>
    %1581 = vector.broadcast %1580 : f32 to vector<8x128xf32>
    %1582 = arith.mulf %1490, %1581 : vector<8x128xf32>
    %1583 = arith.addf %1579, %1582 : vector<8x128xf32>
    %c24_139 = arith.constant 24 : index
    %1584 = memref.load %arg6[%c24_139] : memref<64xf32, #tpu.memory_space<smem>>
    %1585 = vector.broadcast %1584 : f32 to vector<8x128xf32>
    %1586 = arith.mulf %874, %1585 : vector<8x128xf32>
    %c25_140 = arith.constant 25 : index
    %1587 = memref.load %arg6[%c25_140] : memref<64xf32, #tpu.memory_space<smem>>
    %1588 = vector.broadcast %1587 : f32 to vector<8x128xf32>
    %1589 = arith.mulf %962, %1588 : vector<8x128xf32>
    %1590 = arith.addf %1586, %1589 : vector<8x128xf32>
    %c26_141 = arith.constant 26 : index
    %1591 = memref.load %arg6[%c26_141] : memref<64xf32, #tpu.memory_space<smem>>
    %1592 = vector.broadcast %1591 : f32 to vector<8x128xf32>
    %1593 = arith.mulf %1050, %1592 : vector<8x128xf32>
    %1594 = arith.addf %1590, %1593 : vector<8x128xf32>
    %c27_142 = arith.constant 27 : index
    %1595 = memref.load %arg6[%c27_142] : memref<64xf32, #tpu.memory_space<smem>>
    %1596 = vector.broadcast %1595 : f32 to vector<8x128xf32>
    %1597 = arith.mulf %1138, %1596 : vector<8x128xf32>
    %1598 = arith.addf %1594, %1597 : vector<8x128xf32>
    %c28_143 = arith.constant 28 : index
    %1599 = memref.load %arg6[%c28_143] : memref<64xf32, #tpu.memory_space<smem>>
    %1600 = vector.broadcast %1599 : f32 to vector<8x128xf32>
    %1601 = arith.mulf %1226, %1600 : vector<8x128xf32>
    %1602 = arith.addf %1598, %1601 : vector<8x128xf32>
    %c29_144 = arith.constant 29 : index
    %1603 = memref.load %arg6[%c29_144] : memref<64xf32, #tpu.memory_space<smem>>
    %1604 = vector.broadcast %1603 : f32 to vector<8x128xf32>
    %1605 = arith.mulf %1314, %1604 : vector<8x128xf32>
    %1606 = arith.addf %1602, %1605 : vector<8x128xf32>
    %c30_145 = arith.constant 30 : index
    %1607 = memref.load %arg6[%c30_145] : memref<64xf32, #tpu.memory_space<smem>>
    %1608 = vector.broadcast %1607 : f32 to vector<8x128xf32>
    %1609 = arith.mulf %1402, %1608 : vector<8x128xf32>
    %1610 = arith.addf %1606, %1609 : vector<8x128xf32>
    %c31_146 = arith.constant 31 : index
    %1611 = memref.load %arg6[%c31_146] : memref<64xf32, #tpu.memory_space<smem>>
    %1612 = vector.broadcast %1611 : f32 to vector<8x128xf32>
    %1613 = arith.mulf %1490, %1612 : vector<8x128xf32>
    %1614 = arith.addf %1610, %1613 : vector<8x128xf32>
    %c32_147 = arith.constant 32 : index
    %1615 = memref.load %arg6[%c32_147] : memref<64xf32, #tpu.memory_space<smem>>
    %1616 = vector.broadcast %1615 : f32 to vector<8x128xf32>
    %1617 = arith.mulf %874, %1616 : vector<8x128xf32>
    %c33_148 = arith.constant 33 : index
    %1618 = memref.load %arg6[%c33_148] : memref<64xf32, #tpu.memory_space<smem>>
    %1619 = vector.broadcast %1618 : f32 to vector<8x128xf32>
    %1620 = arith.mulf %962, %1619 : vector<8x128xf32>
    %1621 = arith.addf %1617, %1620 : vector<8x128xf32>
    %c34_149 = arith.constant 34 : index
    %1622 = memref.load %arg6[%c34_149] : memref<64xf32, #tpu.memory_space<smem>>
    %1623 = vector.broadcast %1622 : f32 to vector<8x128xf32>
    %1624 = arith.mulf %1050, %1623 : vector<8x128xf32>
    %1625 = arith.addf %1621, %1624 : vector<8x128xf32>
    %c35_150 = arith.constant 35 : index
    %1626 = memref.load %arg6[%c35_150] : memref<64xf32, #tpu.memory_space<smem>>
    %1627 = vector.broadcast %1626 : f32 to vector<8x128xf32>
    %1628 = arith.mulf %1138, %1627 : vector<8x128xf32>
    %1629 = arith.addf %1625, %1628 : vector<8x128xf32>
    %c36_151 = arith.constant 36 : index
    %1630 = memref.load %arg6[%c36_151] : memref<64xf32, #tpu.memory_space<smem>>
    %1631 = vector.broadcast %1630 : f32 to vector<8x128xf32>
    %1632 = arith.mulf %1226, %1631 : vector<8x128xf32>
    %1633 = arith.addf %1629, %1632 : vector<8x128xf32>
    %c37_152 = arith.constant 37 : index
    %1634 = memref.load %arg6[%c37_152] : memref<64xf32, #tpu.memory_space<smem>>
    %1635 = vector.broadcast %1634 : f32 to vector<8x128xf32>
    %1636 = arith.mulf %1314, %1635 : vector<8x128xf32>
    %1637 = arith.addf %1633, %1636 : vector<8x128xf32>
    %c38_153 = arith.constant 38 : index
    %1638 = memref.load %arg6[%c38_153] : memref<64xf32, #tpu.memory_space<smem>>
    %1639 = vector.broadcast %1638 : f32 to vector<8x128xf32>
    %1640 = arith.mulf %1402, %1639 : vector<8x128xf32>
    %1641 = arith.addf %1637, %1640 : vector<8x128xf32>
    %c39_154 = arith.constant 39 : index
    %1642 = memref.load %arg6[%c39_154] : memref<64xf32, #tpu.memory_space<smem>>
    %1643 = vector.broadcast %1642 : f32 to vector<8x128xf32>
    %1644 = arith.mulf %1490, %1643 : vector<8x128xf32>
    %1645 = arith.addf %1641, %1644 : vector<8x128xf32>
    %c40_155 = arith.constant 40 : index
    %1646 = memref.load %arg6[%c40_155] : memref<64xf32, #tpu.memory_space<smem>>
    %1647 = vector.broadcast %1646 : f32 to vector<8x128xf32>
    %1648 = arith.mulf %874, %1647 : vector<8x128xf32>
    %c41_156 = arith.constant 41 : index
    %1649 = memref.load %arg6[%c41_156] : memref<64xf32, #tpu.memory_space<smem>>
    %1650 = vector.broadcast %1649 : f32 to vector<8x128xf32>
    %1651 = arith.mulf %962, %1650 : vector<8x128xf32>
    %1652 = arith.addf %1648, %1651 : vector<8x128xf32>
    %c42_157 = arith.constant 42 : index
    %1653 = memref.load %arg6[%c42_157] : memref<64xf32, #tpu.memory_space<smem>>
    %1654 = vector.broadcast %1653 : f32 to vector<8x128xf32>
    %1655 = arith.mulf %1050, %1654 : vector<8x128xf32>
    %1656 = arith.addf %1652, %1655 : vector<8x128xf32>
    %c43_158 = arith.constant 43 : index
    %1657 = memref.load %arg6[%c43_158] : memref<64xf32, #tpu.memory_space<smem>>
    %1658 = vector.broadcast %1657 : f32 to vector<8x128xf32>
    %1659 = arith.mulf %1138, %1658 : vector<8x128xf32>
    %1660 = arith.addf %1656, %1659 : vector<8x128xf32>
    %c44_159 = arith.constant 44 : index
    %1661 = memref.load %arg6[%c44_159] : memref<64xf32, #tpu.memory_space<smem>>
    %1662 = vector.broadcast %1661 : f32 to vector<8x128xf32>
    %1663 = arith.mulf %1226, %1662 : vector<8x128xf32>
    %1664 = arith.addf %1660, %1663 : vector<8x128xf32>
    %c45_160 = arith.constant 45 : index
    %1665 = memref.load %arg6[%c45_160] : memref<64xf32, #tpu.memory_space<smem>>
    %1666 = vector.broadcast %1665 : f32 to vector<8x128xf32>
    %1667 = arith.mulf %1314, %1666 : vector<8x128xf32>
    %1668 = arith.addf %1664, %1667 : vector<8x128xf32>
    %c46_161 = arith.constant 46 : index
    %1669 = memref.load %arg6[%c46_161] : memref<64xf32, #tpu.memory_space<smem>>
    %1670 = vector.broadcast %1669 : f32 to vector<8x128xf32>
    %1671 = arith.mulf %1402, %1670 : vector<8x128xf32>
    %1672 = arith.addf %1668, %1671 : vector<8x128xf32>
    %c47_162 = arith.constant 47 : index
    %1673 = memref.load %arg6[%c47_162] : memref<64xf32, #tpu.memory_space<smem>>
    %1674 = vector.broadcast %1673 : f32 to vector<8x128xf32>
    %1675 = arith.mulf %1490, %1674 : vector<8x128xf32>
    %1676 = arith.addf %1672, %1675 : vector<8x128xf32>
    %c48_163 = arith.constant 48 : index
    %1677 = memref.load %arg6[%c48_163] : memref<64xf32, #tpu.memory_space<smem>>
    %1678 = vector.broadcast %1677 : f32 to vector<8x128xf32>
    %1679 = arith.mulf %874, %1678 : vector<8x128xf32>
    %c49_164 = arith.constant 49 : index
    %1680 = memref.load %arg6[%c49_164] : memref<64xf32, #tpu.memory_space<smem>>
    %1681 = vector.broadcast %1680 : f32 to vector<8x128xf32>
    %1682 = arith.mulf %962, %1681 : vector<8x128xf32>
    %1683 = arith.addf %1679, %1682 : vector<8x128xf32>
    %c50_165 = arith.constant 50 : index
    %1684 = memref.load %arg6[%c50_165] : memref<64xf32, #tpu.memory_space<smem>>
    %1685 = vector.broadcast %1684 : f32 to vector<8x128xf32>
    %1686 = arith.mulf %1050, %1685 : vector<8x128xf32>
    %1687 = arith.addf %1683, %1686 : vector<8x128xf32>
    %c51_166 = arith.constant 51 : index
    %1688 = memref.load %arg6[%c51_166] : memref<64xf32, #tpu.memory_space<smem>>
    %1689 = vector.broadcast %1688 : f32 to vector<8x128xf32>
    %1690 = arith.mulf %1138, %1689 : vector<8x128xf32>
    %1691 = arith.addf %1687, %1690 : vector<8x128xf32>
    %c52_167 = arith.constant 52 : index
    %1692 = memref.load %arg6[%c52_167] : memref<64xf32, #tpu.memory_space<smem>>
    %1693 = vector.broadcast %1692 : f32 to vector<8x128xf32>
    %1694 = arith.mulf %1226, %1693 : vector<8x128xf32>
    %1695 = arith.addf %1691, %1694 : vector<8x128xf32>
    %c53_168 = arith.constant 53 : index
    %1696 = memref.load %arg6[%c53_168] : memref<64xf32, #tpu.memory_space<smem>>
    %1697 = vector.broadcast %1696 : f32 to vector<8x128xf32>
    %1698 = arith.mulf %1314, %1697 : vector<8x128xf32>
    %1699 = arith.addf %1695, %1698 : vector<8x128xf32>
    %c54_169 = arith.constant 54 : index
    %1700 = memref.load %arg6[%c54_169] : memref<64xf32, #tpu.memory_space<smem>>
    %1701 = vector.broadcast %1700 : f32 to vector<8x128xf32>
    %1702 = arith.mulf %1402, %1701 : vector<8x128xf32>
    %1703 = arith.addf %1699, %1702 : vector<8x128xf32>
    %c55_170 = arith.constant 55 : index
    %1704 = memref.load %arg6[%c55_170] : memref<64xf32, #tpu.memory_space<smem>>
    %1705 = vector.broadcast %1704 : f32 to vector<8x128xf32>
    %1706 = arith.mulf %1490, %1705 : vector<8x128xf32>
    %1707 = arith.addf %1703, %1706 : vector<8x128xf32>
    %c56_171 = arith.constant 56 : index
    %1708 = memref.load %arg6[%c56_171] : memref<64xf32, #tpu.memory_space<smem>>
    %1709 = vector.broadcast %1708 : f32 to vector<8x128xf32>
    %1710 = arith.mulf %874, %1709 : vector<8x128xf32>
    %c57_172 = arith.constant 57 : index
    %1711 = memref.load %arg6[%c57_172] : memref<64xf32, #tpu.memory_space<smem>>
    %1712 = vector.broadcast %1711 : f32 to vector<8x128xf32>
    %1713 = arith.mulf %962, %1712 : vector<8x128xf32>
    %1714 = arith.addf %1710, %1713 : vector<8x128xf32>
    %c58_173 = arith.constant 58 : index
    %1715 = memref.load %arg6[%c58_173] : memref<64xf32, #tpu.memory_space<smem>>
    %1716 = vector.broadcast %1715 : f32 to vector<8x128xf32>
    %1717 = arith.mulf %1050, %1716 : vector<8x128xf32>
    %1718 = arith.addf %1714, %1717 : vector<8x128xf32>
    %c59_174 = arith.constant 59 : index
    %1719 = memref.load %arg6[%c59_174] : memref<64xf32, #tpu.memory_space<smem>>
    %1720 = vector.broadcast %1719 : f32 to vector<8x128xf32>
    %1721 = arith.mulf %1138, %1720 : vector<8x128xf32>
    %1722 = arith.addf %1718, %1721 : vector<8x128xf32>
    %c60_175 = arith.constant 60 : index
    %1723 = memref.load %arg6[%c60_175] : memref<64xf32, #tpu.memory_space<smem>>
    %1724 = vector.broadcast %1723 : f32 to vector<8x128xf32>
    %1725 = arith.mulf %1226, %1724 : vector<8x128xf32>
    %1726 = arith.addf %1722, %1725 : vector<8x128xf32>
    %c61_176 = arith.constant 61 : index
    %1727 = memref.load %arg6[%c61_176] : memref<64xf32, #tpu.memory_space<smem>>
    %1728 = vector.broadcast %1727 : f32 to vector<8x128xf32>
    %1729 = arith.mulf %1314, %1728 : vector<8x128xf32>
    %1730 = arith.addf %1726, %1729 : vector<8x128xf32>
    %c62_177 = arith.constant 62 : index
    %1731 = memref.load %arg6[%c62_177] : memref<64xf32, #tpu.memory_space<smem>>
    %1732 = vector.broadcast %1731 : f32 to vector<8x128xf32>
    %1733 = arith.mulf %1402, %1732 : vector<8x128xf32>
    %1734 = arith.addf %1730, %1733 : vector<8x128xf32>
    %c63_178 = arith.constant 63 : index
    %1735 = memref.load %arg6[%c63_178] : memref<64xf32, #tpu.memory_space<smem>>
    %1736 = vector.broadcast %1735 : f32 to vector<8x128xf32>
    %1737 = arith.mulf %1490, %1736 : vector<8x128xf32>
    %1738 = arith.addf %1734, %1737 : vector<8x128xf32>
    %1739 = arith.maximumf %1521, %1552 : vector<8x128xf32>
    %1740 = arith.maximumf %1739, %1583 : vector<8x128xf32>
    %1741 = arith.maximumf %1740, %1614 : vector<8x128xf32>
    %1742 = arith.maximumf %1741, %1645 : vector<8x128xf32>
    %1743 = arith.maximumf %1742, %1676 : vector<8x128xf32>
    %1744 = arith.maximumf %1743, %1707 : vector<8x128xf32>
    %1745 = arith.maximumf %1744, %1738 : vector<8x128xf32>
    %1746 = arith.subf %1521, %1745 : vector<8x128xf32>
    %1747 = math.exp %1746 : vector<8x128xf32>
    %1748 = arith.subf %1552, %1745 : vector<8x128xf32>
    %1749 = math.exp %1748 : vector<8x128xf32>
    %1750 = arith.subf %1583, %1745 : vector<8x128xf32>
    %1751 = math.exp %1750 : vector<8x128xf32>
    %1752 = arith.subf %1614, %1745 : vector<8x128xf32>
    %1753 = math.exp %1752 : vector<8x128xf32>
    %1754 = arith.subf %1645, %1745 : vector<8x128xf32>
    %1755 = math.exp %1754 : vector<8x128xf32>
    %1756 = arith.subf %1676, %1745 : vector<8x128xf32>
    %1757 = math.exp %1756 : vector<8x128xf32>
    %1758 = arith.subf %1707, %1745 : vector<8x128xf32>
    %1759 = math.exp %1758 : vector<8x128xf32>
    %1760 = arith.subf %1738, %1745 : vector<8x128xf32>
    %1761 = math.exp %1760 : vector<8x128xf32>
    %1762 = arith.addf %1747, %1749 : vector<8x128xf32>
    %1763 = arith.addf %1762, %1751 : vector<8x128xf32>
    %1764 = arith.addf %1763, %1753 : vector<8x128xf32>
    %1765 = arith.addf %1764, %1755 : vector<8x128xf32>
    %1766 = arith.addf %1765, %1757 : vector<8x128xf32>
    %1767 = arith.addf %1766, %1759 : vector<8x128xf32>
    %1768 = arith.addf %1767, %1761 : vector<8x128xf32>
    %cst_179 = arith.constant 1.000000e+00 : f32
    %1769 = vector.broadcast %cst_179 : f32 to vector<8x128xf32>
    %1770 = arith.divf %1769, %1768 : vector<8x128xf32>
    %1771 = arith.mulf %1747, %1770 : vector<8x128xf32>
    %1772 = arith.index_cast %c0_i32 : i32 to index
    %c0_180 = arith.constant 0 : index
    %c0_181 = arith.constant 0 : index
    %c0_182 = arith.constant 0 : index
    %1773 = vector.load %arg7[%1772, %c0_180, %c0_181, %c0_182] : memref<1x8x8x128xf32, #tpu.memory_space<vmem>>, vector<1x1x8x128xf32>
    %1774 = vector.shape_cast %1773 : vector<1x1x8x128xf32> to vector<8x128xf32>
    %1775 = vector.shape_cast %1771 : vector<8x128xf32> to vector<1x1x8x128xf32>
    tpu.vector_store %arg7[%1772, %c0_180, %c0_181, %c0_182], %1775 {strides = array<i32>} : memref<1x8x8x128xf32, #tpu.memory_space<vmem>>, vector<1x1x8x128xf32>,
    %1776 = arith.mulf %1749, %1770 : vector<8x128xf32>
    %1777 = arith.index_cast %c0_i32 : i32 to index
    %c1_183 = arith.constant 1 : index
    %c0_184 = arith.constant 0 : index
    %c0_185 = arith.constant 0 : index
    %1778 = vector.load %arg7[%1777, %c1_183, %c0_184, %c0_185] : memref<1x8x8x128xf32, #tpu.memory_space<vmem>>, vector<1x1x8x128xf32>
    %1779 = vector.shape_cast %1778 : vector<1x1x8x128xf32> to vector<8x128xf32>
    %1780 = vector.shape_cast %1776 : vector<8x128xf32> to vector<1x1x8x128xf32>
    tpu.vector_store %arg7[%1777, %c1_183, %c0_184, %c0_185], %1780 {strides = array<i32>} : memref<1x8x8x128xf32, #tpu.memory_space<vmem>>, vector<1x1x8x128xf32>,
    %1781 = arith.mulf %1751, %1770 : vector<8x128xf32>
    %1782 = arith.index_cast %c0_i32 : i32 to index
    %c2_186 = arith.constant 2 : index
    %c0_187 = arith.constant 0 : index
    %c0_188 = arith.constant 0 : index
    %1783 = vector.load %arg7[%1782, %c2_186, %c0_187, %c0_188] : memref<1x8x8x128xf32, #tpu.memory_space<vmem>>, vector<1x1x8x128xf32>
    %1784 = vector.shape_cast %1783 : vector<1x1x8x128xf32> to vector<8x128xf32>
    %1785 = vector.shape_cast %1781 : vector<8x128xf32> to vector<1x1x8x128xf32>
    tpu.vector_store %arg7[%1782, %c2_186, %c0_187, %c0_188], %1785 {strides = array<i32>} : memref<1x8x8x128xf32, #tpu.memory_space<vmem>>, vector<1x1x8x128xf32>,
    %1786 = arith.mulf %1753, %1770 : vector<8x128xf32>
    %1787 = arith.index_cast %c0_i32 : i32 to index
    %c3_189 = arith.constant 3 : index
    %c0_190 = arith.constant 0 : index
    %c0_191 = arith.constant 0 : index
    %1788 = vector.load %arg7[%1787, %c3_189, %c0_190, %c0_191] : memref<1x8x8x128xf32, #tpu.memory_space<vmem>>, vector<1x1x8x128xf32>
    %1789 = vector.shape_cast %1788 : vector<1x1x8x128xf32> to vector<8x128xf32>
    %1790 = vector.shape_cast %1786 : vector<8x128xf32> to vector<1x1x8x128xf32>
    tpu.vector_store %arg7[%1787, %c3_189, %c0_190, %c0_191], %1790 {strides = array<i32>} : memref<1x8x8x128xf32, #tpu.memory_space<vmem>>, vector<1x1x8x128xf32>,
    %1791 = arith.mulf %1755, %1770 : vector<8x128xf32>
    %1792 = arith.index_cast %c0_i32 : i32 to index
    %c4_192 = arith.constant 4 : index
    %c0_193 = arith.constant 0 : index
    %c0_194 = arith.constant 0 : index
    %1793 = vector.load %arg7[%1792, %c4_192, %c0_193, %c0_194] : memref<1x8x8x128xf32, #tpu.memory_space<vmem>>, vector<1x1x8x128xf32>
    %1794 = vector.shape_cast %1793 : vector<1x1x8x128xf32> to vector<8x128xf32>
    %1795 = vector.shape_cast %1791 : vector<8x128xf32> to vector<1x1x8x128xf32>
    tpu.vector_store %arg7[%1792, %c4_192, %c0_193, %c0_194], %1795 {strides = array<i32>} : memref<1x8x8x128xf32, #tpu.memory_space<vmem>>, vector<1x1x8x128xf32>,
    %1796 = arith.mulf %1757, %1770 : vector<8x128xf32>
    %1797 = arith.index_cast %c0_i32 : i32 to index
    %c5_195 = arith.constant 5 : index
    %c0_196 = arith.constant 0 : index
    %c0_197 = arith.constant 0 : index
    %1798 = vector.load %arg7[%1797, %c5_195, %c0_196, %c0_197] : memref<1x8x8x128xf32, #tpu.memory_space<vmem>>, vector<1x1x8x128xf32>
    %1799 = vector.shape_cast %1798 : vector<1x1x8x128xf32> to vector<8x128xf32>
    %1800 = vector.shape_cast %1796 : vector<8x128xf32> to vector<1x1x8x128xf32>
    tpu.vector_store %arg7[%1797, %c5_195, %c0_196, %c0_197], %1800 {strides = array<i32>} : memref<1x8x8x128xf32, #tpu.memory_space<vmem>>, vector<1x1x8x128xf32>,
    %1801 = arith.mulf %1759, %1770 : vector<8x128xf32>
    %1802 = arith.index_cast %c0_i32 : i32 to index
    %c6_198 = arith.constant 6 : index
    %c0_199 = arith.constant 0 : index
    %c0_200 = arith.constant 0 : index
    %1803 = vector.load %arg7[%1802, %c6_198, %c0_199, %c0_200] : memref<1x8x8x128xf32, #tpu.memory_space<vmem>>, vector<1x1x8x128xf32>
    %1804 = vector.shape_cast %1803 : vector<1x1x8x128xf32> to vector<8x128xf32>
    %1805 = vector.shape_cast %1801 : vector<8x128xf32> to vector<1x1x8x128xf32>
    tpu.vector_store %arg7[%1802, %c6_198, %c0_199, %c0_200], %1805 {strides = array<i32>} : memref<1x8x8x128xf32, #tpu.memory_space<vmem>>, vector<1x1x8x128xf32>,
    %1806 = arith.mulf %1761, %1770 : vector<8x128xf32>
    %1807 = arith.index_cast %c0_i32 : i32 to index
    %c7_201 = arith.constant 7 : index
    %c0_202 = arith.constant 0 : index
    %c0_203 = arith.constant 0 : index
    %1808 = vector.load %arg7[%1807, %c7_201, %c0_202, %c0_203] : memref<1x8x8x128xf32, #tpu.memory_space<vmem>>, vector<1x1x8x128xf32>
    %1809 = vector.shape_cast %1808 : vector<1x1x8x128xf32> to vector<8x128xf32>
    %1810 = vector.shape_cast %1806 : vector<8x128xf32> to vector<1x1x8x128xf32>
    tpu.vector_store %arg7[%1807, %c7_201, %c0_202, %c0_203], %1810 {strides = array<i32>} : memref<1x8x8x128xf32, #tpu.memory_space<vmem>>, vector<1x1x8x128xf32>,
    %c1_i32 = arith.constant 1 : i32
    return
  }
  func.func @transform_0(%arg0: i32) -> (i32, i32, i32, i32, i32) {
    %c0_i32 = arith.constant 0 : i32
    %c0_i32_0 = arith.constant 0 : i32
    %c0_i32_1 = arith.constant 0 : i32
    %c0_i32_2 = arith.constant 0 : i32
    %c0_i32_3 = arith.constant 0 : i32
    return %arg0, %c0_i32, %c0_i32_0, %c0_i32_1, %c0_i32_2 : i32, i32, i32, i32, i32
  }
  func.func @transform_1(%arg0: i32) -> i32 {
    %c0_i32 = arith.constant 0 : i32
    %c0_i32_0 = arith.constant 0 : i32
    return %c0_i32 : i32
  }
  func.func @transform_2(%arg0: i32) -> i32 {
    %c0_i32 = arith.constant 0 : i32
    %c0_i32_0 = arith.constant 0 : i32
    return %c0_i32 : i32
  }
  func.func @transform_3(%arg0: i32) -> i32 {
    %c0_i32 = arith.constant 0 : i32
    %c0_i32_0 = arith.constant 0 : i32
    return %c0_i32 : i32
  }
  func.func @transform_4(%arg0: i32) -> (i32, i32, i32) {
    %c0_i32 = arith.constant 0 : i32
    %c0_i32_0 = arith.constant 0 : i32
    %c0_i32_1 = arith.constant 0 : i32
    %c0_i32_2 = arith.constant 0 : i32
    return %c0_i32, %c0_i32_0, %c0_i32_1 : i32, i32, i32
  }
  func.func @transform_5(%arg0: i32) -> i32 {
    %c0_i32 = arith.constant 0 : i32
    %c0_i32_0 = arith.constant 0 : i32
    return %c0_i32 : i32
  }
  func.func @transform_6(%arg0: i32) -> (i32, i32, i32, i32) {
    %c0_i32 = arith.constant 0 : i32
    %c0_i32_0 = arith.constant 0 : i32
    %c0_i32_1 = arith.constant 0 : i32
    %c0_i32_2 = arith.constant 0 : i32
    return %arg0, %c0_i32, %c0_i32_0, %c0_i32_1 : i32, i32, i32, i32
  }
}

</mosaic_0001>

<llo_original>
// kernel: temporal_attention.1
$region0: #{temporal_attention.1}
  #allocation0 [shape = 'u32[]', space=smem, size = 0x4, offset = 0x4, fixed_abs, tag = 'smem constant byte address 0x4 - core index']
  #allocation1 [shape = 'u32[144,128]{1,0:T(1,128)}', space=vmem, size = 0x12000, scoped, tag = 'internal scratch']
  %s0 = inlined_call_operand.vmem [shape: f32[1,16,4,8,128], index: 0, kind: input, shape index: {}]
  %s1 = inlined_call_operand.vmem [shape: f32[16], index: 1, kind: input, shape index: {}]
  %s2 = inlined_call_operand.vmem [shape: f32[64], index: 2, kind: input, shape index: {}]
  %s3 = inlined_call_operand.vmem [shape: f32[4], index: 3, kind: input, shape index: {}]
  %s4 = inlined_call_operand.vmem [shape: f32[8,8,1], index: 4, kind: input, shape index: {}]
  %s5 = inlined_call_operand.vmem [shape: f32[64], index: 5, kind: input, shape index: {}]
  %s6 = inlined_call_operand.vmem [shape: f32[1,8,8,128], index: 6, kind: output, shape index: {}]
  %s7 = sld [smem:[#allocation0]]
  $region50: #{temporal_attention.1} parent=0
    _
  %s9 = ssub.s32 1, %s7
  %s10 = scalar_select 0, %s9, %s7
  $region1: #{temporal_attention.1} parent=0
    #allocation2 [shape = 'u8[512]{0}', space=smem, size = 0x200, scoped, tag = 'input window, operand 1, single buffered']
    #allocation3 [shape = 's32[1]{0}', space=sflag, size = 0x4, scoped, tag = 'scoped memory for temporal_attention.1']
    #allocation4 [shape = 'u8[512]{0}', space=smem, size = 0x200, scoped, tag = 'input window, operand 2, single buffered']
    #allocation5 [shape = 's32[1]{0}', space=sflag, size = 0x4, scoped, tag = 'scoped memory for temporal_attention.1']
    #allocation6 [shape = 'u8[512]{0}', space=smem, size = 0x200, scoped, tag = 'input window, operand 3, single buffered']
    #allocation7 [shape = 'u8[512]{0}', space=smem, size = 0x200, scoped, tag = 'input window, operand 5, single buffered']
    #allocation8 [shape = 's32[1]{0}', space=sflag, size = 0x4, scoped, tag = 'scoped memory for temporal_attention.1']
    %11 = vsyncpa [#allocation3], 0
    %12 = vsyncpa [#allocation5], 0
    %13 = vsyncpa [#allocation8], 0
    // Predicated region
    $region2: #{temporal_attention.1} parent=1 // pred_check
      _
    $region3: #{temporal_attention.1} parent=1 // pred_check_branch
      %15 = sbr.rel (0) target = $region5
    $region4: #{temporal_attention.1} parent=1 // pred_region
      _
    $region5: #{temporal_attention.1} parent=1 // pred_fallthru
      _
    // Predicated region
    $region6: #{temporal_attention.1} parent=1 // pred_check
      _
    $region7: #{temporal_attention.1} parent=1 // pred_check_branch
      %17 = sbr.rel (0) target = $region9
    $region8: #{temporal_attention.1} parent=1 // pred_region
      %s19 = ssub.s32 16, 16
      %20 = vsyncadd [#allocation3], %s19
      %s22 = sshll.u32 %s1, 4
      %s23 = int_to_ptr.vmem [resolvable:$true] %s22
      %25 = dma.vmem_to_smem %s23, 16, [#allocation2], [#allocation3]
    $region9: #{temporal_attention.1} parent=1 // pred_fallthru
      _
    // Predicated region
    $region10: #{temporal_attention.1} parent=1 // pred_check
      _
    $region11: #{temporal_attention.1} parent=1 // pred_check_branch
      %27 = sbr.rel (0) target = $region13
    $region12: #{temporal_attention.1} parent=1 // pred_region
      %s29 = ssub.s32 16, 16
      %30 = vsyncadd [#allocation5], %s29
      %s32 = sshll.u32 %s2, 4
      %s33 = int_to_ptr.vmem [resolvable:$true] %s32
      %35 = dma.vmem_to_smem %s33, 16, [#allocation4], [#allocation5]
    $region13: #{temporal_attention.1} parent=1 // pred_fallthru
      _
    // Predicated region
    $region14: #{temporal_attention.1} parent=1 // pred_check
      _
    $region15: #{temporal_attention.1} parent=1 // pred_check_branch
      %37 = sbr.rel (0) target = $region17
    $region16: #{temporal_attention.1} parent=1 // pred_region
      %s39 = ssub.s32 16, 16
      %40 = vsyncadd [#allocation5], %s39
      %s42 = sshll.u32 %s3, 4
      %s43 = int_to_ptr.vmem [resolvable:$true] %s42
      %45 = dma.vmem_to_smem %s43, 16, [#allocation6], [#allocation5]
    $region17: #{temporal_attention.1} parent=1 // pred_fallthru
      _
    // Predicated region
    $region18: #{temporal_attention.1} parent=1 // pred_check
      _
    $region19: #{temporal_attention.1} parent=1 // pred_check_branch
      %47 = sbr.rel (0) target = $region21
    $region20: #{temporal_attention.1} parent=1 // pred_region
      _
    $region21: #{temporal_attention.1} parent=1 // pred_fallthru
      _
    // Predicated region
    $region22: #{temporal_attention.1} parent=1 // pred_check
      _
    $region23: #{temporal_attention.1} parent=1 // pred_check_branch
      %49 = sbr.rel (0) target = $region25
    $region24: #{temporal_attention.1} parent=1 // pred_region
      %s51 = ssub.s32 16, 16
      %52 = vsyncadd [#allocation8], %s51
      %s54 = sshll.u32 %s5, 4
      %s55 = int_to_ptr.vmem [resolvable:$true] %s54
      %57 = dma.vmem_to_smem %s55, 16, [#allocation7], [#allocation8]
    $region25: #{temporal_attention.1} parent=1 // pred_fallthru
      _
    // Predicated region
    $region26: #{temporal_attention.1} parent=1 // pred_check
      _
    $region27: #{temporal_attention.1} parent=1 // pred_check_branch
      %59 = sbr.rel (0) target = $region29
    $region28: #{temporal_attention.1} parent=1 // pred_region
      %60 = dma.done [#allocation3], 16
    $region29: #{temporal_attention.1} parent=1 // pred_fallthru
      _
    // Predicated region
    $region30: #{temporal_attention.1} parent=1 // pred_check
      _
    $region31: #{temporal_attention.1} parent=1 // pred_check_branch
      %62 = sbr.rel (0) target = $region33
    $region32: #{temporal_attention.1} parent=1 // pred_region
      %63 = dma.done [#allocation5], 16
    $region33: #{temporal_attention.1} parent=1 // pred_fallthru
      _
    // Predicated region
    $region34: #{temporal_attention.1} parent=1 // pred_check
      _
    $region35: #{temporal_attention.1} parent=1 // pred_check_branch
      %65 = sbr.rel (0) target = $region37
    $region36: #{temporal_attention.1} parent=1 // pred_region
      %66 = dma.done [#allocation5], 16
    $region37: #{temporal_attention.1} parent=1 // pred_fallthru
      _
    // Predicated region
    $region38: #{temporal_attention.1} parent=1 // pred_check
      _
    $region39: #{temporal_attention.1} parent=1 // pred_check_branch
      %68 = sbr.rel (0) target = $region41
    $region40: #{temporal_attention.1} parent=1 // pred_region
      %69 = dma.done [#allocation8], 16
    $region41: #{temporal_attention.1} parent=1 // pred_fallthru
      _
    %70 = sfence
    %s71 = sld [smem:[#allocation6]]
    %s72 = sld [smem:[#allocation6 + $0x1]]
    %s73 = sld [smem:[#allocation6 + $0x2]]
    %s74 = sld [smem:[#allocation6 + $0x3]]
    %v75 = vld [vmem:[%s0] sm:$0xff]
    %v76 = vld [vmem:[%s0 + $0x8] sm:$0xff]
    %v77 = vld [vmem:[%s0 + $0x10] sm:$0xff]
    %v78 = vld [vmem:[%s0 + $0x18] sm:$0xff]
    %s79 = sld [smem:[#allocation2]]
    %v80 = vstv %s79
    %v81 = vmul.f32 %v75, %v80
    %v82 = vmul.f32 %v76, %v80
    %v83 = vmul.f32 %v77, %v80
    %v84 = vmul.f32 %v78, %v80
    %v85 = vstv %s71
    %v86 = vmul.f32 %v75, %v85
    %v87 = vstv %s72
    %v88 = vmul.f32 %v76, %v87
    %v89 = vadd.f32 %v86, %v88
    %v90 = vstv %s73
    %v91 = vmul.f32 %v77, %v90
    %v92 = vadd.f32 %v89, %v91
    %v93 = vstv %s74
    %v94 = vmul.f32 %v78, %v93
    %v95 = vadd.f32 %v92, %v94
    %s96 = scalar_lea.vmem %s0, 32
    %v97 = vld [vmem:[%s96] sm:$0xff]
    %v98 = vld [vmem:[%s96 + $0x8] sm:$0xff]
    %v99 = vld [vmem:[%s96 + $0x10] sm:$0xff]
    %v100 = vld [vmem:[%s96 + $0x18] sm:$0xff]
    %s101 = sld [smem:[#allocation2 + $0x1]]
    %v102 = vstv %s101
    %v103 = vmul.f32 %v97, %v102
    %v104 = vmul.f32 %v98, %v102
    %v105 = vmul.f32 %v99, %v102
    %v106 = vmul.f32 %v100, %v102
    %v107 = vadd.f32 %v81, %v103
    %v108 = vadd.f32 %v82, %v104
    %v109 = vadd.f32 %v83, %v105
    %v110 = vadd.f32 %v84, %v106
    %v111 = vmul.f32 %v97, %v85
    %v112 = vmul.f32 %v98, %v87
    %v113 = vadd.f32 %v111, %v112
    %v114 = vmul.f32 %v99, %v90
    %v115 = vadd.f32 %v113, %v114
    %v116 = vmul.f32 %v100, %v93
    %v117 = vadd.f32 %v115, %v116
    %s118 = scalar_lea.vmem %s0, 64
    %v119 = vld [vmem:[%s118] sm:$0xff]
    %v120 = vld [vmem:[%s118 + $0x8] sm:$0xff]
    %v121 = vld [vmem:[%s118 + $0x10] sm:$0xff]
    %v122 = vld [vmem:[%s118 + $0x18] sm:$0xff]
    %s123 = sld [smem:[#allocation2 + $0x2]]
    %v124 = vstv %s123
    %v125 = vmul.f32 %v119, %v124
    %v126 = vmul.f32 %v120, %v124
    %v127 = vmul.f32 %v121, %v124
    %v128 = vmul.f32 %v122, %v124
    %v129 = vadd.f32 %v107, %v125
    %v130 = vadd.f32 %v108, %v126
    %v131 = vadd.f32 %v109, %v127
    %v132 = vadd.f32 %v110, %v128
    %v133 = vmul.f32 %v119, %v85
    %v134 = vmul.f32 %v120, %v87
    %v135 = vadd.f32 %v133, %v134
    %v136 = vmul.f32 %v121, %v90
    %v137 = vadd.f32 %v135, %v136
    %v138 = vmul.f32 %v122, %v93
    %v139 = vadd.f32 %v137, %v138
    %s140 = scalar_lea.vmem %s0, 96
    %v141 = vld [vmem:[%s140] sm:$0xff]
    %v142 = vld [vmem:[%s140 + $0x8] sm:$0xff]
    %v143 = vld [vmem:[%s140 + $0x10] sm:$0xff]
    %v144 = vld [vmem:[%s140 + $0x18] sm:$0xff]
    %s145 = sld [smem:[#allocation2 + $0x3]]
    %v146 = vstv %s145
    %v147 = vmul.f32 %v141, %v146
    %v148 = vmul.f32 %v142, %v146
    %v149 = vmul.f32 %v143, %v146
    %v150 = vmul.f32 %v144, %v146
    %v151 = vadd.f32 %v129, %v147
    %v152 = vadd.f32 %v130, %v148
    %v153 = vadd.f32 %v131, %v149
    %v154 = vadd.f32 %v132, %v150
    %v155 = vmul.f32 %v141, %v85
    %v156 = vmul.f32 %v142, %v87
    %v157 = vadd.f32 %v155, %v156
    %v158 = vmul.f32 %v143, %v90
    %v159 = vadd.f32 %v157, %v158
    %v160 = vmul.f32 %v144, %v93
    %v161 = vadd.f32 %v159, %v160
    %s162 = scalar_lea.vmem %s0, 128
    %v163 = vld [vmem:[%s162] sm:$0xff]
    %v164 = vld [vmem:[%s162 + $0x8] sm:$0xff]
    %v165 = vld [vmem:[%s162 + $0x10] sm:$0xff]
    %v166 = vld [vmem:[%s162 + $0x18] sm:$0xff]
    %s167 = sld [smem:[#allocation2 + $0x4]]
    %v168 = vstv %s167
    %v169 = vmul.f32 %v163, %v168
    %v170 = vmul.f32 %v164, %v168
    %v171 = vmul.f32 %v165, %v168
    %v172 = vmul.f32 %v166, %v168
    %v173 = vadd.f32 %v151, %v169
    %v174 = vadd.f32 %v152, %v170
    %v175 = vadd.f32 %v153, %v171
    %v176 = vadd.f32 %v154, %v172
    %v177 = vmul.f32 %v163, %v85
    %v178 = vmul.f32 %v164, %v87
    %v179 = vadd.f32 %v177, %v178
    %v180 = vmul.f32 %v165, %v90
    %v181 = vadd.f32 %v179, %v180
    %v182 = vmul.f32 %v166, %v93
    %v183 = vadd.f32 %v181, %v182
    %s184 = scalar_lea.vmem %s0, 160
    %v185 = vld [vmem:[%s184] sm:$0xff]
    %v186 = vld [vmem:[%s184 + $0x8] sm:$0xff]
    %v187 = vld [vmem:[%s184 + $0x10] sm:$0xff]
    %v188 = vld [vmem:[%s184 + $0x18] sm:$0xff]
    %s189 = sld [smem:[#allocation2 + $0x5]]
    %v190 = vstv %s189
    %v191 = vmul.f32 %v185, %v190
    %v192 = vmul.f32 %v186, %v190
    %v193 = vmul.f32 %v187, %v190
    %v194 = vmul.f32 %v188, %v190
    %v195 = vadd.f32 %v173, %v191
    %v196 = vadd.f32 %v174, %v192
    %v197 = vadd.f32 %v175, %v193
    %v198 = vadd.f32 %v176, %v194
    %v199 = vmul.f32 %v185, %v85
    %v200 = vmul.f32 %v186, %v87
    %v201 = vadd.f32 %v199, %v200
    %v202 = vmul.f32 %v187, %v90
    %v203 = vadd.f32 %v201, %v202
    %v204 = vmul.f32 %v188, %v93
    %v205 = vadd.f32 %v203, %v204
    %s206 = scalar_lea.vmem %s0, 192
    %v207 = vld [vmem:[%s206] sm:$0xff]
    %v208 = vld [vmem:[%s206 + $0x8] sm:$0xff]
    %v209 = vld [vmem:[%s206 + $0x10] sm:$0xff]
    %v210 = vld [vmem:[%s206 + $0x18] sm:$0xff]
    %s211 = sld [smem:[#allocation2 + $0x6]]
    %v212 = vstv %s211
    %v213 = vmul.f32 %v207, %v212
    %v214 = vmul.f32 %v208, %v212
    %v215 = vmul.f32 %v209, %v212
    %v216 = vmul.f32 %v210, %v212
    %v217 = vadd.f32 %v195, %v213
    %v218 = vadd.f32 %v196, %v214
    %v219 = vadd.f32 %v197, %v215
    %v220 = vadd.f32 %v198, %v216
    %v221 = vmul.f32 %v207, %v85
    %v222 = vmul.f32 %v208, %v87
    %v223 = vadd.f32 %v221, %v222
    %v224 = vmul.f32 %v209, %v90
    %v225 = vadd.f32 %v223, %v224
    %v226 = vmul.f32 %v210, %v93
    %v227 = vadd.f32 %v225, %v226
    %s228 = scalar_lea.vmem %s0, 224
    %v229 = vld [vmem:[%s228] sm:$0xff]
    %v230 = vld [vmem:[%s228 + $0x8] sm:$0xff]
    %v231 = vld [vmem:[%s228 + $0x10] sm:$0xff]
    %v232 = vld [vmem:[%s228 + $0x18] sm:$0xff]
    %s233 = sld [smem:[#allocation2 + $0x7]]
    %v234 = vstv %s233
    %v235 = vmul.f32 %v229, %v234
    %v236 = vmul.f32 %v230, %v234
    %v237 = vmul.f32 %v231, %v234
    %v238 = vmul.f32 %v232, %v234
    %v239 = vadd.f32 %v217, %v235
    %v240 = vadd.f32 %v218, %v236
    %v241 = vadd.f32 %v219, %v237
    %v242 = vadd.f32 %v220, %v238
    %v243 = vmul.f32 %v229, %v85
    %v244 = vmul.f32 %v230, %v87
    %v245 = vadd.f32 %v243, %v244
    %v246 = vmul.f32 %v231, %v90
    %v247 = vadd.f32 %v245, %v246
    %v248 = vmul.f32 %v232, %v93
    %v249 = vadd.f32 %v247, %v248
    %s250 = scalar_lea.vmem %s0, 256
    %v251 = vld [vmem:[%s250] sm:$0xff]
    %v252 = vld [vmem:[%s250 + $0x8] sm:$0xff]
    %v253 = vld [vmem:[%s250 + $0x10] sm:$0xff]
    %v254 = vld [vmem:[%s250 + $0x18] sm:$0xff]
    %s255 = sld [smem:[#allocation2 + $0x8]]
    %v256 = vstv %s255
    %v257 = vmul.f32 %v251, %v256
    %v258 = vmul.f32 %v252, %v256
    %v259 = vmul.f32 %v253, %v256
    %v260 = vmul.f32 %v254, %v256
    %v261 = vadd.f32 %v239, %v257
    %v262 = vadd.f32 %v240, %v258
    %v263 = vadd.f32 %v241, %v259
    %v264 = vadd.f32 %v242, %v260
    %v265 = vmul.f32 %v251, %v85
    %v266 = vmul.f32 %v252, %v87
    %v267 = vadd.f32 %v265, %v266
    %v268 = vmul.f32 %v253, %v90
    %v269 = vadd.f32 %v267, %v268
    %v270 = vmul.f32 %v254, %v93
    %v271 = vadd.f32 %v269, %v270
    %s272 = scalar_lea.vmem %s0, 288
    %v273 = vld [vmem:[%s272] sm:$0xff]
    %v274 = vld [vmem:[%s272 + $0x8] sm:$0xff]
    %v275 = vld [vmem:[%s272 + $0x10] sm:$0xff]
    %v276 = vld [vmem:[%s272 + $0x18] sm:$0xff]
    %s277 = sld [smem:[#allocation2 + $0x9]]
    %v278 = vstv %s277
    %v279 = vmul.f32 %v273, %v278
    %v280 = vmul.f32 %v274, %v278
    %v281 = vmul.f32 %v275, %v278
    %v282 = vmul.f32 %v276, %v278
    %v283 = vadd.f32 %v261, %v279
    %v284 = vadd.f32 %v262, %v280
    %v285 = vadd.f32 %v263, %v281
    %v286 = vadd.f32 %v264, %v282
    %v287 = vmul.f32 %v273, %v85
    %v288 = vmul.f32 %v274, %v87
    %v289 = vadd.f32 %v287, %v288
    %v290 = vmul.f32 %v275, %v90
    %v291 = vadd.f32 %v289, %v290
    %v292 = vmul.f32 %v276, %v93
    %v293 = vadd.f32 %v291, %v292
    %s294 = scalar_lea.vmem %s0, 320
    %v295 = vld [vmem:[%s294] sm:$0xff]
    %v296 = vld [vmem:[%s294 + $0x8] sm:$0xff]
    %v297 = vld [vmem:[%s294 + $0x10] sm:$0xff]
    %v298 = vld [vmem:[%s294 + $0x18] sm:$0xff]
    %s299 = sld [smem:[#allocation2 + $0xa]]
    %v300 = vstv %s299
    %v301 = vmul.f32 %v295, %v300
    %v302 = vmul.f32 %v296, %v300
    %v303 = vmul.f32 %v297, %v300
    %v304 = vmul.f32 %v298, %v300
    %v305 = vadd.f32 %v283, %v301
    %v306 = vadd.f32 %v284, %v302
    %v307 = vadd.f32 %v285, %v303
    %v308 = vadd.f32 %v286, %v304
    %v309 = vmul.f32 %v295, %v85
    %v310 = vmul.f32 %v296, %v87
    %v311 = vadd.f32 %v309, %v310
    %v312 = vmul.f32 %v297, %v90
    %v313 = vadd.f32 %v311, %v312
    %v314 = vmul.f32 %v298, %v93
    %v315 = vadd.f32 %v313, %v314
    %s316 = scalar_lea.vmem %s0, 352
    %v317 = vld [vmem:[%s316] sm:$0xff]
    %v318 = vld [vmem:[%s316 + $0x8] sm:$0xff]
    %v319 = vld [vmem:[%s316 + $0x10] sm:$0xff]
    %v320 = vld [vmem:[%s316 + $0x18] sm:$0xff]
    %s321 = sld [smem:[#allocation2 + $0xb]]
    %v322 = vstv %s321
    %v323 = vmul.f32 %v317, %v322
    %v324 = vmul.f32 %v318, %v322
    %v325 = vmul.f32 %v319, %v322
    %v326 = vmul.f32 %v320, %v322
    %v327 = vadd.f32 %v305, %v323
    %v328 = vadd.f32 %v306, %v324
    %v329 = vadd.f32 %v307, %v325
    %v330 = vadd.f32 %v308, %v326
    %v331 = vmul.f32 %v317, %v85
    %v332 = vmul.f32 %v318, %v87
    %v333 = vadd.f32 %v331, %v332
    %v334 = vmul.f32 %v319, %v90
    %v335 = vadd.f32 %v333, %v334
    %v336 = vmul.f32 %v320, %v93
    %v337 = vadd.f32 %v335, %v336
    %s338 = scalar_lea.vmem %s0, 384
    %v339 = vld [vmem:[%s338] sm:$0xff]
    %v340 = vld [vmem:[%s338 + $0x8] sm:$0xff]
    %v341 = vld [vmem:[%s338 + $0x10] sm:$0xff]
    %v342 = vld [vmem:[%s338 + $0x18] sm:$0xff]
    %s343 = sld [smem:[#allocation2 + $0xc]]
    %v344 = vstv %s343
    %v345 = vmul.f32 %v339, %v344
    %v346 = vmul.f32 %v340, %v344
    %v347 = vmul.f32 %v341, %v344
    %v348 = vmul.f32 %v342, %v344
    %v349 = vadd.f32 %v327, %v345
    %v350 = vadd.f32 %v328, %v346
    %v351 = vadd.f32 %v329, %v347
    %v352 = vadd.f32 %v330, %v348
    %v353 = vmul.f32 %v339, %v85
    %v354 = vmul.f32 %v340, %v87
    %v355 = vadd.f32 %v353, %v354
    %v356 = vmul.f32 %v341, %v90
    %v357 = vadd.f32 %v355, %v356
    %v358 = vmul.f32 %v342, %v93
    %v359 = vadd.f32 %v357, %v358
    %s360 = scalar_lea.vmem %s0, 416
    %v361 = vld [vmem:[%s360] sm:$0xff]
    %v362 = vld [vmem:[%s360 + $0x8] sm:$0xff]
    %v363 = vld [vmem:[%s360 + $0x10] sm:$0xff]
    %v364 = vld [vmem:[%s360 + $0x18] sm:$0xff]
    %s365 = sld [smem:[#allocation2 + $0xd]]
    %v366 = vstv %s365
    %v367 = vmul.f32 %v361, %v366
    %v368 = vmul.f32 %v362, %v366
    %v369 = vmul.f32 %v363, %v366
    %v370 = vmul.f32 %v364, %v366
    %v371 = vadd.f32 %v349, %v367
    %v372 = vadd.f32 %v350, %v368
    %v373 = vadd.f32 %v351, %v369
    %v374 = vadd.f32 %v352, %v370
    %v375 = vmul.f32 %v361, %v85
    %v376 = vmul.f32 %v362, %v87
    %v377 = vadd.f32 %v375, %v376
    %v378 = vmul.f32 %v363, %v90
    %v379 = vadd.f32 %v377, %v378
    %v380 = vmul.f32 %v364, %v93
    %v381 = vadd.f32 %v379, %v380
    %s382 = scalar_lea.vmem %s0, 448
    %v383 = vld [vmem:[%s382] sm:$0xff]
    %v384 = vld [vmem:[%s382 + $0x8] sm:$0xff]
    %v385 = vld [vmem:[%s382 + $0x10] sm:$0xff]
    %v386 = vld [vmem:[%s382 + $0x18] sm:$0xff]
    %s387 = sld [smem:[#allocation2 + $0xe]]
    %v388 = vstv %s387
    %v389 = vmul.f32 %v383, %v388
    %v390 = vmul.f32 %v384, %v388
    %v391 = vmul.f32 %v385, %v388
    %v392 = vmul.f32 %v386, %v388
    %v393 = vadd.f32 %v371, %v389
    %v394 = vadd.f32 %v372, %v390
    %v395 = vadd.f32 %v373, %v391
    %v396 = vadd.f32 %v374, %v392
    %v397 = vmul.f32 %v383, %v85
    %v398 = vmul.f32 %v384, %v87
    %v399 = vadd.f32 %v397, %v398
    %v400 = vmul.f32 %v385, %v90
    %v401 = vadd.f32 %v399, %v400
    %v402 = vmul.f32 %v386, %v93
    %v403 = vadd.f32 %v401, %v402
    %s404 = scalar_lea.vmem %s0, 480
    %v405 = vld [vmem:[%s404] sm:$0xff]
    %v406 = vld [vmem:[%s404 + $0x8] sm:$0xff]
    %v407 = vld [vmem:[%s404 + $0x10] sm:$0xff]
    %v408 = vld [vmem:[%s404 + $0x18] sm:$0xff]
    %s409 = sld [smem:[#allocation2 + $0xf]]
    %v410 = vstv %s409
    %v411 = vmul.f32 %v405, %v410
    %v412 = vmul.f32 %v406, %v410
    %v413 = vmul.f32 %v407, %v410
    %v414 = vmul.f32 %v408, %v410
    %v415 = vadd.f32 %v393, %v411
    %v416 = vadd.f32 %v394, %v412
    %v417 = vadd.f32 %v395, %v413
    %v418 = vadd.f32 %v396, %v414
    %v419 = vmul.f32 %v405, %v85
    %v420 = vmul.f32 %v406, %v87
    %v421 = vadd.f32 %v419, %v420
    %v422 = vmul.f32 %v407, %v90
    %v423 = vadd.f32 %v421, %v422
    %v424 = vmul.f32 %v408, %v93
    %v425 = vadd.f32 %v423, %v424
    %s426 = sld [smem:[#allocation4]]
    %v427 = vstv %s426
    %v428 = vmul.f32 %v415, %v427
    %s429 = sld [smem:[#allocation4 + $0x10]]
    %v430 = vstv %s429
    %v431 = vmul.f32 %v416, %v430
    %v432 = vadd.f32 %v428, %v431
    %s433 = sld [smem:[#allocation4 + $0x20]]
    %v434 = vstv %s433
    %v435 = vmul.f32 %v417, %v434
    %v436 = vadd.f32 %v432, %v435
    %s437 = sld [smem:[#allocation4 + $0x30]]
    %v438 = vstv %s437
    %v439 = vmul.f32 %v418, %v438
    %v440 = vadd.f32 %v436, %v439
    %s441 = sld [smem:[#allocation4 + $0x1]]
    %v442 = vstv %s441
    %v443 = vmul.f32 %v415, %v442
    %s444 = sld [smem:[#allocation4 + $0x11]]
    %v445 = vstv %s444
    %v446 = vmul.f32 %v416, %v445
    %v447 = vadd.f32 %v443, %v446
    %s448 = sld [smem:[#allocation4 + $0x21]]
    %v449 = vstv %s448
    %v450 = vmul.f32 %v417, %v449
    %v451 = vadd.f32 %v447, %v450
    %s452 = sld [smem:[#allocation4 + $0x31]]
    %v453 = vstv %s452
    %v454 = vmul.f32 %v418, %v453
    %v455 = vadd.f32 %v451, %v454
    %s456 = sld [smem:[#allocation4 + $0x2]]
    %v457 = vstv %s456
    %v458 = vmul.f32 %v415, %v457
    %s459 = sld [smem:[#allocation4 + $0x12]]
    %v460 = vstv %s459
    %v461 = vmul.f32 %v416, %v460
    %v462 = vadd.f32 %v458, %v461
    %s463 = sld [smem:[#allocation4 + $0x22]]
    %v464 = vstv %s463
    %v465 = vmul.f32 %v417, %v464
    %v466 = vadd.f32 %v462, %v465
    %s467 = sld [smem:[#allocation4 + $0x32]]
    %v468 = vstv %s467
    %v469 = vmul.f32 %v418, %v468
    %v470 = vadd.f32 %v466, %v469
    %s471 = sld [smem:[#allocation4 + $0x3]]
    %v472 = vstv %s471
    %v473 = vmul.f32 %v415, %v472
    %s474 = sld [smem:[#allocation4 + $0x13]]
    %v475 = vstv %s474
    %v476 = vmul.f32 %v416, %v475
    %v477 = vadd.f32 %v473, %v476
    %s478 = sld [smem:[#allocation4 + $0x23]]
    %v479 = vstv %s478
    %v480 = vmul.f32 %v417, %v479
    %v481 = vadd.f32 %v477, %v480
    %s482 = sld [smem:[#allocation4 + $0x33]]
    %v483 = vstv %s482
    %v484 = vmul.f32 %v418, %v483
    %v485 = vadd.f32 %v481, %v484
    %s486 = sld [smem:[#allocation4 + $0x4]]
    %v487 = vstv %s486
    %v488 = vmul.f32 %v415, %v487
    %s489 = sld [smem:[#allocation4 + $0x14]]
    %v490 = vstv %s489
    %v491 = vmul.f32 %v416, %v490
    %v492 = vadd.f32 %v488, %v491
    %s493 = sld [smem:[#allocation4 + $0x24]]
    %v494 = vstv %s493
    %v495 = vmul.f32 %v417, %v494
    %v496 = vadd.f32 %v492, %v495
    %s497 = sld [smem:[#allocation4 + $0x34]]
    %v498 = vstv %s497
    %v499 = vmul.f32 %v418, %v498
    %v500 = vadd.f32 %v496, %v499
    %s501 = sld [smem:[#allocation4 + $0x5]]
    %v502 = vstv %s501
    %v503 = vmul.f32 %v415, %v502
    %s504 = sld [smem:[#allocation4 + $0x15]]
    %v505 = vstv %s504
    %v506 = vmul.f32 %v416, %v505
    %v507 = vadd.f32 %v503, %v506
    %s508 = sld [smem:[#allocation4 + $0x25]]
    %v509 = vstv %s508
    %v510 = vmul.f32 %v417, %v509
    %v511 = vadd.f32 %v507, %v510
    %s512 = sld [smem:[#allocation4 + $0x35]]
    %v513 = vstv %s512
    %v514 = vmul.f32 %v418, %v513
    %v515 = vadd.f32 %v511, %v514
    %s516 = sld [smem:[#allocation4 + $0x6]]
    %v517 = vstv %s516
    %v518 = vmul.f32 %v415, %v517
    %s519 = sld [smem:[#allocation4 + $0x16]]
    %v520 = vstv %s519
    %v521 = vmul.f32 %v416, %v520
    %v522 = vadd.f32 %v518, %v521
    %s523 = sld [smem:[#allocation4 + $0x26]]
    %v524 = vstv %s523
    %v525 = vmul.f32 %v417, %v524
    %v526 = vadd.f32 %v522, %v525
    %s527 = sld [smem:[#allocation4 + $0x36]]
    %v528 = vstv %s527
    %v529 = vmul.f32 %v418, %v528
    %v530 = vadd.f32 %v526, %v529
    %s531 = sld [smem:[#allocation4 + $0x7]]
    %v532 = vstv %s531
    %v533 = vmul.f32 %v415, %v532
    %s534 = sld [smem:[#allocation4 + $0x17]]
    %v535 = vstv %s534
    %v536 = vmul.f32 %v416, %v535
    %v537 = vadd.f32 %v533, %v536
    %s538 = sld [smem:[#allocation4 + $0x27]]
    %v539 = vstv %s538
    %v540 = vmul.f32 %v417, %v539
    %v541 = vadd.f32 %v537, %v540
    %s542 = sld [smem:[#allocation4 + $0x37]]
    %v543 = vstv %s542
    %v544 = vmul.f32 %v418, %v543
    %v545 = vadd.f32 %v541, %v544
    %s546 = sld [smem:[#allocation4 + $0x8]]
    %v547 = vstv %s546
    %v548 = vmul.f32 %v415, %v547
    %s549 = sld [smem:[#allocation4 + $0x18]]
    %v550 = vstv %s549
    %v551 = vmul.f32 %v416, %v550
    %v552 = vadd.f32 %v548, %v551
    %s553 = sld [smem:[#allocation4 + $0x28]]
    %v554 = vstv %s553
    %v555 = vmul.f32 %v417, %v554
    %v556 = vadd.f32 %v552, %v555
    %s557 = sld [smem:[#allocation4 + $0x38]]
    %v558 = vstv %s557
    %v559 = vmul.f32 %v418, %v558
    %v560 = vadd.f32 %v556, %v559
    %s561 = sld [smem:[#allocation4 + $0x9]]
    %v562 = vstv %s561
    %v563 = vmul.f32 %v415, %v562
    %s564 = sld [smem:[#allocation4 + $0x19]]
    %v565 = vstv %s564
    %v566 = vmul.f32 %v416, %v565
    %v567 = vadd.f32 %v563, %v566
    %s568 = sld [smem:[#allocation4 + $0x29]]
    %v569 = vstv %s568
    %v570 = vmul.f32 %v417, %v569
    %v571 = vadd.f32 %v567, %v570
    %s572 = sld [smem:[#allocation4 + $0x39]]
    %v573 = vstv %s572
    %v574 = vmul.f32 %v418, %v573
    %v575 = vadd.f32 %v571, %v574
    %s576 = sld [smem:[#allocation4 + $0xa]]
    %v577 = vstv %s576
    %v578 = vmul.f32 %v415, %v577
    %s579 = sld [smem:[#allocation4 + $0x1a]]
    %v580 = vstv %s579
    %v581 = vmul.f32 %v416, %v580
    %v582 = vadd.f32 %v578, %v581
    %s583 = sld [smem:[#allocation4 + $0x2a]]
    %v584 = vstv %s583
    %v585 = vmul.f32 %v417, %v584
    %v586 = vadd.f32 %v582, %v585
    %s587 = sld [smem:[#allocation4 + $0x3a]]
    %v588 = vstv %s587
    %v589 = vmul.f32 %v418, %v588
    %v590 = vadd.f32 %v586, %v589
    %s591 = sld [smem:[#allocation4 + $0xb]]
    %v592 = vstv %s591
    %v593 = vmul.f32 %v415, %v592
    %s594 = sld [smem:[#allocation4 + $0x1b]]
    %v595 = vstv %s594
    %v596 = vmul.f32 %v416, %v595
    %v597 = vadd.f32 %v593, %v596
    %s598 = sld [smem:[#allocation4 + $0x2b]]
    %v599 = vstv %s598
    %v600 = vmul.f32 %v417, %v599
    %v601 = vadd.f32 %v597, %v600
    %s602 = sld [smem:[#allocation4 + $0x3b]]
    %v603 = vstv %s602
    %v604 = vmul.f32 %v418, %v603
    %v605 = vadd.f32 %v601, %v604
    %s606 = sld [smem:[#allocation4 + $0xc]]
    %v607 = vstv %s606
    %v608 = vmul.f32 %v415, %v607
    %s609 = sld [smem:[#allocation4 + $0x1c]]
    %v610 = vstv %s609
    %v611 = vmul.f32 %v416, %v610
    %v612 = vadd.f32 %v608, %v611
    %s613 = sld [smem:[#allocation4 + $0x2c]]
    %v614 = vstv %s613
    %v615 = vmul.f32 %v417, %v614
    %v616 = vadd.f32 %v612, %v615
    %s617 = sld [smem:[#allocation4 + $0x3c]]
    %v618 = vstv %s617
    %v619 = vmul.f32 %v418, %v618
    %v620 = vadd.f32 %v616, %v619
    %s621 = sld [smem:[#allocation4 + $0xd]]
    %v622 = vstv %s621
    %v623 = vmul.f32 %v415, %v622
    %s624 = sld [smem:[#allocation4 + $0x1d]]
    %v625 = vstv %s624
    %v626 = vmul.f32 %v416, %v625
    %v627 = vadd.f32 %v623, %v626
    %s628 = sld [smem:[#allocation4 + $0x2d]]
    %v629 = vstv %s628
    %v630 = vmul.f32 %v417, %v629
    %v631 = vadd.f32 %v627, %v630
    %s632 = sld [smem:[#allocation4 + $0x3d]]
    %v633 = vstv %s632
    %v634 = vmul.f32 %v418, %v633
    %v635 = vadd.f32 %v631, %v634
    %s636 = sld [smem:[#allocation4 + $0xe]]
    %v637 = vstv %s636
    %v638 = vmul.f32 %v415, %v637
    %s639 = sld [smem:[#allocation4 + $0x1e]]
    %v640 = vstv %s639
    %v641 = vmul.f32 %v416, %v640
    %v642 = vadd.f32 %v638, %v641
    %s643 = sld [smem:[#allocation4 + $0x2e]]
    %v644 = vstv %s643
    %v645 = vmul.f32 %v417, %v644
    %v646 = vadd.f32 %v642, %v645
    %s647 = sld [smem:[#allocation4 + $0x3e]]
    %v648 = vstv %s647
    %v649 = vmul.f32 %v418, %v648
    %v650 = vadd.f32 %v646, %v649
    %s651 = sld [smem:[#allocation4 + $0xf]]
    %v652 = vstv %s651
    %v653 = vmul.f32 %v415, %v652
    %s654 = sld [smem:[#allocation4 + $0x1f]]
    %v655 = vstv %s654
    %v656 = vmul.f32 %v416, %v655
    %v657 = vadd.f32 %v653, %v656
    %s658 = sld [smem:[#allocation4 + $0x2f]]
    %v659 = vstv %s658
    %v660 = vmul.f32 %v417, %v659
    %v661 = vadd.f32 %v657, %v660
    %s662 = sld [smem:[#allocation4 + $0x3f]]
    %v663 = vstv %s662
    %v664 = vmul.f32 %v418, %v663
    %v665 = vadd.f32 %v661, %v664
    %v666 = vlaneseq
    %v667 = vshrl.u32 %v666, 7
    %v668 = vsub.s32 0, %v667
    %v669 = vrot.slane %v440, %v668
    %v670 = vmul.f32 %v669, %v95
    %v671 = vlaneseq
    %v672 = vshrl.u32 %v671, 7
    %v673 = vsub.s32 0, %v672
    %v674 = vrot.slane %v455, %v673
    %v675 = vmul.f32 %v674, %v117
    %v676 = vadd.f32 %v670, %v675
    %v677 = vlaneseq
    %v678 = vshrl.u32 %v677, 7
    %v679 = vsub.s32 0, %v678
    %v680 = vrot.slane %v470, %v679
    %v681 = vmul.f32 %v680, %v139
    %v682 = vadd.f32 %v676, %v681
    %v683 = vlaneseq
    %v684 = vshrl.u32 %v683, 7
    %v685 = vsub.s32 0, %v684
    %v686 = vrot.slane %v485, %v685
    %v687 = vmul.f32 %v686, %v161
    %v688 = vadd.f32 %v682, %v687
    %v689 = vlaneseq
    %v690 = vshrl.u32 %v689, 7
    %v691 = vsub.s32 0, %v690
    %v692 = vrot.slane %v500, %v691
    %v693 = vmul.f32 %v692, %v183
    %v694 = vadd.f32 %v688, %v693
    %v695 = vlaneseq
    %v696 = vshrl.u32 %v695, 7
    %v697 = vsub.s32 0, %v696
    %v698 = vrot.slane %v515, %v697
    %v699 = vmul.f32 %v698, %v205
    %v700 = vadd.f32 %v694, %v699
    %v701 = vlaneseq
    %v702 = vshrl.u32 %v701, 7
    %v703 = vsub.s32 0, %v702
    %v704 = vrot.slane %v530, %v703
    %v705 = vmul.f32 %v704, %v227
    %v706 = vadd.f32 %v700, %v705
    %v707 = vlaneseq
    %v708 = vshrl.u32 %v707, 7
    %v709 = vsub.s32 0, %v708
    %v710 = vrot.slane %v545, %v709
    %v711 = vmul.f32 %v710, %v249
    %v712 = vadd.f32 %v706, %v711
    %v713 = vlaneseq
    %v714 = vshrl.u32 %v713, 7
    %v715 = vsub.s32 0, %v714
    %v716 = vrot.slane %v560, %v715
    %v717 = vmul.f32 %v716, %v271
    %v718 = vadd.f32 %v712, %v717
    %v719 = vlaneseq
    %v720 = vshrl.u32 %v719, 7
    %v721 = vsub.s32 0, %v720
    %v722 = vrot.slane %v575, %v721
    %v723 = vmul.f32 %v722, %v293
    %v724 = vadd.f32 %v718, %v723
    %v725 = vlaneseq
    %v726 = vshrl.u32 %v725, 7
    %v727 = vsub.s32 0, %v726
    %v728 = vrot.slane %v590, %v727
    %v729 = vmul.f32 %v728, %v315
    %v730 = vadd.f32 %v724, %v729
    %v731 = vlaneseq
    %v732 = vshrl.u32 %v731, 7
    %v733 = vsub.s32 0, %v732
    %v734 = vrot.slane %v605, %v733
    %v735 = vmul.f32 %v734, %v337
    %v736 = vadd.f32 %v730, %v735
    %v737 = vlaneseq
    %v738 = vshrl.u32 %v737, 7
    %v739 = vsub.s32 0, %v738
    %v740 = vrot.slane %v620, %v739
    %v741 = vmul.f32 %v740, %v359
    %v742 = vadd.f32 %v736, %v741
    %v743 = vlaneseq
    %v744 = vshrl.u32 %v743, 7
    %v745 = vsub.s32 0, %v744
    %v746 = vrot.slane %v635, %v745
    %v747 = vmul.f32 %v746, %v381
    %v748 = vadd.f32 %v742, %v747
    %v749 = vlaneseq
    %v750 = vshrl.u32 %v749, 7
    %v751 = vsub.s32 0, %v750
    %v752 = vrot.slane %v650, %v751
    %v753 = vmul.f32 %v752, %v403
    %v754 = vadd.f32 %v748, %v753
    %v755 = vlaneseq
    %v756 = vshrl.u32 %v755, 7
    %v757 = vsub.s32 0, %v756
    %v758 = vrot.slane %v665, %v757
    %v759 = vmul.f32 %v758, %v425
    %v760 = vadd.f32 %v754, %v759
    %v761 = vld [vmem:[%s4] sm:$0xff]
    %763 = vset.pattern.permute.xlu0 0
    %764 = vperm.xlu0 %763, %v761
    %v765 = vpop.permute.xlu0 %764
    %v767 = vadd.f32 %v760, %v765
    %v768 = vxor.u32 %v767, 2147483648
    %v769 = vmul.f32 %v768, 1.442695
    %v770 = vpow.pop %v769
    %v771 = vadd.f32 %v770, 1.0
    %v772 = vrcp.pop %v771
    %v773 = vmul.f32 1.0, %v772
    %v774 = vlaneseq
    %v775 = vshrl.u32 %v774, 7
    %v776 = vsub.s32 1, %v775
    %v777 = vrot.slane %v440, %v776
    %v778 = vmul.f32 %v777, %v95
    %v779 = vlaneseq
    %v780 = vshrl.u32 %v779, 7
    %v781 = vsub.s32 1, %v780
    %v782 = vrot.slane %v455, %v781
    %v783 = vmul.f32 %v782, %v117
    %v784 = vadd.f32 %v778, %v783
    %v785 = vlaneseq
    %v786 = vshrl.u32 %v785, 7
    %v787 = vsub.s32 1, %v786
    %v788 = vrot.slane %v470, %v787
    %v789 = vmul.f32 %v788, %v139
    %v790 = vadd.f32 %v784, %v789
    %v791 = vlaneseq
    %v792 = vshrl.u32 %v791, 7
    %v793 = vsub.s32 1, %v792
    %v794 = vrot.slane %v485, %v793
    %v795 = vmul.f32 %v794, %v161
    %v796 = vadd.f32 %v790, %v795
    %v797 = vlaneseq
    %v798 = vshrl.u32 %v797, 7
    %v799 = vsub.s32 1, %v798
    %v800 = vrot.slane %v500, %v799
    %v801 = vmul.f32 %v800, %v183
    %v802 = vadd.f32 %v796, %v801
    %v803 = vlaneseq
    %v804 = vshrl.u32 %v803, 7
    %v805 = vsub.s32 1, %v804
    %v806 = vrot.slane %v515, %v805
    %v807 = vmul.f32 %v806, %v205
    %v808 = vadd.f32 %v802, %v807
    %v809 = vlaneseq
    %v810 = vshrl.u32 %v809, 7
    %v811 = vsub.s32 1, %v810
    %v812 = vrot.slane %v530, %v811
    %v813 = vmul.f32 %v812, %v227
    %v814 = vadd.f32 %v808, %v813
    %v815 = vlaneseq
    %v816 = vshrl.u32 %v815, 7
    %v817 = vsub.s32 1, %v816
    %v818 = vrot.slane %v545, %v817
    %v819 = vmul.f32 %v818, %v249
    %v820 = vadd.f32 %v814, %v819
    %v821 = vlaneseq
    %v822 = vshrl.u32 %v821, 7
    %v823 = vsub.s32 1, %v822
    %v824 = vrot.slane %v560, %v823
    %v825 = vmul.f32 %v824, %v271
    %v826 = vadd.f32 %v820, %v825
    %v827 = vlaneseq
    %v828 = vshrl.u32 %v827, 7
    %v829 = vsub.s32 1, %v828
    %v830 = vrot.slane %v575, %v829
    %v831 = vmul.f32 %v830, %v293
    %v832 = vadd.f32 %v826, %v831
    %v833 = vlaneseq
    %v834 = vshrl.u32 %v833, 7
    %v835 = vsub.s32 1, %v834
    %v836 = vrot.slane %v590, %v835
    %v837 = vmul.f32 %v836, %v315
    %v838 = vadd.f32 %v832, %v837
    %v839 = vlaneseq
    %v840 = vshrl.u32 %v839, 7
    %v841 = vsub.s32 1, %v840
    %v842 = vrot.slane %v605, %v841
    %v843 = vmul.f32 %v842, %v337
    %v844 = vadd.f32 %v838, %v843
    %v845 = vlaneseq
    %v846 = vshrl.u32 %v845, 7
    %v847 = vsub.s32 1, %v846
    %v848 = vrot.slane %v620, %v847
    %v849 = vmul.f32 %v848, %v359
    %v850 = vadd.f32 %v844, %v849
    %v851 = vlaneseq
    %v852 = vshrl.u32 %v851, 7
    %v853 = vsub.s32 1, %v852
    %v854 = vrot.slane %v635, %v853
    %v855 = vmul.f32 %v854, %v381
    %v856 = vadd.f32 %v850, %v855
    %v857 = vlaneseq
    %v858 = vshrl.u32 %v857, 7
    %v859 = vsub.s32 1, %v858
    %v860 = vrot.slane %v650, %v859
    %v861 = vmul.f32 %v860, %v403
    %v862 = vadd.f32 %v856, %v861
    %v863 = vlaneseq
    %v864 = vshrl.u32 %v863, 7
    %v865 = vsub.s32 1, %v864
    %v866 = vrot.slane %v665, %v865
    %v867 = vmul.f32 %v866, %v425
    %v868 = vadd.f32 %v862, %v867
    %s869 = scalar_lea.vmem %s4, 8
    %v870 = vld [vmem:[%s869] sm:$0xff]
    %872 = vset.pattern.permute.xlu0 0
    %873 = vperm.xlu0 %872, %v870
    %v874 = vpop.permute.xlu0 %873
    %v876 = vadd.f32 %v868, %v874
    %v877 = vxor.u32 %v876, 2147483648
    %v878 = vmul.f32 %v877, 1.442695
    %v879 = vpow.pop %v878
    %v880 = vadd.f32 %v879, 1.0
    %v881 = vrcp.pop %v880
    %v882 = vmul.f32 1.0, %v881
    %v883 = vlaneseq
    %v884 = vshrl.u32 %v883, 7
    %v885 = vsub.s32 2, %v884
    %v886 = vrot.slane %v440, %v885
    %v887 = vmul.f32 %v886, %v95
    %v888 = vlaneseq
    %v889 = vshrl.u32 %v888, 7
    %v890 = vsub.s32 2, %v889
    %v891 = vrot.slane %v455, %v890
    %v892 = vmul.f32 %v891, %v117
    %v893 = vadd.f32 %v887, %v892
    %v894 = vlaneseq
    %v895 = vshrl.u32 %v894, 7
    %v896 = vsub.s32 2, %v895
    %v897 = vrot.slane %v470, %v896
    %v898 = vmul.f32 %v897, %v139
    %v899 = vadd.f32 %v893, %v898
    %v900 = vlaneseq
    %v901 = vshrl.u32 %v900, 7
    %v902 = vsub.s32 2, %v901
    %v903 = vrot.slane %v485, %v902
    %v904 = vmul.f32 %v903, %v161
    %v905 = vadd.f32 %v899, %v904
    %v906 = vlaneseq
    %v907 = vshrl.u32 %v906, 7
    %v908 = vsub.s32 2, %v907
    %v909 = vrot.slane %v500, %v908
    %v910 = vmul.f32 %v909, %v183
    %v911 = vadd.f32 %v905, %v910
    %v912 = vlaneseq
    %v913 = vshrl.u32 %v912, 7
    %v914 = vsub.s32 2, %v913
    %v915 = vrot.slane %v515, %v914
    %v916 = vmul.f32 %v915, %v205
    %v917 = vadd.f32 %v911, %v916
    %v918 = vlaneseq
    %v919 = vshrl.u32 %v918, 7
    %v920 = vsub.s32 2, %v919
    %v921 = vrot.slane %v530, %v920
    %v922 = vmul.f32 %v921, %v227
    %v923 = vadd.f32 %v917, %v922
    %v924 = vlaneseq
    %v925 = vshrl.u32 %v924, 7
    %v926 = vsub.s32 2, %v925
    %v927 = vrot.slane %v545, %v926
    %v928 = vmul.f32 %v927, %v249
    %v929 = vadd.f32 %v923, %v928
    %v930 = vlaneseq
    %v931 = vshrl.u32 %v930, 7
    %v932 = vsub.s32 2, %v931
    %v933 = vrot.slane %v560, %v932
    %v934 = vmul.f32 %v933, %v271
    %v935 = vadd.f32 %v929, %v934
    %v936 = vlaneseq
    %v937 = vshrl.u32 %v936, 7
    %v938 = vsub.s32 2, %v937
    %v939 = vrot.slane %v575, %v938
    %v940 = vmul.f32 %v939, %v293
    %v941 = vadd.f32 %v935, %v940
    %v942 = vlaneseq
    %v943 = vshrl.u32 %v942, 7
    %v944 = vsub.s32 2, %v943
    %v945 = vrot.slane %v590, %v944
    %v946 = vmul.f32 %v945, %v315
    %v947 = vadd.f32 %v941, %v946
    %v948 = vlaneseq
    %v949 = vshrl.u32 %v948, 7
    %v950 = vsub.s32 2, %v949
    %v951 = vrot.slane %v605, %v950
    %v952 = vmul.f32 %v951, %v337
    %v953 = vadd.f32 %v947, %v952
    %v954 = vlaneseq
    %v955 = vshrl.u32 %v954, 7
    %v956 = vsub.s32 2, %v955
    %v957 = vrot.slane %v620, %v956
    %v958 = vmul.f32 %v957, %v359
    %v959 = vadd.f32 %v953, %v958
    %v960 = vlaneseq
    %v961 = vshrl.u32 %v960, 7
    %v962 = vsub.s32 2, %v961
    %v963 = vrot.slane %v635, %v962
    %v964 = vmul.f32 %v963, %v381
    %v965 = vadd.f32 %v959, %v964
    %v966 = vlaneseq
    %v967 = vshrl.u32 %v966, 7
    %v968 = vsub.s32 2, %v967
    %v969 = vrot.slane %v650, %v968
    %v970 = vmul.f32 %v969, %v403
    %v971 = vadd.f32 %v965, %v970
    %v972 = vlaneseq
    %v973 = vshrl.u32 %v972, 7
    %v974 = vsub.s32 2, %v973
    %v975 = vrot.slane %v665, %v974
    %v976 = vmul.f32 %v975, %v425
    %v977 = vadd.f32 %v971, %v976
    %s978 = scalar_lea.vmem %s4, 16
    %v979 = vld [vmem:[%s978] sm:$0xff]
    %981 = vset.pattern.permute.xlu0 0
    %982 = vperm.xlu0 %981, %v979
    %v983 = vpop.permute.xlu0 %982
    %v985 = vadd.f32 %v977, %v983
    %v986 = vxor.u32 %v985, 2147483648
    %v987 = vmul.f32 %v986, 1.442695
    %v988 = vpow.pop %v987
    %v989 = vadd.f32 %v988, 1.0
    %v990 = vrcp.pop %v989
    %v991 = vmul.f32 1.0, %v990
    %v992 = vlaneseq
    %v993 = vshrl.u32 %v992, 7
    %v994 = vsub.s32 3, %v993
    %v995 = vrot.slane %v440, %v994
    %v996 = vmul.f32 %v995, %v95
    %v997 = vlaneseq
    %v998 = vshrl.u32 %v997, 7
    %v999 = vsub.s32 3, %v998
    %v1000 = vrot.slane %v455, %v999
    %v1001 = vmul.f32 %v1000, %v117
    %v1002 = vadd.f32 %v996, %v1001
    %v1003 = vlaneseq
    %v1004 = vshrl.u32 %v1003, 7
    %v1005 = vsub.s32 3, %v1004
    %v1006 = vrot.slane %v470, %v1005
    %v1007 = vmul.f32 %v1006, %v139
    %v1008 = vadd.f32 %v1002, %v1007
    %v1009 = vlaneseq
    %v1010 = vshrl.u32 %v1009, 7
    %v1011 = vsub.s32 3, %v1010
    %v1012 = vrot.slane %v485, %v1011
    %v1013 = vmul.f32 %v1012, %v161
    %v1014 = vadd.f32 %v1008, %v1013
    %v1015 = vlaneseq
    %v1016 = vshrl.u32 %v1015, 7
    %v1017 = vsub.s32 3, %v1016
    %v1018 = vrot.slane %v500, %v1017
    %v1019 = vmul.f32 %v1018, %v183
    %v1020 = vadd.f32 %v1014, %v1019
    %v1021 = vlaneseq
    %v1022 = vshrl.u32 %v1021, 7
    %v1023 = vsub.s32 3, %v1022
    %v1024 = vrot.slane %v515, %v1023
    %v1025 = vmul.f32 %v1024, %v205
    %v1026 = vadd.f32 %v1020, %v1025
    %v1027 = vlaneseq
    %v1028 = vshrl.u32 %v1027, 7
    %v1029 = vsub.s32 3, %v1028
    %v1030 = vrot.slane %v530, %v1029
    %v1031 = vmul.f32 %v1030, %v227
    %v1032 = vadd.f32 %v1026, %v1031
    %v1033 = vlaneseq
    %v1034 = vshrl.u32 %v1033, 7
    %v1035 = vsub.s32 3, %v1034
    %v1036 = vrot.slane %v545, %v1035
    %v1037 = vmul.f32 %v1036, %v249
    %v1038 = vadd.f32 %v1032, %v1037
    %v1039 = vlaneseq
    %v1040 = vshrl.u32 %v1039, 7
    %v1041 = vsub.s32 3, %v1040
    %v1042 = vrot.slane %v560, %v1041
    %v1043 = vmul.f32 %v1042, %v271
    %v1044 = vadd.f32 %v1038, %v1043
    %v1045 = vlaneseq
    %v1046 = vshrl.u32 %v1045, 7
    %v1047 = vsub.s32 3, %v1046
    %v1048 = vrot.slane %v575, %v1047
    %v1049 = vmul.f32 %v1048, %v293
    %v1050 = vadd.f32 %v1044, %v1049
    %v1051 = vlaneseq
    %v1052 = vshrl.u32 %v1051, 7
    %v1053 = vsub.s32 3, %v1052
    %v1054 = vrot.slane %v590, %v1053
    %v1055 = vmul.f32 %v1054, %v315
    %v1056 = vadd.f32 %v1050, %v1055
    %v1057 = vlaneseq
    %v1058 = vshrl.u32 %v1057, 7
    %v1059 = vsub.s32 3, %v1058
    %v1060 = vrot.slane %v605, %v1059
    %v1061 = vmul.f32 %v1060, %v337
    %v1062 = vadd.f32 %v1056, %v1061
    %v1063 = vlaneseq
    %v1064 = vshrl.u32 %v1063, 7
    %v1065 = vsub.s32 3, %v1064
    %v1066 = vrot.slane %v620, %v1065
    %v1067 = vmul.f32 %v1066, %v359
    %v1068 = vadd.f32 %v1062, %v1067
    %v1069 = vlaneseq
    %v1070 = vshrl.u32 %v1069, 7
    %v1071 = vsub.s32 3, %v1070
    %v1072 = vrot.slane %v635, %v1071
    %v1073 = vmul.f32 %v1072, %v381
    %v1074 = vadd.f32 %v1068, %v1073
    %v1075 = vlaneseq
    %v1076 = vshrl.u32 %v1075, 7
    %v1077 = vsub.s32 3, %v1076
    %v1078 = vrot.slane %v650, %v1077
    %v1079 = vmul.f32 %v1078, %v403
    %v1080 = vadd.f32 %v1074, %v1079
    %v1081 = vlaneseq
    %v1082 = vshrl.u32 %v1081, 7
    %v1083 = vsub.s32 3, %v1082
    %v1084 = vrot.slane %v665, %v1083
    %v1085 = vmul.f32 %v1084, %v425
    %v1086 = vadd.f32 %v1080, %v1085
    %s1087 = scalar_lea.vmem %s4, 24
    %v1088 = vld [vmem:[%s1087] sm:$0xff]
    %1090 = vset.pattern.permute.xlu0 0
    %1091 = vperm.xlu0 %1090, %v1088
    %v1092 = vpop.permute.xlu0 %1091
    %v1094 = vadd.f32 %v1086, %v1092
    %v1095 = vxor.u32 %v1094, 2147483648
    %v1096 = vmul.f32 %v1095, 1.442695
    %v1097 = vpow.pop %v1096
    %v1098 = vadd.f32 %v1097, 1.0
    %v1099 = vrcp.pop %v1098
    %v1100 = vmul.f32 1.0, %v1099
    %v1101 = vlaneseq
    %v1102 = vshrl.u32 %v1101, 7
    %v1103 = vsub.s32 4, %v1102
    %v1104 = vrot.slane %v440, %v1103
    %v1105 = vmul.f32 %v1104, %v95
    %v1106 = vlaneseq
    %v1107 = vshrl.u32 %v1106, 7
    %v1108 = vsub.s32 4, %v1107
    %v1109 = vrot.slane %v455, %v1108
    %v1110 = vmul.f32 %v1109, %v117
    %v1111 = vadd.f32 %v1105, %v1110
    %v1112 = vlaneseq
    %v1113 = vshrl.u32 %v1112, 7
    %v1114 = vsub.s32 4, %v1113
    %v1115 = vrot.slane %v470, %v1114
    %v1116 = vmul.f32 %v1115, %v139
    %v1117 = vadd.f32 %v1111, %v1116
    %v1118 = vlaneseq
    %v1119 = vshrl.u32 %v1118, 7
    %v1120 = vsub.s32 4, %v1119
    %v1121 = vrot.slane %v485, %v1120
    %v1122 = vmul.f32 %v1121, %v161
    %v1123 = vadd.f32 %v1117, %v1122
    %v1124 = vlaneseq
    %v1125 = vshrl.u32 %v1124, 7
    %v1126 = vsub.s32 4, %v1125
    %v1127 = vrot.slane %v500, %v1126
    %v1128 = vmul.f32 %v1127, %v183
    %v1129 = vadd.f32 %v1123, %v1128
    %v1130 = vlaneseq
    %v1131 = vshrl.u32 %v1130, 7
    %v1132 = vsub.s32 4, %v1131
    %v1133 = vrot.slane %v515, %v1132
    %v1134 = vmul.f32 %v1133, %v205
    %v1135 = vadd.f32 %v1129, %v1134
    %v1136 = vlaneseq
    %v1137 = vshrl.u32 %v1136, 7
    %v1138 = vsub.s32 4, %v1137
    %v1139 = vrot.slane %v530, %v1138
    %v1140 = vmul.f32 %v1139, %v227
    %v1141 = vadd.f32 %v1135, %v1140
    %v1142 = vlaneseq
    %v1143 = vshrl.u32 %v1142, 7
    %v1144 = vsub.s32 4, %v1143
    %v1145 = vrot.slane %v545, %v1144
    %v1146 = vmul.f32 %v1145, %v249
    %v1147 = vadd.f32 %v1141, %v1146
    %v1148 = vlaneseq
    %v1149 = vshrl.u32 %v1148, 7
    %v1150 = vsub.s32 4, %v1149
    %v1151 = vrot.slane %v560, %v1150
    %v1152 = vmul.f32 %v1151, %v271
    %v1153 = vadd.f32 %v1147, %v1152
    %v1154 = vlaneseq
    %v1155 = vshrl.u32 %v1154, 7
    %v1156 = vsub.s32 4, %v1155
    %v1157 = vrot.slane %v575, %v1156
    %v1158 = vmul.f32 %v1157, %v293
    %v1159 = vadd.f32 %v1153, %v1158
    %v1160 = vlaneseq
    %v1161 = vshrl.u32 %v1160, 7
    %v1162 = vsub.s32 4, %v1161
    %v1163 = vrot.slane %v590, %v1162
    %v1164 = vmul.f32 %v1163, %v315
    %v1165 = vadd.f32 %v1159, %v1164
    %v1166 = vlaneseq
    %v1167 = vshrl.u32 %v1166, 7
    %v1168 = vsub.s32 4, %v1167
    %v1169 = vrot.slane %v605, %v1168
    %v1170 = vmul.f32 %v1169, %v337
    %v1171 = vadd.f32 %v1165, %v1170
    %v1172 = vlaneseq
    %v1173 = vshrl.u32 %v1172, 7
    %v1174 = vsub.s32 4, %v1173
    %v1175 = vrot.slane %v620, %v1174
    %v1176 = vmul.f32 %v1175, %v359
    %v1177 = vadd.f32 %v1171, %v1176
    %v1178 = vlaneseq
    %v1179 = vshrl.u32 %v1178, 7
    %v1180 = vsub.s32 4, %v1179
    %v1181 = vrot.slane %v635, %v1180
    %v1182 = vmul.f32 %v1181, %v381
    %v1183 = vadd.f32 %v1177, %v1182
    %v1184 = vlaneseq
    %v1185 = vshrl.u32 %v1184, 7
    %v1186 = vsub.s32 4, %v1185
    %v1187 = vrot.slane %v650, %v1186
    %v1188 = vmul.f32 %v1187, %v403
    %v1189 = vadd.f32 %v1183, %v1188
    %v1190 = vlaneseq
    %v1191 = vshrl.u32 %v1190, 7
    %v1192 = vsub.s32 4, %v1191
    %v1193 = vrot.slane %v665, %v1192
    %v1194 = vmul.f32 %v1193, %v425
    %v1195 = vadd.f32 %v1189, %v1194
    %s1196 = scalar_lea.vmem %s4, 32
    %v1197 = vld [vmem:[%s1196] sm:$0xff]
    %1199 = vset.pattern.permute.xlu0 0
    %1200 = vperm.xlu0 %1199, %v1197
    %v1201 = vpop.permute.xlu0 %1200
    %v1203 = vadd.f32 %v1195, %v1201
    %v1204 = vxor.u32 %v1203, 2147483648
    %v1205 = vmul.f32 %v1204, 1.442695
    %v1206 = vpow.pop %v1205
    %v1207 = vadd.f32 %v1206, 1.0
    %v1208 = vrcp.pop %v1207
    %v1209 = vmul.f32 1.0, %v1208
    %v1210 = vlaneseq
    %v1211 = vshrl.u32 %v1210, 7
    %v1212 = vsub.s32 5, %v1211
    %v1213 = vrot.slane %v440, %v1212
    %v1214 = vmul.f32 %v1213, %v95
    %v1215 = vlaneseq
    %v1216 = vshrl.u32 %v1215, 7
    %v1217 = vsub.s32 5, %v1216
    %v1218 = vrot.slane %v455, %v1217
    %v1219 = vmul.f32 %v1218, %v117
    %v1220 = vadd.f32 %v1214, %v1219
    %v1221 = vlaneseq
    %v1222 = vshrl.u32 %v1221, 7
    %v1223 = vsub.s32 5, %v1222
    %v1224 = vrot.slane %v470, %v1223
    %v1225 = vmul.f32 %v1224, %v139
    %v1226 = vadd.f32 %v1220, %v1225
    %v1227 = vlaneseq
    %v1228 = vshrl.u32 %v1227, 7
    %v1229 = vsub.s32 5, %v1228
    %v1230 = vrot.slane %v485, %v1229
    %v1231 = vmul.f32 %v1230, %v161
    %v1232 = vadd.f32 %v1226, %v1231
    %v1233 = vlaneseq
    %v1234 = vshrl.u32 %v1233, 7
    %v1235 = vsub.s32 5, %v1234
    %v1236 = vrot.slane %v500, %v1235
    %v1237 = vmul.f32 %v1236, %v183
    %v1238 = vadd.f32 %v1232, %v1237
    %v1239 = vlaneseq
    %v1240 = vshrl.u32 %v1239, 7
    %v1241 = vsub.s32 5, %v1240
    %v1242 = vrot.slane %v515, %v1241
    %v1243 = vmul.f32 %v1242, %v205
    %v1244 = vadd.f32 %v1238, %v1243
    %v1245 = vlaneseq
    %v1246 = vshrl.u32 %v1245, 7
    %v1247 = vsub.s32 5, %v1246
    %v1248 = vrot.slane %v530, %v1247
    %v1249 = vmul.f32 %v1248, %v227
    %v1250 = vadd.f32 %v1244, %v1249
    %v1251 = vlaneseq
    %v1252 = vshrl.u32 %v1251, 7
    %v1253 = vsub.s32 5, %v1252
    %v1254 = vrot.slane %v545, %v1253
    %v1255 = vmul.f32 %v1254, %v249
    %v1256 = vadd.f32 %v1250, %v1255
    %v1257 = vlaneseq
    %v1258 = vshrl.u32 %v1257, 7
    %v1259 = vsub.s32 5, %v1258
    %v1260 = vrot.slane %v560, %v1259
    %v1261 = vmul.f32 %v1260, %v271
    %v1262 = vadd.f32 %v1256, %v1261
    %v1263 = vlaneseq
    %v1264 = vshrl.u32 %v1263, 7
    %v1265 = vsub.s32 5, %v1264
    %v1266 = vrot.slane %v575, %v1265
    %v1267 = vmul.f32 %v1266, %v293
    %v1268 = vadd.f32 %v1262, %v1267
    %v1269 = vlaneseq
    %v1270 = vshrl.u32 %v1269, 7
    %v1271 = vsub.s32 5, %v1270
    %v1272 = vrot.slane %v590, %v1271
    %v1273 = vmul.f32 %v1272, %v315
    %v1274 = vadd.f32 %v1268, %v1273
    %v1275 = vlaneseq
    %v1276 = vshrl.u32 %v1275, 7
    %v1277 = vsub.s32 5, %v1276
    %v1278 = vrot.slane %v605, %v1277
    %v1279 = vmul.f32 %v1278, %v337
    %v1280 = vadd.f32 %v1274, %v1279
    %v1281 = vlaneseq
    %v1282 = vshrl.u32 %v1281, 7
    %v1283 = vsub.s32 5, %v1282
    %v1284 = vrot.slane %v620, %v1283
    %v1285 = vmul.f32 %v1284, %v359
    %v1286 = vadd.f32 %v1280, %v1285
    %v1287 = vlaneseq
    %v1288 = vshrl.u32 %v1287, 7
    %v1289 = vsub.s32 5, %v1288
    %v1290 = vrot.slane %v635, %v1289
    %v1291 = vmul.f32 %v1290, %v381
    %v1292 = vadd.f32 %v1286, %v1291
    %v1293 = vlaneseq
    %v1294 = vshrl.u32 %v1293, 7
    %v1295 = vsub.s32 5, %v1294
    %v1296 = vrot.slane %v650, %v1295
    %v1297 = vmul.f32 %v1296, %v403
    %v1298 = vadd.f32 %v1292, %v1297
    %v1299 = vlaneseq
    %v1300 = vshrl.u32 %v1299, 7
    %v1301 = vsub.s32 5, %v1300
    %v1302 = vrot.slane %v665, %v1301
    %v1303 = vmul.f32 %v1302, %v425
    %v1304 = vadd.f32 %v1298, %v1303
    %s1305 = scalar_lea.vmem %s4, 40
    %v1306 = vld [vmem:[%s1305] sm:$0xff]
    %1308 = vset.pattern.permute.xlu0 0
    %1309 = vperm.xlu0 %1308, %v1306
    %v1310 = vpop.permute.xlu0 %1309
    %v1312 = vadd.f32 %v1304, %v1310
    %v1313 = vxor.u32 %v1312, 2147483648
    %v1314 = vmul.f32 %v1313, 1.442695
    %v1315 = vpow.pop %v1314
    %v1316 = vadd.f32 %v1315, 1.0
    %v1317 = vrcp.pop %v1316
    %v1318 = vmul.f32 1.0, %v1317
    %v1319 = vlaneseq
    %v1320 = vshrl.u32 %v1319, 7
    %v1321 = vsub.s32 6, %v1320
    %v1322 = vrot.slane %v440, %v1321
    %v1323 = vmul.f32 %v1322, %v95
    %v1324 = vlaneseq
    %v1325 = vshrl.u32 %v1324, 7
    %v1326 = vsub.s32 6, %v1325
    %v1327 = vrot.slane %v455, %v1326
    %v1328 = vmul.f32 %v1327, %v117
    %v1329 = vadd.f32 %v1323, %v1328
    %v1330 = vlaneseq
    %v1331 = vshrl.u32 %v1330, 7
    %v1332 = vsub.s32 6, %v1331
    %v1333 = vrot.slane %v470, %v1332
    %v1334 = vmul.f32 %v1333, %v139
    %v1335 = vadd.f32 %v1329, %v1334
    %v1336 = vlaneseq
    %v1337 = vshrl.u32 %v1336, 7
    %v1338 = vsub.s32 6, %v1337
    %v1339 = vrot.slane %v485, %v1338
    %v1340 = vmul.f32 %v1339, %v161
    %v1341 = vadd.f32 %v1335, %v1340
    %v1342 = vlaneseq
    %v1343 = vshrl.u32 %v1342, 7
    %v1344 = vsub.s32 6, %v1343
    %v1345 = vrot.slane %v500, %v1344
    %v1346 = vmul.f32 %v1345, %v183
    %v1347 = vadd.f32 %v1341, %v1346
    %v1348 = vlaneseq
    %v1349 = vshrl.u32 %v1348, 7
    %v1350 = vsub.s32 6, %v1349
    %v1351 = vrot.slane %v515, %v1350
    %v1352 = vmul.f32 %v1351, %v205
    %v1353 = vadd.f32 %v1347, %v1352
    %v1354 = vlaneseq
    %v1355 = vshrl.u32 %v1354, 7
    %v1356 = vsub.s32 6, %v1355
    %v1357 = vrot.slane %v530, %v1356
    %v1358 = vmul.f32 %v1357, %v227
    %v1359 = vadd.f32 %v1353, %v1358
    %v1360 = vlaneseq
    %v1361 = vshrl.u32 %v1360, 7
    %v1362 = vsub.s32 6, %v1361
    %v1363 = vrot.slane %v545, %v1362
    %v1364 = vmul.f32 %v1363, %v249
    %v1365 = vadd.f32 %v1359, %v1364
    %v1366 = vlaneseq
    %v1367 = vshrl.u32 %v1366, 7
    %v1368 = vsub.s32 6, %v1367
    %v1369 = vrot.slane %v560, %v1368
    %v1370 = vmul.f32 %v1369, %v271
    %v1371 = vadd.f32 %v1365, %v1370
    %v1372 = vlaneseq
    %v1373 = vshrl.u32 %v1372, 7
    %v1374 = vsub.s32 6, %v1373
    %v1375 = vrot.slane %v575, %v1374
    %v1376 = vmul.f32 %v1375, %v293
    %v1377 = vadd.f32 %v1371, %v1376
    %v1378 = vlaneseq
    %v1379 = vshrl.u32 %v1378, 7
    %v1380 = vsub.s32 6, %v1379
    %v1381 = vrot.slane %v590, %v1380
    %v1382 = vmul.f32 %v1381, %v315
    %v1383 = vadd.f32 %v1377, %v1382
    %v1384 = vlaneseq
    %v1385 = vshrl.u32 %v1384, 7
    %v1386 = vsub.s32 6, %v1385
    %v1387 = vrot.slane %v605, %v1386
    %v1388 = vmul.f32 %v1387, %v337
    %v1389 = vadd.f32 %v1383, %v1388
    %v1390 = vlaneseq
    %v1391 = vshrl.u32 %v1390, 7
    %v1392 = vsub.s32 6, %v1391
    %v1393 = vrot.slane %v620, %v1392
    %v1394 = vmul.f32 %v1393, %v359
    %v1395 = vadd.f32 %v1389, %v1394
    %v1396 = vlaneseq
    %v1397 = vshrl.u32 %v1396, 7
    %v1398 = vsub.s32 6, %v1397
    %v1399 = vrot.slane %v635, %v1398
    %v1400 = vmul.f32 %v1399, %v381
    %v1401 = vadd.f32 %v1395, %v1400
    %v1402 = vlaneseq
    %v1403 = vshrl.u32 %v1402, 7
    %v1404 = vsub.s32 6, %v1403
    %v1405 = vrot.slane %v650, %v1404
    %v1406 = vmul.f32 %v1405, %v403
    %v1407 = vadd.f32 %v1401, %v1406
    %v1408 = vlaneseq
    %v1409 = vshrl.u32 %v1408, 7
    %v1410 = vsub.s32 6, %v1409
    %v1411 = vrot.slane %v665, %v1410
    %v1412 = vmul.f32 %v1411, %v425
    %v1413 = vadd.f32 %v1407, %v1412
    %s1414 = scalar_lea.vmem %s4, 48
    %v1415 = vld [vmem:[%s1414] sm:$0xff]
    %1417 = vset.pattern.permute.xlu0 0
    %1418 = vperm.xlu0 %1417, %v1415
    %v1419 = vpop.permute.xlu0 %1418
    %v1421 = vadd.f32 %v1413, %v1419
    %v1422 = vxor.u32 %v1421, 2147483648
    %v1423 = vmul.f32 %v1422, 1.442695
    %v1424 = vpow.pop %v1423
    %v1425 = vadd.f32 %v1424, 1.0
    %v1426 = vrcp.pop %v1425
    %v1427 = vmul.f32 1.0, %v1426
    %v1428 = vlaneseq
    %v1429 = vshrl.u32 %v1428, 7
    %v1430 = vsub.s32 7, %v1429
    %v1431 = vrot.slane %v440, %v1430
    %v1432 = vmul.f32 %v1431, %v95
    %v1433 = vlaneseq
    %v1434 = vshrl.u32 %v1433, 7
    %v1435 = vsub.s32 7, %v1434
    %v1436 = vrot.slane %v455, %v1435
    %v1437 = vmul.f32 %v1436, %v117
    %v1438 = vadd.f32 %v1432, %v1437
    %v1439 = vlaneseq
    %v1440 = vshrl.u32 %v1439, 7
    %v1441 = vsub.s32 7, %v1440
    %v1442 = vrot.slane %v470, %v1441
    %v1443 = vmul.f32 %v1442, %v139
    %v1444 = vadd.f32 %v1438, %v1443
    %v1445 = vlaneseq
    %v1446 = vshrl.u32 %v1445, 7
    %v1447 = vsub.s32 7, %v1446
    %v1448 = vrot.slane %v485, %v1447
    %v1449 = vmul.f32 %v1448, %v161
    %v1450 = vadd.f32 %v1444, %v1449
    %v1451 = vlaneseq
    %v1452 = vshrl.u32 %v1451, 7
    %v1453 = vsub.s32 7, %v1452
    %v1454 = vrot.slane %v500, %v1453
    %v1455 = vmul.f32 %v1454, %v183
    %v1456 = vadd.f32 %v1450, %v1455
    %v1457 = vlaneseq
    %v1458 = vshrl.u32 %v1457, 7
    %v1459 = vsub.s32 7, %v1458
    %v1460 = vrot.slane %v515, %v1459
    %v1461 = vmul.f32 %v1460, %v205
    %v1462 = vadd.f32 %v1456, %v1461
    %v1463 = vlaneseq
    %v1464 = vshrl.u32 %v1463, 7
    %v1465 = vsub.s32 7, %v1464
    %v1466 = vrot.slane %v530, %v1465
    %v1467 = vmul.f32 %v1466, %v227
    %v1468 = vadd.f32 %v1462, %v1467
    %v1469 = vlaneseq
    %v1470 = vshrl.u32 %v1469, 7
    %v1471 = vsub.s32 7, %v1470
    %v1472 = vrot.slane %v545, %v1471
    %v1473 = vmul.f32 %v1472, %v249
    %v1474 = vadd.f32 %v1468, %v1473
    %v1475 = vlaneseq
    %v1476 = vshrl.u32 %v1475, 7
    %v1477 = vsub.s32 7, %v1476
    %v1478 = vrot.slane %v560, %v1477
    %v1479 = vmul.f32 %v1478, %v271
    %v1480 = vadd.f32 %v1474, %v1479
    %v1481 = vlaneseq
    %v1482 = vshrl.u32 %v1481, 7
    %v1483 = vsub.s32 7, %v1482
    %v1484 = vrot.slane %v575, %v1483
    %v1485 = vmul.f32 %v1484, %v293
    %v1486 = vadd.f32 %v1480, %v1485
    %v1487 = vlaneseq
    %v1488 = vshrl.u32 %v1487, 7
    %v1489 = vsub.s32 7, %v1488
    %v1490 = vrot.slane %v590, %v1489
    %v1491 = vmul.f32 %v1490, %v315
    %v1492 = vadd.f32 %v1486, %v1491
    %v1493 = vlaneseq
    %v1494 = vshrl.u32 %v1493, 7
    %v1495 = vsub.s32 7, %v1494
    %v1496 = vrot.slane %v605, %v1495
    %v1497 = vmul.f32 %v1496, %v337
    %v1498 = vadd.f32 %v1492, %v1497
    %v1499 = vlaneseq
    %v1500 = vshrl.u32 %v1499, 7
    %v1501 = vsub.s32 7, %v1500
    %v1502 = vrot.slane %v620, %v1501
    %v1503 = vmul.f32 %v1502, %v359
    %v1504 = vadd.f32 %v1498, %v1503
    %v1505 = vlaneseq
    %v1506 = vshrl.u32 %v1505, 7
    %v1507 = vsub.s32 7, %v1506
    %v1508 = vrot.slane %v635, %v1507
    %v1509 = vmul.f32 %v1508, %v381
    %v1510 = vadd.f32 %v1504, %v1509
    %v1511 = vlaneseq
    %v1512 = vshrl.u32 %v1511, 7
    %v1513 = vsub.s32 7, %v1512
    %v1514 = vrot.slane %v650, %v1513
    %v1515 = vmul.f32 %v1514, %v403
    %v1516 = vadd.f32 %v1510, %v1515
    %v1517 = vlaneseq
    %v1518 = vshrl.u32 %v1517, 7
    %v1519 = vsub.s32 7, %v1518
    %v1520 = vrot.slane %v665, %v1519
    %v1521 = vmul.f32 %v1520, %v425
    %v1522 = vadd.f32 %v1516, %v1521
    %s1523 = scalar_lea.vmem %s4, 56
    %v1524 = vld [vmem:[%s1523] sm:$0xff]
    %1526 = vset.pattern.permute.xlu0 0
    %1527 = vperm.xlu0 %1526, %v1524
    %v1528 = vpop.permute.xlu0 %1527
    %v1530 = vadd.f32 %v1522, %v1528
    %v1531 = vxor.u32 %v1530, 2147483648
    %v1532 = vmul.f32 %v1531, 1.442695
    %v1533 = vpow.pop %v1532
    %v1534 = vadd.f32 %v1533, 1.0
    %v1535 = vrcp.pop %v1534
    %v1536 = vmul.f32 1.0, %v1535
    %s1537 = sld [smem:[#allocation7]]
    %v1538 = vstv %s1537
    %v1539 = vmul.f32 %v773, %v1538
    %s1540 = sld [smem:[#allocation7 + $0x1]]
    %v1541 = vstv %s1540
    %v1542 = vmul.f32 %v882, %v1541
    %v1543 = vadd.f32 %v1539, %v1542
    %s1544 = sld [smem:[#allocation7 + $0x2]]
    %v1545 = vstv %s1544
    %v1546 = vmul.f32 %v991, %v1545
    %v1547 = vadd.f32 %v1543, %v1546
    %s1548 = sld [smem:[#allocation7 + $0x3]]
    %v1549 = vstv %s1548
    %v1550 = vmul.f32 %v1100, %v1549
    %v1551 = vadd.f32 %v1547, %v1550
    %s1552 = sld [smem:[#allocation7 + $0x4]]
    %v1553 = vstv %s1552
    %v1554 = vmul.f32 %v1209, %v1553
    %v1555 = vadd.f32 %v1551, %v1554
    %s1556 = sld [smem:[#allocation7 + $0x5]]
    %v1557 = vstv %s1556
    %v1558 = vmul.f32 %v1318, %v1557
    %v1559 = vadd.f32 %v1555, %v1558
    %s1560 = sld [smem:[#allocation7 + $0x6]]
    %v1561 = vstv %s1560
    %v1562 = vmul.f32 %v1427, %v1561
    %v1563 = vadd.f32 %v1559, %v1562
    %s1564 = sld [smem:[#allocation7 + $0x7]]
    %v1565 = vstv %s1564
    %v1566 = vmul.f32 %v1536, %v1565
    %v1567 = vadd.f32 %v1563, %v1566
    %s1568 = sld [smem:[#allocation7 + $0x8]]
    %v1569 = vstv %s1568
    %v1570 = vmul.f32 %v773, %v1569
    %s1571 = sld [smem:[#allocation7 + $0x9]]
    %v1572 = vstv %s1571
    %v1573 = vmul.f32 %v882, %v1572
    %v1574 = vadd.f32 %v1570, %v1573
    %s1575 = sld [smem:[#allocation7 + $0xa]]
    %v1576 = vstv %s1575
    %v1577 = vmul.f32 %v991, %v1576
    %v1578 = vadd.f32 %v1574, %v1577
    %s1579 = sld [smem:[#allocation7 + $0xb]]
    %v1580 = vstv %s1579
    %v1581 = vmul.f32 %v1100, %v1580
    %v1582 = vadd.f32 %v1578, %v1581
    %s1583 = sld [smem:[#allocation7 + $0xc]]
    %v1584 = vstv %s1583
    %v1585 = vmul.f32 %v1209, %v1584
    %v1586 = vadd.f32 %v1582, %v1585
    %s1587 = sld [smem:[#allocation7 + $0xd]]
    %v1588 = vstv %s1587
    %v1589 = vmul.f32 %v1318, %v1588
    %v1590 = vadd.f32 %v1586, %v1589
    %s1591 = sld [smem:[#allocation7 + $0xe]]
    %v1592 = vstv %s1591
    %v1593 = vmul.f32 %v1427, %v1592
    %v1594 = vadd.f32 %v1590, %v1593
    %s1595 = sld [smem:[#allocation7 + $0xf]]
    %v1596 = vstv %s1595
    %v1597 = vmul.f32 %v1536, %v1596
    %v1598 = vadd.f32 %v1594, %v1597
    %s1599 = sld [smem:[#allocation7 + $0x10]]
    %v1600 = vstv %s1599
    %v1601 = vmul.f32 %v773, %v1600
    %s1602 = sld [smem:[#allocation7 + $0x11]]
    %v1603 = vstv %s1602
    %v1604 = vmul.f32 %v882, %v1603
    %v1605 = vadd.f32 %v1601, %v1604
    %s1606 = sld [smem:[#allocation7 + $0x12]]
    %v1607 = vstv %s1606
    %v1608 = vmul.f32 %v991, %v1607
    %v1609 = vadd.f32 %v1605, %v1608
    %s1610 = sld [smem:[#allocation7 + $0x13]]
    %v1611 = vstv %s1610
    %v1612 = vmul.f32 %v1100, %v1611
    %v1613 = vadd.f32 %v1609, %v1612
    %s1614 = sld [smem:[#allocation7 + $0x14]]
    %v1615 = vstv %s1614
    %v1616 = vmul.f32 %v1209, %v1615
    %v1617 = vadd.f32 %v1613, %v1616
    %s1618 = sld [smem:[#allocation7 + $0x15]]
    %v1619 = vstv %s1618
    %v1620 = vmul.f32 %v1318, %v1619
    %v1621 = vadd.f32 %v1617, %v1620
    %s1622 = sld [smem:[#allocation7 + $0x16]]
    %v1623 = vstv %s1622
    %v1624 = vmul.f32 %v1427, %v1623
    %v1625 = vadd.f32 %v1621, %v1624
    %s1626 = sld [smem:[#allocation7 + $0x17]]
    %v1627 = vstv %s1626
    %v1628 = vmul.f32 %v1536, %v1627
    %v1629 = vadd.f32 %v1625, %v1628
    %s1630 = sld [smem:[#allocation7 + $0x18]]
    %v1631 = vstv %s1630
    %v1632 = vmul.f32 %v773, %v1631
    %s1633 = sld [smem:[#allocation7 + $0x19]]
    %v1634 = vstv %s1633
    %v1635 = vmul.f32 %v882, %v1634
    %v1636 = vadd.f32 %v1632, %v1635
    %s1637 = sld [smem:[#allocation7 + $0x1a]]
    %v1638 = vstv %s1637
    %v1639 = vmul.f32 %v991, %v1638
    %v1640 = vadd.f32 %v1636, %v1639
    %s1641 = sld [smem:[#allocation7 + $0x1b]]
    %v1642 = vstv %s1641
    %v1643 = vmul.f32 %v1100, %v1642
    %v1644 = vadd.f32 %v1640, %v1643
    %s1645 = sld [smem:[#allocation7 + $0x1c]]
    %v1646 = vstv %s1645
    %v1647 = vmul.f32 %v1209, %v1646
    %v1648 = vadd.f32 %v1644, %v1647
    %s1649 = sld [smem:[#allocation7 + $0x1d]]
    %v1650 = vstv %s1649
    %v1651 = vmul.f32 %v1318, %v1650
    %v1652 = vadd.f32 %v1648, %v1651
    %s1653 = sld [smem:[#allocation7 + $0x1e]]
    %v1654 = vstv %s1653
    %v1655 = vmul.f32 %v1427, %v1654
    %v1656 = vadd.f32 %v1652, %v1655
    %s1657 = sld [smem:[#allocation7 + $0x1f]]
    %v1658 = vstv %s1657
    %v1659 = vmul.f32 %v1536, %v1658
    %v1660 = vadd.f32 %v1656, %v1659
    %s1661 = sld [smem:[#allocation7 + $0x20]]
    %v1662 = vstv %s1661
    %v1663 = vmul.f32 %v773, %v1662
    %s1664 = sld [smem:[#allocation7 + $0x21]]
    %v1665 = vstv %s1664
    %v1666 = vmul.f32 %v882, %v1665
    %v1667 = vadd.f32 %v1663, %v1666
    %s1668 = sld [smem:[#allocation7 + $0x22]]
    %v1669 = vstv %s1668
    %v1670 = vmul.f32 %v991, %v1669
    %v1671 = vadd.f32 %v1667, %v1670
    %s1672 = sld [smem:[#allocation7 + $0x23]]
    %v1673 = vstv %s1672
    %v1674 = vmul.f32 %v1100, %v1673
    %v1675 = vadd.f32 %v1671, %v1674
    %s1676 = sld [smem:[#allocation7 + $0x24]]
    %v1677 = vstv %s1676
    %v1678 = vmul.f32 %v1209, %v1677
    %v1679 = vadd.f32 %v1675, %v1678
    %s1680 = sld [smem:[#allocation7 + $0x25]]
    %v1681 = vstv %s1680
    %v1682 = vmul.f32 %v1318, %v1681
    %v1683 = vadd.f32 %v1679, %v1682
    %s1684 = sld [smem:[#allocation7 + $0x26]]
    %v1685 = vstv %s1684
    %v1686 = vmul.f32 %v1427, %v1685
    %v1687 = vadd.f32 %v1683, %v1686
    %s1688 = sld [smem:[#allocation7 + $0x27]]
    %v1689 = vstv %s1688
    %v1690 = vmul.f32 %v1536, %v1689
    %v1691 = vadd.f32 %v1687, %v1690
    %s1692 = sld [smem:[#allocation7 + $0x28]]
    %v1693 = vstv %s1692
    %v1694 = vmul.f32 %v773, %v1693
    %s1695 = sld [smem:[#allocation7 + $0x29]]
    %v1696 = vstv %s1695
    %v1697 = vmul.f32 %v882, %v1696
    %v1698 = vadd.f32 %v1694, %v1697
    %s1699 = sld [smem:[#allocation7 + $0x2a]]
    %v1700 = vstv %s1699
    %v1701 = vmul.f32 %v991, %v1700
    %v1702 = vadd.f32 %v1698, %v1701
    %s1703 = sld [smem:[#allocation7 + $0x2b]]
    %v1704 = vstv %s1703
    %v1705 = vmul.f32 %v1100, %v1704
    %v1706 = vadd.f32 %v1702, %v1705
    %s1707 = sld [smem:[#allocation7 + $0x2c]]
    %v1708 = vstv %s1707
    %v1709 = vmul.f32 %v1209, %v1708
    %v1710 = vadd.f32 %v1706, %v1709
    %s1711 = sld [smem:[#allocation7 + $0x2d]]
    %v1712 = vstv %s1711
    %v1713 = vmul.f32 %v1318, %v1712
    %v1714 = vadd.f32 %v1710, %v1713
    %s1715 = sld [smem:[#allocation7 + $0x2e]]
    %v1716 = vstv %s1715
    %v1717 = vmul.f32 %v1427, %v1716
    %v1718 = vadd.f32 %v1714, %v1717
    %s1719 = sld [smem:[#allocation7 + $0x2f]]
    %v1720 = vstv %s1719
    %v1721 = vmul.f32 %v1536, %v1720
    %v1722 = vadd.f32 %v1718, %v1721
    %s1723 = sld [smem:[#allocation7 + $0x30]]
    %v1724 = vstv %s1723
    %v1725 = vmul.f32 %v773, %v1724
    %s1726 = sld [smem:[#allocation7 + $0x31]]
    %v1727 = vstv %s1726
    %v1728 = vmul.f32 %v882, %v1727
    %v1729 = vadd.f32 %v1725, %v1728
    %s1730 = sld [smem:[#allocation7 + $0x32]]
    %v1731 = vstv %s1730
    %v1732 = vmul.f32 %v991, %v1731
    %v1733 = vadd.f32 %v1729, %v1732
    %s1734 = sld [smem:[#allocation7 + $0x33]]
    %v1735 = vstv %s1734
    %v1736 = vmul.f32 %v1100, %v1735
    %v1737 = vadd.f32 %v1733, %v1736
    %s1738 = sld [smem:[#allocation7 + $0x34]]
    %v1739 = vstv %s1738
    %v1740 = vmul.f32 %v1209, %v1739
    %v1741 = vadd.f32 %v1737, %v1740
    %s1742 = sld [smem:[#allocation7 + $0x35]]
    %v1743 = vstv %s1742
    %v1744 = vmul.f32 %v1318, %v1743
    %v1745 = vadd.f32 %v1741, %v1744
    %s1746 = sld [smem:[#allocation7 + $0x36]]
    %v1747 = vstv %s1746
    %v1748 = vmul.f32 %v1427, %v1747
    %v1749 = vadd.f32 %v1745, %v1748
    %s1750 = sld [smem:[#allocation7 + $0x37]]
    %v1751 = vstv %s1750
    %v1752 = vmul.f32 %v1536, %v1751
    %v1753 = vadd.f32 %v1749, %v1752
    %s1754 = sld [smem:[#allocation7 + $0x38]]
    %v1755 = vstv %s1754
    %v1756 = vmul.f32 %v773, %v1755
    %s1757 = sld [smem:[#allocation7 + $0x39]]
    %v1758 = vstv %s1757
    %v1759 = vmul.f32 %v882, %v1758
    %v1760 = vadd.f32 %v1756, %v1759
    %s1761 = sld [smem:[#allocation7 + $0x3a]]
    %v1762 = vstv %s1761
    %v1763 = vmul.f32 %v991, %v1762
    %v1764 = vadd.f32 %v1760, %v1763
    %s1765 = sld [smem:[#allocation7 + $0x3b]]
    %v1766 = vstv %s1765
    %v1767 = vmul.f32 %v1100, %v1766
    %v1768 = vadd.f32 %v1764, %v1767
    %s1769 = sld [smem:[#allocation7 + $0x3c]]
    %v1770 = vstv %s1769
    %v1771 = vmul.f32 %v1209, %v1770
    %v1772 = vadd.f32 %v1768, %v1771
    %s1773 = sld [smem:[#allocation7 + $0x3d]]
    %v1774 = vstv %s1773
    %v1775 = vmul.f32 %v1318, %v1774
    %v1776 = vadd.f32 %v1772, %v1775
    %s1777 = sld [smem:[#allocation7 + $0x3e]]
    %v1778 = vstv %s1777
    %v1779 = vmul.f32 %v1427, %v1778
    %v1780 = vadd.f32 %v1776, %v1779
    %s1781 = sld [smem:[#allocation7 + $0x3f]]
    %v1782 = vstv %s1781
    %v1783 = vmul.f32 %v1536, %v1782
    %v1784 = vadd.f32 %v1780, %v1783
    %v1785 = vmax.f32 %v1567, %v1598
    %v1786 = vmax.f32 %v1785, %v1629
    %v1787 = vmax.f32 %v1786, %v1660
    %v1788 = vmax.f32 %v1787, %v1691
    %v1789 = vmax.f32 %v1788, %v1722
    %v1790 = vmax.f32 %v1789, %v1753
    %v1791 = vmax.f32 %v1790, %v1784
    %v1792 = vsub.f32 %v1567, %v1791
    %v1793 = vmul.f32 %v1792, 1.442695
    %v1794 = vpow.pop %v1793
    %v1795 = vsub.f32 %v1598, %v1791
    %v1796 = vmul.f32 %v1795, 1.442695
    %v1797 = vpow.pop %v1796
    %v1798 = vsub.f32 %v1629, %v1791
    %v1799 = vmul.f32 %v1798, 1.442695
    %v1800 = vpow.pop %v1799
    %v1801 = vsub.f32 %v1660, %v1791
    %v1802 = vmul.f32 %v1801, 1.442695
    %v1803 = vpow.pop %v1802
    %v1804 = vsub.f32 %v1691, %v1791
    %v1805 = vmul.f32 %v1804, 1.442695
    %v1806 = vpow.pop %v1805
    %v1807 = vsub.f32 %v1722, %v1791
    %v1808 = vmul.f32 %v1807, 1.442695
    %v1809 = vpow.pop %v1808
    %v1810 = vsub.f32 %v1753, %v1791
    %v1811 = vmul.f32 %v1810, 1.442695
    %v1812 = vpow.pop %v1811
    %v1813 = vsub.f32 %v1784, %v1791
    %v1814 = vmul.f32 %v1813, 1.442695
    %v1815 = vpow.pop %v1814
    %v1816 = vadd.f32 %v1794, %v1797
    %v1817 = vadd.f32 %v1816, %v1800
    %v1818 = vadd.f32 %v1817, %v1803
    %v1819 = vadd.f32 %v1818, %v1806
    %v1820 = vadd.f32 %v1819, %v1809
    %v1821 = vadd.f32 %v1820, %v1812
    %v1822 = vadd.f32 %v1821, %v1815
    %v1823 = vrcp.pop %v1822
    %v1824 = vmul.f32 1.0, %v1823
    %v1825 = vmul.f32 %v1794, %v1824
    %1826 = vst [vmem:[%s6] sm:$0xff] %v1825
    %v1827 = vmul.f32 %v1797, %v1824
    %s1828 = scalar_lea.vmem %s6, 8
    %1829 = vst [vmem:[%s1828] sm:$0xff] %v1827
    %v1830 = vmul.f32 %v1800, %v1824
    %s1831 = scalar_lea.vmem %s6, 16
    %1832 = vst [vmem:[%s1831] sm:$0xff] %v1830
    %v1833 = vmul.f32 %v1803, %v1824
    %s1834 = scalar_lea.vmem %s6, 24
    %1835 = vst [vmem:[%s1834] sm:$0xff] %v1833
    %v1836 = vmul.f32 %v1806, %v1824
    %s1837 = scalar_lea.vmem %s6, 32
    %1838 = vst [vmem:[%s1837] sm:$0xff] %v1836
    %v1839 = vmul.f32 %v1809, %v1824
    %s1840 = scalar_lea.vmem %s6, 40
    %1841 = vst [vmem:[%s1840] sm:$0xff] %v1839
    %v1842 = vmul.f32 %v1812, %v1824
    %s1843 = scalar_lea.vmem %s6, 48
    %1844 = vst [vmem:[%s1843] sm:$0xff] %v1842
    %v1845 = vmul.f32 %v1815, %v1824
    %s1846 = scalar_lea.vmem %s6, 56
    %1847 = vst [vmem:[%s1846] sm:$0xff] %v1845
    // Predicated region
    $region42: #{temporal_attention.1} parent=1 // pred_check
      _
    $region43: #{temporal_attention.1} parent=1 // pred_check_branch
      %1849 = sbr.rel (0) target = $region45
    $region44: #{temporal_attention.1} parent=1 // pred_region
      _
    $region45: #{temporal_attention.1} parent=1 // pred_fallthru
      _
    // Predicated region
    $region46: #{temporal_attention.1} parent=1 // pred_check
      _
    $region47: #{temporal_attention.1} parent=1 // pred_check_branch
      %1851 = sbr.rel (0) target = $region49
    $region48: #{temporal_attention.1} parent=1 // pred_region
      _
    $region49: #{temporal_attention.1} parent=1 // pred_fallthru
      _
    %1852 = vsyncpa [#allocation3], 1
    %1853 = vsyncpa [#allocation5], 1
    %1854 = vsyncpa [#allocation8], 1

</llo_original>
